<compile_context>
chip_gen: v6e
topology: v6e:2x2x1
jax: 0.10.0
libtpu: 0.0.40
codegen_flags: <defaults>
</compile_context>

<pallas_src>
import functools
import math

import numpy as np
import jax
import jax.numpy as jnp
from jax.experimental import pallas as pl
from jax.experimental.pallas import tpu as pltpu


def _round_up(v, m):
    return ((v + m - 1) // m) * m


# ---------------------------------------------------------------------------
# Kernel 1: layer-1 GraphConv + ReLU, plus the reassociated layer-2 terms
#   z = h @ W2_rel   (so kernel 2's N^2 matmul contracts at output width)
#   r = h @ W2_root + b2
# grid = (row tiles of A, col tiles of A);  col axis is the reduction.
# x is a single VMEM-resident block (n_pad, fp); k/i tiles are sliced inside.
# ---------------------------------------------------------------------------
def _layer1_kernel(a_ref, x_ref, w1_rel_ref, w1_root_ref, b1_ref,
                   w2_rel_ref, w2_root_ref, b2_ref,
                   z_ref, r_ref, acc_ref, *, tile_m, tile_k):
    i = pl.program_id(0)
    k = pl.program_id(1)

    @pl.when(k == 0)
    def _():
        acc_ref[...] = jnp.zeros_like(acc_ref)

    # Partial aggregation: A[i-tile, k-tile] @ x[k-tile]  (f32 accumulate).
    a = a_ref[...].astype(x_ref.dtype)                 # int8 -> compute dtype
    x_k = x_ref[pl.ds(pl.multiple_of(k * tile_k, tile_k), tile_k), :]
    acc_ref[...] += jnp.dot(a, x_k, preferred_element_type=jnp.float32)

    @pl.when(k == pl.num_programs(1) - 1)
    def _():
        agg = acc_ref[...]                             # stays f32
        x_root = x_ref[pl.ds(pl.multiple_of(i * tile_m, tile_m), tile_m), :]
        x_root = x_root.astype(jnp.float32)
        h = (jnp.dot(agg, w1_rel_ref[...], preferred_element_type=jnp.float32)
             + jnp.dot(x_root, w1_root_ref[...],
                       preferred_element_type=jnp.float32)
             + b1_ref[...])
        h = jnp.maximum(h, 0.0)                        # bias + ReLU in f32
        # Reassociated layer-2 matmul: A @ (h @ W2_rel) == (A @ h) @ W2_rel.
        z_ref[...] = jnp.dot(h, w2_rel_ref[...],
                             preferred_element_type=jnp.float32
                             ).astype(z_ref.dtype)
        # Folded layer-2 root term + bias (kernel 2 just adds it).
        r_ref[...] = (jnp.dot(h, w2_root_ref[...],
                              preferred_element_type=jnp.float32)
                      + b2_ref[...]).astype(r_ref.dtype)


# ---------------------------------------------------------------------------
# Kernel 2: layer-2 aggregation + precomputed root/bias term:
#   out[i-tile] = sum_k A[i,k] @ z[k]  +  r[i]
# z is a single VMEM-resident block (n_pad, op); k tiles are sliced inside.
# ---------------------------------------------------------------------------
def _layer2_kernel(a_ref, z_ref, r_ref, out_ref, acc_ref, *, tile_k):
    k = pl.program_id(1)

    @pl.when(k == 0)
    def _():
        acc_ref[...] = jnp.zeros_like(acc_ref)

    a = a_ref[...].astype(z_ref.dtype)                 # int8 -> compute dtype
    z_k = z_ref[pl.ds(pl.multiple_of(k * tile_k, tile_k), tile_k), :]
    acc_ref[...] += jnp.dot(a, z_k, preferred_element_type=jnp.float32)

    @pl.when(k == pl.num_programs(1) - 1)
    def _():
        out_ref[...] = (acc_ref[...] + r_ref[...]).astype(out_ref.dtype)


def graphconv2_forward(x, edge_index, params, *,
                       tile_m=512, tile_k=512, compute_dtype=jnp.bfloat16):
    """x: [N, F_in] float32, edge_index: [2, E] int32."""
    N, f_in = x.shape
    hidden = params["w1_rel"].shape[1]
    f_out = params["w2_rel"].shape[1]

    LANE = 128
    fp = _round_up(f_in, LANE)
    hp = _round_up(hidden, LANE)
    op = _round_up(f_out, LANE)
    lcm_tile = tile_m * tile_k // math.gcd(tile_m, tile_k)
    n_pad = _round_up(N, lcm_tile)
    grid = (n_pad // tile_m, n_pad // tile_k)

    # ---- plain-JAX glue: dense padded int8 adjacency + lane-dense padding --
    # TODO(synk): replace the dense N^2 adjacency with a CSR gather path.
    src, dst = edge_index[0], edge_index[1]
    # int8 edge-multiplicity counts are exact for <= 127 parallel edges per
    # (dst, src) pair; counts larger than that would wrap.
    A = jnp.zeros((n_pad, n_pad), jnp.int8).at[dst, src].add(jnp.int8(1))

    def pad2(w, r, c, dt):
        return jnp.zeros((r, c), dt).at[:w.shape[0], :w.shape[1]].set(
            w.astype(dt))

    x_p = pad2(x, n_pad, fp, compute_dtype)
    # Weights / biases stay f32: they are tiny, constant-index (fetched once),
    # and keeping them f32 avoids rounding the f32 accumulator before the
    # small weight matmuls.
    w1_rel = pad2(params["w1_rel"], fp, hp, jnp.float32)
    w1_root = pad2(params["w1_root"], fp, hp, jnp.float32)
    b1 = pad2(params["b1"], 1, hp, jnp.float32)
    w2_rel = pad2(params["w2_rel"], hp, op, jnp.float32)
    w2_root = pad2(params["w2_root"], hp, op, jnp.float32)
    b2 = pad2(params["b2"], 1, op, jnp.float32)

    # ---- VMEM budget (explicit: v5e's scoped default is only 16 MiB) -------
    c_item = jnp.dtype(compute_dtype).itemsize
    vmem_est = (
        n_pad * max(fp, op) * c_item            # resident x (k1) / z (k2)
        + 3 * tile_m * tile_k * 1               # A buffers (int8, DB + slack)
        + tile_m * max(fp, op) * 4              # f32 accumulator
        + 2 * 2 * (fp * hp + hp * op) * 4       # weights (double-buffered)
        + 2 * (1 * hp + 1 * op) * 4             # biases
        + 2 * 2 * tile_m * op * 4               # z/r (k1) or out (k2) buffers
        + 2 * tile_m * op * 4                   # r input (k2)
        + (4 << 20))                            # headroom
    vmem_limit = int(min(max(vmem_est, 32 << 20), 64 << 20))  # v7x phys 64 MiB

    # Row axis parallel (megacore / v7x dual-TC), reduction axis arbitrary.
    cparams = pltpu.CompilerParams(
        dimension_semantics=("parallel", "arbitrary"),
        vmem_limit_bytes=vmem_limit)

    # ---- kernel 1: layer 1 (+ReLU), z = h @ W2_rel, r = h @ W2_root + b2 ---
    z, r = pl.pallas_call(
        functools.partial(_layer1_kernel, tile_m=tile_m, tile_k=tile_k),
        out_shape=(jax.ShapeDtypeStruct((n_pad, op), compute_dtype),   # z
                   jax.ShapeDtypeStruct((n_pad, op), jnp.float32)),    # r
        grid_spec=pltpu.PrefetchScalarGridSpec(
            num_scalar_prefetch=0,
            grid=grid,
            in_specs=[
                pl.BlockSpec((tile_m, tile_k), lambda i, k: (i, k)),   # A
                pl.BlockSpec((n_pad, fp), lambda i, k: (0, 0)),        # x (res)
                pl.BlockSpec((fp, hp), lambda i, k: (0, 0)),           # W1_rel
                pl.BlockSpec((fp, hp), lambda i, k: (0, 0)),           # W1_root
                pl.BlockSpec((1, hp), lambda i, k: (0, 0)),            # b1
                pl.BlockSpec((hp, op), lambda i, k: (0, 0)),           # W2_rel
                pl.BlockSpec((hp, op), lambda i, k: (0, 0)),           # W2_root
                pl.BlockSpec((1, op), lambda i, k: (0, 0)),            # b2
            ],
            out_specs=[
                pl.BlockSpec((tile_m, op), lambda i, k: (i, 0)),       # z
                pl.BlockSpec((tile_m, op), lambda i, k: (i, 0)),       # r
            ],
            scratch_shapes=[pltpu.VMEM((tile_m, fp), jnp.float32)],
        ),
        compiler_params=cparams,
    )(A, x_p, w1_rel, w1_root, b1, w2_rel, w2_root, b2)

    # ---- kernel 2: layer-2 aggregation + precomputed root/bias term --------
    out = pl.pallas_call(
        functools.partial(_layer2_kernel, tile_k=tile_k),
        out_shape=jax.ShapeDtypeStruct((n_pad, op), jnp.float32),
        grid_spec=pltpu.PrefetchScalarGridSpec(
            num_scalar_prefetch=0,
            grid=grid,
            in_specs=[
                pl.BlockSpec((tile_m, tile_k), lambda i, k: (i, k)),   # A
                pl.BlockSpec((n_pad, op), lambda i, k: (0, 0)),        # z (res)
                pl.BlockSpec((tile_m, op), lambda i, k: (i, 0)),       # r
            ],
            out_specs=pl.BlockSpec((tile_m, op), lambda i, k: (i, 0)),
            scratch_shapes=[pltpu.VMEM((tile_m, op), jnp.float32)],
        ),
        compiler_params=cparams,
    )(A, z, r)

    # Slice away node / feature padding (lane-dense inside, exact outside).
    return out[:N, :f_out]


def init_params(key, f_in, hidden, f_out):
    ks = jax.random.split(key, 4)

    def glorot(k, shape):
        lim = (6.0 / (shape[0] + shape[1])) ** 0.5
        return jax.random.uniform(k, shape, jnp.float32, -lim, lim)

    # Stored as [in, out] (i.e. transposed vs. PyTorch's Linear weight).
    return {
        "w1_rel":  glorot(ks[0], (f_in, hidden)),
        "w1_root": glorot(ks[1], (f_in, hidden)),
        "b1":      jnp.zeros((1, hidden), jnp.float32),
        "w2_rel":  glorot(ks[2], (hidden, f_out)),
        "w2_root": glorot(ks[3], (hidden, f_out)),
        "b2":      jnp.zeros((1, f_out), jnp.float32),
    }


def _reference(x, edge_index, params):
    """Pure-JAX reference in the original PyG GraphConv order."""
    N = x.shape[0]
    src, dst = edge_index[0], edge_index[1]
    A = jnp.zeros((N, N), jnp.float32).at[dst, src].add(1.0)
    h = jnp.maximum(
        (A @ x) @ params["w1_rel"] + x @ params["w1_root"] + params["b1"], 0.0)
    return (A @ h) @ params["w2_rel"] + h @ params["w2_root"] + params["b2"]


if __name__ == "__main__":
    key = jax.random.PRNGKey(0)
    k_x, k_e, k_p = jax.random.split(key, 3)

    N, F_IN, HIDDEN, F_OUT, E = 16, 8, 16, 2, 32

    x = jax.random.normal(k_x, (N, F_IN), dtype=jnp.float32)
    # Deterministic edge_index: a ring plus random extra edges.
    ring_src = jnp.arange(N, dtype=jnp.int32)
    ring_dst = (ring_src + 1) % N
    rand_edges = jax.random.randint(k_e, (2, E - N), 0, N, dtype=jnp.int32)
    edge_index = jnp.concatenate(
        [jnp.stack([ring_src, ring_dst]), rand_edges], axis=1)  # [2, E]

    params = init_params(k_p, F_IN, HIDDEN, F_OUT)

    # bf16-MXU path (default) — performance configuration.
    out = graphconv2_forward(x, edge_index, params)
    jax.block_until_ready(out)
    assert out.shape == (N, F_OUT)
    assert bool(jnp.all(jnp.isfinite(out)))

    # Exact f32 path vs. pure-JAX reference (validates semantics).
    out_f32 = graphconv2_forward(x, edge_index, params,
                                 compute_dtype=jnp.float32)
    ref = _reference(x, edge_index, params)
    np.testing.assert_allclose(np.asarray(out_f32), np.asarray(ref),
                               rtol=1e-4, atol=1e-4)

    print("KERNEL_OK")
</pallas_src>

<mosaic_0001>
module attributes {stable_mosaic.version = 11 : i64} {
  func.func @_layer1_kernel(%arg0: i32, %arg1: i32, %arg2: memref<512x512xi8, #tpu.memory_space<vmem>>, %arg3: memref<512x128xbf16, #tpu.memory_space<vmem>>, %arg4: memref<128x128xf32, #tpu.memory_space<vmem>>, %arg5: memref<128x128xf32, #tpu.memory_space<vmem>>, %arg6: memref<1x128xf32, #tpu.memory_space<vmem>>, %arg7: memref<128x128xf32, #tpu.memory_space<vmem>>, %arg8: memref<128x128xf32, #tpu.memory_space<vmem>>, %arg9: memref<1x128xf32, #tpu.memory_space<vmem>>, %arg10: memref<512x128xbf16, #tpu.memory_space<vmem>>, %arg11: memref<512x128xf32, #tpu.memory_space<vmem>>, %arg12: memref<512x128xf32, #tpu.memory_space<vmem>>) attributes {dimension_semantics = [#tpu.dimension_semantics<parallel>, #tpu.dimension_semantics<arbitrary>], iteration_bounds = array<i64: 1, 1>, scalar_prefetch = 0 : i64, scratch_operands = 1 : i64, tpu.core_type = #tpu.core_type<tc>, window_params = [{transform_indices = @transform_0, window_bounds = array<i64: 512, 512>}, {pipeline_mode = #tpu.pipeline_mode<synchronous>, transform_indices = @transform_1, window_bounds = array<i64: 512, 128>}, {pipeline_mode = #tpu.pipeline_mode<synchronous>, transform_indices = @transform_2, window_bounds = array<i64: 128, 128>}, {pipeline_mode = #tpu.pipeline_mode<synchronous>, transform_indices = @transform_3, window_bounds = array<i64: 128, 128>}, {pipeline_mode = #tpu.pipeline_mode<synchronous>, transform_indices = @transform_4, window_bounds = array<i64: 1, 128>}, {pipeline_mode = #tpu.pipeline_mode<synchronous>, transform_indices = @transform_5, window_bounds = array<i64: 128, 128>}, {pipeline_mode = #tpu.pipeline_mode<synchronous>, transform_indices = @transform_6, window_bounds = array<i64: 128, 128>}, {pipeline_mode = #tpu.pipeline_mode<synchronous>, transform_indices = @transform_7, window_bounds = array<i64: 1, 128>}, {transform_indices = @transform_8, window_bounds = array<i64: 512, 128>}, {transform_indices = @transform_9, window_bounds = array<i64: 512, 128>}]} {
    %c0_i32 = arith.constant 0 : i32
    %0 = arith.cmpi eq, %arg1, %c0_i32 : i32
    %1 = arith.extui %0 : i1 to i32
    %c0_i32_0 = arith.constant 0 : i32
    %2 = arith.cmpi ne, %1, %c0_i32_0 : i32
    scf.if %2 {
      %cst_9 = arith.constant 0.000000e+00 : f32
      %16 = vector.broadcast %cst_9 : f32 to vector<512x128xf32>
      %c0_10 = arith.constant 0 : index
      %c0_11 = arith.constant 0 : index
      %17 = vector.load %arg12[%c0_10, %c0_11] : memref<512x128xf32, #tpu.memory_space<vmem>>, vector<512x128xf32>
      tpu.vector_store %arg12[%c0_10, %c0_11], %16 {strides = array<i32>} : memref<512x128xf32, #tpu.memory_space<vmem>>, vector<512x128xf32>,
    } else {
    }
    %c0 = arith.constant 0 : index
    %c0_1 = arith.constant 0 : index
    %3 = vector.load %arg2[%c0, %c0_1] : memref<512x512xi8, #tpu.memory_space<vmem>>, vector<512x512xi8>
    %4 = arith.sitofp %3 : vector<512x512xi8> to vector<512x512xbf16>
    %c512_i32 = arith.constant 512 : i32
    %5 = arith.muli %arg1, %c512_i32 : i32
    %6 = tpu.assume_multiple %5, 512 : i32
    %7 = arith.index_cast %6 : i32 to index
    %c0_2 = arith.constant 0 : index
    %8 = vector.load %arg3[%7, %c0_2] : memref<512x128xbf16, #tpu.memory_space<vmem>>, vector<512x128xbf16>
    %c0_3 = arith.constant 0 : index
    %c0_4 = arith.constant 0 : index
    %9 = vector.load %arg12[%c0_3, %c0_4] : memref<512x128xf32, #tpu.memory_space<vmem>>, vector<512x128xf32>
    %cst = arith.constant dense<0.000000e+00> : vector<512x128xf32>
    %10 = tpu.matmul %4, %8, %cst {dimension_numbers = #tpu.dot_dimension_numbers<[1], [0], [0], [1], [0, 0, 1, 1], [], []>} : vector<512x512xbf16>, vector<512x128xbf16>, vector<512x128xf32> -> vector<512x128xf32>
    %11 = arith.addf %9, %10 : vector<512x128xf32>
    %c0_5 = arith.constant 0 : index
    %c0_6 = arith.constant 0 : index
    %12 = vector.load %arg12[%c0_5, %c0_6] : memref<512x128xf32, #tpu.memory_space<vmem>>, vector<512x128xf32>
    tpu.vector_store %arg12[%c0_5, %c0_6], %11 {strides = array<i32>} : memref<512x128xf32, #tpu.memory_space<vmem>>, vector<512x128xf32>,
    %c0_i32_7 = arith.constant 0 : i32
    %13 = arith.cmpi eq, %arg1, %c0_i32_7 : i32
    %14 = arith.extui %13 : i1 to i32
    %c0_i32_8 = arith.constant 0 : i32
    %15 = arith.cmpi ne, %14, %c0_i32_8 : i32
    scf.if %15 {
      %c0_9 = arith.constant 0 : index
      %c0_10 = arith.constant 0 : index
      %16 = vector.load %arg12[%c0_9, %c0_10] : memref<512x128xf32, #tpu.memory_space<vmem>>, vector<512x128xf32>
      %c512_i32_11 = arith.constant 512 : i32
      %17 = arith.muli %arg0, %c512_i32_11 : i32
      %18 = tpu.assume_multiple %17, 512 : i32
      %19 = arith.index_cast %18 : i32 to index
      %c0_12 = arith.constant 0 : index
      %20 = vector.load %arg3[%19, %c0_12] : memref<512x128xbf16, #tpu.memory_space<vmem>>, vector<512x128xbf16>
      %21 = arith.extf %20 : vector<512x128xbf16> to vector<512x128xf32>
      %c0_13 = arith.constant 0 : index
      %c0_14 = arith.constant 0 : index
      %22 = vector.load %arg4[%c0_13, %c0_14] : memref<128x128xf32, #tpu.memory_space<vmem>>, vector<128x128xf32>
      %cst_15 = arith.constant dense<0.000000e+00> : vector<512x128xf32>
      %23 = tpu.matmul %16, %22, %cst_15 {dimension_numbers = #tpu.dot_dimension_numbers<[1], [0], [0], [1], [0, 0, 1, 1], [], []>} : vector<512x128xf32>, vector<128x128xf32>, vector<512x128xf32> -> vector<512x128xf32>
      %c0_16 = arith.constant 0 : index
      %c0_17 = arith.constant 0 : index
      %24 = vector.load %arg5[%c0_16, %c0_17] : memref<128x128xf32, #tpu.memory_space<vmem>>, vector<128x128xf32>
      %cst_18 = arith.constant dense<0.000000e+00> : vector<512x128xf32>
      %25 = tpu.matmul %21, %24, %cst_18 {dimension_numbers = #tpu.dot_dimension_numbers<[1], [0], [0], [1], [0, 0, 1, 1], [], []>} : vector<512x128xf32>, vector<128x128xf32>, vector<512x128xf32> -> vector<512x128xf32>
      %26 = arith.addf %23, %25 : vector<512x128xf32>
      %c0_19 = arith.constant 0 : index
      %c0_20 = arith.constant 0 : index
      %27 = vector.load %arg6[%c0_19, %c0_20] : memref<1x128xf32, #tpu.memory_space<vmem>>, vector<1x128xf32>
      %28 = vector.broadcast %27 : vector<1x128xf32> to vector<512x128xf32>
      %29 = arith.addf %26, %28 : vector<512x128xf32>
      %cst_21 = arith.constant 0.000000e+00 : f32
      %30 = vector.broadcast %cst_21 : f32 to vector<512x128xf32>
      %31 = arith.maximumf %29, %30 : vector<512x128xf32>
      %c0_22 = arith.constant 0 : index
      %c0_23 = arith.constant 0 : index
      %32 = vector.load %arg7[%c0_22, %c0_23] : memref<128x128xf32, #tpu.memory_space<vmem>>, vector<128x128xf32>
      %cst_24 = arith.constant dense<0.000000e+00> : vector<512x128xf32>
      %33 = tpu.matmul %31, %32, %cst_24 {dimension_numbers = #tpu.dot_dimension_numbers<[1], [0], [0], [1], [0, 0, 1, 1], [], []>} : vector<512x128xf32>, vector<128x128xf32>, vector<512x128xf32> -> vector<512x128xf32>
      %34 = arith.truncf %33 : vector<512x128xf32> to vector<512x128xbf16>
      %c0_25 = arith.constant 0 : index
      %c0_26 = arith.constant 0 : index
      %35 = vector.load %arg10[%c0_25, %c0_26] : memref<512x128xbf16, #tpu.memory_space<vmem>>, vector<512x128xbf16>
      tpu.vector_store %arg10[%c0_25, %c0_26], %34 {strides = array<i32>} : memref<512x128xbf16, #tpu.memory_space<vmem>>, vector<512x128xbf16>,
      %c0_27 = arith.constant 0 : index
      %c0_28 = arith.constant 0 : index
      %36 = vector.load %arg8[%c0_27, %c0_28] : memref<128x128xf32, #tpu.memory_space<vmem>>, vector<128x128xf32>
      %cst_29 = arith.constant dense<0.000000e+00> : vector<512x128xf32>
      %37 = tpu.matmul %31, %36, %cst_29 {dimension_numbers = #tpu.dot_dimension_numbers<[1], [0], [0], [1], [0, 0, 1, 1], [], []>} : vector<512x128xf32>, vector<128x128xf32>, vector<512x128xf32> -> vector<512x128xf32>
      %c0_30 = arith.constant 0 : index
      %c0_31 = arith.constant 0 : index
      %38 = vector.load %arg9[%c0_30, %c0_31] : memref<1x128xf32, #tpu.memory_space<vmem>>, vector<1x128xf32>
      %39 = vector.broadcast %38 : vector<1x128xf32> to vector<512x128xf32>
      %40 = arith.addf %37, %39 : vector<512x128xf32>
      %c0_32 = arith.constant 0 : index
      %c0_33 = arith.constant 0 : index
      %41 = vector.load %arg11[%c0_32, %c0_33] : memref<512x128xf32, #tpu.memory_space<vmem>>, vector<512x128xf32>
      tpu.vector_store %arg11[%c0_32, %c0_33], %40 {strides = array<i32>} : memref<512x128xf32, #tpu.memory_space<vmem>>, vector<512x128xf32>,
    } else {
    }
    return
  }
  func.func @transform_0(%arg0: i32, %arg1: i32) -> (i32, i32) {
    %c0_i32 = arith.constant 0 : i32
    return %arg0, %arg1 : i32, i32
  }
  func.func @transform_1(%arg0: i32, %arg1: i32) -> (i32, i32) {
    %c0_i32 = arith.constant 0 : i32
    %c0_i32_0 = arith.constant 0 : i32
    %c0_i32_1 = arith.constant 0 : i32
    return %c0_i32, %c0_i32_0 : i32, i32
  }
  func.func @transform_2(%arg0: i32, %arg1: i32) -> (i32, i32) {
    %c0_i32 = arith.constant 0 : i32
    %c0_i32_0 = arith.constant 0 : i32
    %c0_i32_1 = arith.constant 0 : i32
    return %c0_i32, %c0_i32_0 : i32, i32
  }
  func.func @transform_3(%arg0: i32, %arg1: i32) -> (i32, i32) {
    %c0_i32 = arith.constant 0 : i32
    %c0_i32_0 = arith.constant 0 : i32
    %c0_i32_1 = arith.constant 0 : i32
    return %c0_i32, %c0_i32_0 : i32, i32
  }
  func.func @transform_4(%arg0: i32, %arg1: i32) -> (i32, i32) {
    %c0_i32 = arith.constant 0 : i32
    %c0_i32_0 = arith.constant 0 : i32
    %c0_i32_1 = arith.constant 0 : i32
    return %c0_i32, %c0_i32_0 : i32, i32
  }
  func.func @transform_5(%arg0: i32, %arg1: i32) -> (i32, i32) {
    %c0_i32 = arith.constant 0 : i32
    %c0_i32_0 = arith.constant 0 : i32
    %c0_i32_1 = arith.constant 0 : i32
    return %c0_i32, %c0_i32_0 : i32, i32
  }
  func.func @transform_6(%arg0: i32, %arg1: i32) -> (i32, i32) {
    %c0_i32 = arith.constant 0 : i32
    %c0_i32_0 = arith.constant 0 : i32
    %c0_i32_1 = arith.constant 0 : i32
    return %c0_i32, %c0_i32_0 : i32, i32
  }
  func.func @transform_7(%arg0: i32, %arg1: i32) -> (i32, i32) {
    %c0_i32 = arith.constant 0 : i32
    %c0_i32_0 = arith.constant 0 : i32
    %c0_i32_1 = arith.constant 0 : i32
    return %c0_i32, %c0_i32_0 : i32, i32
  }
  func.func @transform_8(%arg0: i32, %arg1: i32) -> (i32, i32) {
    %c0_i32 = arith.constant 0 : i32
    %c0_i32_0 = arith.constant 0 : i32
    return %arg0, %c0_i32 : i32, i32
  }
  func.func @transform_9(%arg0: i32, %arg1: i32) -> (i32, i32) {
    %c0_i32 = arith.constant 0 : i32
    %c0_i32_0 = arith.constant 0 : i32
    return %arg0, %c0_i32 : i32, i32
  }
}

</mosaic_0001>

<llo_original>
// kernel: tpu_custom_call.1
$region0: #{tpu_custom_call.1}
  #allocation0 [shape = 'u32[]', space=smem, size = 0x4, offset = 0x4, fixed_abs, tag = 'smem constant byte address 0x4 - core index']
  #allocation1 [shape = 'u32[144,128]{1,0:T(1,128)}', space=vmem, size = 0x12000, scoped, tag = 'internal scratch']
  #allocation2 [shape = 'f32[512,128]{1,0:T(8,128)}', space=vmem, size = 0x40000, scoped, tag = 'scratch operand']
  %s0 = inlined_call_operand.hbm [shape: s8[512,512], index: 0, kind: input, shape index: {}]
  %s1 = inlined_call_operand.hbm [shape: bf16[512,128], index: 1, kind: input, shape index: {}]
  %s2 = inlined_call_operand.hbm [shape: f32[128,128], index: 2, kind: input, shape index: {}]
  %s3 = inlined_call_operand.hbm [shape: f32[128,128], index: 3, kind: input, shape index: {}]
  %s4 = inlined_call_operand.vmem [shape: f32[1,128], index: 4, kind: input, shape index: {}]
  %s5 = inlined_call_operand.hbm [shape: f32[128,128], index: 5, kind: input, shape index: {}]
  %s6 = inlined_call_operand.hbm [shape: f32[128,128], index: 6, kind: input, shape index: {}]
  %s7 = inlined_call_operand.vmem [shape: f32[1,128], index: 7, kind: input, shape index: {}]
  %s8 = inlined_call_operand.hbm [shape: bf16[512,128], index: 8, kind: output, shape index: {0}]
  %s9 = inlined_call_operand.hbm [shape: f32[512,128], index: 9, kind: output, shape index: {1}]
  %10 = xla_tuple %s8, %s9
  %s11 = sld [smem:[#allocation0]]
  $region82: #{tpu_custom_call.1} parent=0
    _
  %s13 = ssub.s32 1, %s11
  %s14 = scalar_select 0, %s13, %s11
  $region1: #{tpu_custom_call.1} parent=0
    #allocation3 [shape = 'u8[262144]{0}', space=vmem, size = 0x40000, scoped, tag = 'input window, operand 0, single buffered']
    #allocation4 [shape = 's32[1]{0}', space=sflag, size = 0x4, scoped, tag = 'scoped memory for tpu_custom_call.1']
    #allocation5 [shape = 's32[1]{0}', space=sflag, size = 0x4, scoped, tag = 'scoped memory for tpu_custom_call.1']
    #allocation6 [shape = 'u8[131072]{0}', space=vmem, size = 0x20000, scoped, tag = 'input window, operand 1, single buffered']
    #allocation7 [shape = 's32[1]{0}', space=sflag, size = 0x4, scoped, tag = 'scoped memory for tpu_custom_call.1']
    #allocation8 [shape = 'u8[65536]{0}', space=vmem, size = 0x10000, scoped, tag = 'input window, operand 2, single buffered']
    #allocation9 [shape = 'u8[65536]{0}', space=vmem, size = 0x10000, scoped, tag = 'input window, operand 3, single buffered']
    #allocation10 [shape = 's32[1]{0}', space=sflag, size = 0x4, scoped, tag = 'scoped memory for tpu_custom_call.1']
    #allocation11 [shape = 'u8[65536]{0}', space=vmem, size = 0x10000, scoped, tag = 'input window, operand 5, single buffered']
    #allocation12 [shape = 'u8[65536]{0}', space=vmem, size = 0x10000, scoped, tag = 'input window, operand 6, single buffered']
    #allocation13 [shape = 's32[1]{0}', space=sflag, size = 0x4, scoped, tag = 'scoped memory for tpu_custom_call.1']
    #allocation14 [shape = 'u8[131072]{0}', space=vmem, size = 0x20000, scoped, tag = 'output window, operand 0, single buffered']
    #allocation15 [shape = 'u8[262144]{0}', space=vmem, size = 0x40000, scoped, tag = 'output window, operand 1, single buffered']
    #allocation16 [shape = 's32[1]{0}', space=sflag, size = 0x4, scoped, tag = 'scoped memory for tpu_custom_call.1']
    %15 = vsyncpa [#allocation4], 0
    %16 = vsyncpa [#allocation7], 0
    %17 = vsyncpa [#allocation10], 0
    %18 = vsyncpa [#allocation13], 0
    %19 = vsyncpa [#allocation5], 0
    %20 = vsyncpa [#allocation16], 0
    // Predicated region
    $region2: #{tpu_custom_call.1} parent=1 // pred_check
      _
    $region3: #{tpu_custom_call.1} parent=1 // pred_check_branch
      %22 = sbr.rel (0) target = $region5
    $region4: #{tpu_custom_call.1} parent=1 // pred_region
      %s24 = ssub.s32 8192, 8192
      %25 = vsyncadd [#allocation4], %s24
      %s26 = sshll.u32 [#allocation3], 4
      %s27 = int_to_ptr.vmem [resolvable:$true] %s26
      %32 = dma.hbm_to_vmem [thread:$0]  %s0, 8192, %s27, [#allocation4], 512, 512, 32
    $region5: #{tpu_custom_call.1} parent=1 // pred_fallthru
      _
    // Predicated region
    $region6: #{tpu_custom_call.1} parent=1 // pred_check
      _
    $region7: #{tpu_custom_call.1} parent=1 // pred_check_branch
      %34 = sbr.rel (0) target = $region9
    $region8: #{tpu_custom_call.1} parent=1 // pred_region
      %s36 = ssub.s32 4096, 4096
      %37 = vsyncadd [#allocation7], %s36
      %s38 = sshll.u32 [#allocation6], 4
      %s39 = int_to_ptr.vmem [resolvable:$true] %s38
      %44 = dma.hbm_to_vmem [thread:$0]  %s1, 4096, %s39, [#allocation7], 64, 64, 4
    $region9: #{tpu_custom_call.1} parent=1 // pred_fallthru
      _
    // Predicated region
    $region10: #{tpu_custom_call.1} parent=1 // pred_check
      _
    $region11: #{tpu_custom_call.1} parent=1 // pred_check_branch
      %46 = sbr.rel (0) target = $region13
    $region12: #{tpu_custom_call.1} parent=1 // pred_region
      %s48 = ssub.s32 2048, 2048
      %49 = vsyncadd [#allocation7], %s48
      %s50 = sshll.u32 [#allocation8], 4
      %s51 = int_to_ptr.vmem [resolvable:$true] %s50
      %56 = dma.hbm_to_vmem [thread:$0]  %s2, 2048, %s51, [#allocation7], 128, 128, 8
    $region13: #{tpu_custom_call.1} parent=1 // pred_fallthru
      _
    // Predicated region
    $region14: #{tpu_custom_call.1} parent=1 // pred_check
      _
    $region15: #{tpu_custom_call.1} parent=1 // pred_check_branch
      %58 = sbr.rel (0) target = $region17
    $region16: #{tpu_custom_call.1} parent=1 // pred_region
      %s60 = ssub.s32 2048, 2048
      %61 = vsyncadd [#allocation10], %s60
      %s62 = sshll.u32 [#allocation9], 4
      %s63 = int_to_ptr.vmem [resolvable:$true] %s62
      %68 = dma.hbm_to_vmem [thread:$0]  %s3, 2048, %s63, [#allocation10], 128, 128, 8
    $region17: #{tpu_custom_call.1} parent=1 // pred_fallthru
      _
    // Predicated region
    $region18: #{tpu_custom_call.1} parent=1 // pred_check
      _
    $region19: #{tpu_custom_call.1} parent=1 // pred_check_branch
      %70 = sbr.rel (0) target = $region21
    $region20: #{tpu_custom_call.1} parent=1 // pred_region
      _
    $region21: #{tpu_custom_call.1} parent=1 // pred_fallthru
      _
    // Predicated region
    $region22: #{tpu_custom_call.1} parent=1 // pred_check
      _
    $region23: #{tpu_custom_call.1} parent=1 // pred_check_branch
      %72 = sbr.rel (0) target = $region25
    $region24: #{tpu_custom_call.1} parent=1 // pred_region
      %s74 = ssub.s32 2048, 2048
      %75 = vsyncadd [#allocation10], %s74
      %s76 = sshll.u32 [#allocation11], 4
      %s77 = int_to_ptr.vmem [resolvable:$true] %s76
      %82 = dma.hbm_to_vmem [thread:$0]  %s5, 2048, %s77, [#allocation10], 128, 128, 8
    $region25: #{tpu_custom_call.1} parent=1 // pred_fallthru
      _
    // Predicated region
    $region26: #{tpu_custom_call.1} parent=1 // pred_check
      _
    $region27: #{tpu_custom_call.1} parent=1 // pred_check_branch
      %84 = sbr.rel (0) target = $region29
    $region28: #{tpu_custom_call.1} parent=1 // pred_region
      %s86 = ssub.s32 2048, 2048
      %87 = vsyncadd [#allocation13], %s86
      %s88 = sshll.u32 [#allocation12], 4
      %s89 = int_to_ptr.vmem [resolvable:$true] %s88
      %94 = dma.hbm_to_vmem [thread:$0]  %s6, 2048, %s89, [#allocation13], 128, 128, 8
    $region29: #{tpu_custom_call.1} parent=1 // pred_fallthru
      _
    // Predicated region
    $region30: #{tpu_custom_call.1} parent=1 // pred_check
      _
    $region31: #{tpu_custom_call.1} parent=1 // pred_check_branch
      %96 = sbr.rel (0) target = $region33
    $region32: #{tpu_custom_call.1} parent=1 // pred_region
      _
    $region33: #{tpu_custom_call.1} parent=1 // pred_fallthru
      _
    // Predicated region
    $region34: #{tpu_custom_call.1} parent=1 // pred_check
      _
    $region35: #{tpu_custom_call.1} parent=1 // pred_check_branch
      %98 = sbr.rel (0) target = $region37
    $region36: #{tpu_custom_call.1} parent=1 // pred_region
      %99 = dma.done [#allocation4], 8192
    $region37: #{tpu_custom_call.1} parent=1 // pred_fallthru
      _
    // Predicated region
    $region38: #{tpu_custom_call.1} parent=1 // pred_check
      _
    $region39: #{tpu_custom_call.1} parent=1 // pred_check_branch
      %101 = sbr.rel (0) target = $region41
    $region40: #{tpu_custom_call.1} parent=1 // pred_region
      %102 = dma.done [#allocation7], 4096
    $region41: #{tpu_custom_call.1} parent=1 // pred_fallthru
      _
    // Predicated region
    $region42: #{tpu_custom_call.1} parent=1 // pred_check
      _
    $region43: #{tpu_custom_call.1} parent=1 // pred_check_branch
      %104 = sbr.rel (0) target = $region45
    $region44: #{tpu_custom_call.1} parent=1 // pred_region
      %105 = dma.done [#allocation7], 2048
    $region45: #{tpu_custom_call.1} parent=1 // pred_fallthru
      _
    // Predicated region
    $region46: #{tpu_custom_call.1} parent=1 // pred_check
      _
    $region47: #{tpu_custom_call.1} parent=1 // pred_check_branch
      %107 = sbr.rel (0) target = $region49
    $region48: #{tpu_custom_call.1} parent=1 // pred_region
      %108 = dma.done [#allocation10], 2048
    $region49: #{tpu_custom_call.1} parent=1 // pred_fallthru
      _
    // Predicated region
    $region50: #{tpu_custom_call.1} parent=1 // pred_check
      _
    $region51: #{tpu_custom_call.1} parent=1 // pred_check_branch
      %110 = sbr.rel (0) target = $region53
    $region52: #{tpu_custom_call.1} parent=1 // pred_region
      %111 = dma.done [#allocation10], 2048
    $region53: #{tpu_custom_call.1} parent=1 // pred_fallthru
      _
    // Predicated region
    $region54: #{tpu_custom_call.1} parent=1 // pred_check
      _
    $region55: #{tpu_custom_call.1} parent=1 // pred_check_branch
      %113 = sbr.rel (0) target = $region57
    $region56: #{tpu_custom_call.1} parent=1 // pred_region
      %114 = dma.done [#allocation13], 2048
    $region57: #{tpu_custom_call.1} parent=1 // pred_fallthru
      _
    %p116 = scmp.eq.s32.totalorder 0, 0
    // Predicated region
    $region58: #{tpu_custom_call.1} parent=1 // pred_check
      %p117 = pneg %p116
    $region59: #{tpu_custom_call.1} parent=1 // pred_check_branch
      %119 = sbr.rel (%p117) target = $region61
    $region60: #{tpu_custom_call.1} parent=1 // pred_region
      %120 = vst [vmem:[#allocation2] sm:$0xff] 0.0
      %121 = vst [vmem:[#allocation2 + $0x8] sm:$0xff] 0.0
      %122 = vst [vmem:[#allocation2 + $0x10] sm:$0xff] 0.0
      %123 = vst [vmem:[#allocation2 + $0x18] sm:$0xff] 0.0
      %124 = vst [vmem:[#allocation2 + $0x20] sm:$0xff] 0.0
      %125 = vst [vmem:[#allocation2 + $0x28] sm:$0xff] 0.0
      %126 = vst [vmem:[#allocation2 + $0x30] sm:$0xff] 0.0
      %127 = vst [vmem:[#allocation2 + $0x38] sm:$0xff] 0.0
      %128 = vst [vmem:[#allocation2 + $0x40] sm:$0xff] 0.0
      %129 = vst [vmem:[#allocation2 + $0x48] sm:$0xff] 0.0
      %130 = vst [vmem:[#allocation2 + $0x50] sm:$0xff] 0.0
      %131 = vst [vmem:[#allocation2 + $0x58] sm:$0xff] 0.0
      %132 = vst [vmem:[#allocation2 + $0x60] sm:$0xff] 0.0
      %133 = vst [vmem:[#allocation2 + $0x68] sm:$0xff] 0.0
      %134 = vst [vmem:[#allocation2 + $0x70] sm:$0xff] 0.0
      %135 = vst [vmem:[#allocation2 + $0x78] sm:$0xff] 0.0
      %136 = vst [vmem:[#allocation2 + $0x80] sm:$0xff] 0.0
      %137 = vst [vmem:[#allocation2 + $0x88] sm:$0xff] 0.0
      %138 = vst [vmem:[#allocation2 + $0x90] sm:$0xff] 0.0
      %139 = vst [vmem:[#allocation2 + $0x98] sm:$0xff] 0.0
      %140 = vst [vmem:[#allocation2 + $0xa0] sm:$0xff] 0.0
      %141 = vst [vmem:[#allocation2 + $0xa8] sm:$0xff] 0.0
      %142 = vst [vmem:[#allocation2 + $0xb0] sm:$0xff] 0.0
      %143 = vst [vmem:[#allocation2 + $0xb8] sm:$0xff] 0.0
      %144 = vst [vmem:[#allocation2 + $0xc0] sm:$0xff] 0.0
      %145 = vst [vmem:[#allocation2 + $0xc8] sm:$0xff] 0.0
      %146 = vst [vmem:[#allocation2 + $0xd0] sm:$0xff] 0.0
      %147 = vst [vmem:[#allocation2 + $0xd8] sm:$0xff] 0.0
      %148 = vst [vmem:[#allocation2 + $0xe0] sm:$0xff] 0.0
      %149 = vst [vmem:[#allocation2 + $0xe8] sm:$0xff] 0.0
      %150 = vst [vmem:[#allocation2 + $0xf0] sm:$0xff] 0.0
      %151 = vst [vmem:[#allocation2 + $0xf8] sm:$0xff] 0.0
      %152 = vst [vmem:[#allocation2 + $0x100] sm:$0xff] 0.0
      %153 = vst [vmem:[#allocation2 + $0x108] sm:$0xff] 0.0
      %154 = vst [vmem:[#allocation2 + $0x110] sm:$0xff] 0.0
      %155 = vst [vmem:[#allocation2 + $0x118] sm:$0xff] 0.0
      %156 = vst [vmem:[#allocation2 + $0x120] sm:$0xff] 0.0
      %157 = vst [vmem:[#allocation2 + $0x128] sm:$0xff] 0.0
      %158 = vst [vmem:[#allocation2 + $0x130] sm:$0xff] 0.0
      %159 = vst [vmem:[#allocation2 + $0x138] sm:$0xff] 0.0
      %160 = vst [vmem:[#allocation2 + $0x140] sm:$0xff] 0.0
      %161 = vst [vmem:[#allocation2 + $0x148] sm:$0xff] 0.0
      %162 = vst [vmem:[#allocation2 + $0x150] sm:$0xff] 0.0
      %163 = vst [vmem:[#allocation2 + $0x158] sm:$0xff] 0.0
      %164 = vst [vmem:[#allocation2 + $0x160] sm:$0xff] 0.0
      %165 = vst [vmem:[#allocation2 + $0x168] sm:$0xff] 0.0
      %166 = vst [vmem:[#allocation2 + $0x170] sm:$0xff] 0.0
      %167 = vst [vmem:[#allocation2 + $0x178] sm:$0xff] 0.0
      %168 = vst [vmem:[#allocation2 + $0x180] sm:$0xff] 0.0
      %169 = vst [vmem:[#allocation2 + $0x188] sm:$0xff] 0.0
      %170 = vst [vmem:[#allocation2 + $0x190] sm:$0xff] 0.0
      %171 = vst [vmem:[#allocation2 + $0x198] sm:$0xff] 0.0
      %172 = vst [vmem:[#allocation2 + $0x1a0] sm:$0xff] 0.0
      %173 = vst [vmem:[#allocation2 + $0x1a8] sm:$0xff] 0.0
      %174 = vst [vmem:[#allocation2 + $0x1b0] sm:$0xff] 0.0
      %175 = vst [vmem:[#allocation2 + $0x1b8] sm:$0xff] 0.0
      %176 = vst [vmem:[#allocation2 + $0x1c0] sm:$0xff] 0.0
      %177 = vst [vmem:[#allocation2 + $0x1c8] sm:$0xff] 0.0
      %178 = vst [vmem:[#allocation2 + $0x1d0] sm:$0xff] 0.0
      %179 = vst [vmem:[#allocation2 + $0x1d8] sm:$0xff] 0.0
      %180 = vst [vmem:[#allocation2 + $0x1e0] sm:$0xff] 0.0
      %181 = vst [vmem:[#allocation2 + $0x1e8] sm:$0xff] 0.0
      %182 = vst [vmem:[#allocation2 + $0x1f0] sm:$0xff] 0.0
      %183 = vst [vmem:[#allocation2 + $0x1f8] sm:$0xff] 0.0
    $region61: #{tpu_custom_call.1} parent=1 // pred_fallthru
      _
    %v184 = vld [vmem:[#allocation3] sm:$0xff]
    %v185 = vld [vmem:[#allocation3 + $0x8] sm:$0xff]
    %v186 = vld [vmem:[#allocation3 + $0x10] sm:$0xff]
    %v187 = vld [vmem:[#allocation3 + $0x18] sm:$0xff]
    %v188 = vld [vmem:[#allocation3 + $0x20] sm:$0xff]
    %v189 = vld [vmem:[#allocation3 + $0x28] sm:$0xff]
    %v190 = vld [vmem:[#allocation3 + $0x30] sm:$0xff]
    %v191 = vld [vmem:[#allocation3 + $0x38] sm:$0xff]
    %v192 = vld [vmem:[#allocation3 + $0x40] sm:$0xff]
    %v193 = vld [vmem:[#allocation3 + $0x48] sm:$0xff]
    %v194 = vld [vmem:[#allocation3 + $0x50] sm:$0xff]
    %v195 = vld [vmem:[#allocation3 + $0x58] sm:$0xff]
    %v196 = vld [vmem:[#allocation3 + $0x60] sm:$0xff]
    %v197 = vld [vmem:[#allocation3 + $0x68] sm:$0xff]
    %v198 = vld [vmem:[#allocation3 + $0x70] sm:$0xff]
    %v199 = vld [vmem:[#allocation3 + $0x78] sm:$0xff]
    %v200 = vld [vmem:[#allocation3 + $0x80] sm:$0xff]
    %v201 = vld [vmem:[#allocation3 + $0x88] sm:$0xff]
    %v202 = vld [vmem:[#allocation3 + $0x90] sm:$0xff]
    %v203 = vld [vmem:[#allocation3 + $0x98] sm:$0xff]
    %v204 = vld [vmem:[#allocation3 + $0xa0] sm:$0xff]
    %v205 = vld [vmem:[#allocation3 + $0xa8] sm:$0xff]
    %v206 = vld [vmem:[#allocation3 + $0xb0] sm:$0xff]
    %v207 = vld [vmem:[#allocation3 + $0xb8] sm:$0xff]
    %v208 = vld [vmem:[#allocation3 + $0xc0] sm:$0xff]
    %v209 = vld [vmem:[#allocation3 + $0xc8] sm:$0xff]
    %v210 = vld [vmem:[#allocation3 + $0xd0] sm:$0xff]
    %v211 = vld [vmem:[#allocation3 + $0xd8] sm:$0xff]
    %v212 = vld [vmem:[#allocation3 + $0xe0] sm:$0xff]
    %v213 = vld [vmem:[#allocation3 + $0xe8] sm:$0xff]
    %v214 = vld [vmem:[#allocation3 + $0xf0] sm:$0xff]
    %v215 = vld [vmem:[#allocation3 + $0xf8] sm:$0xff]
    %v216 = vld [vmem:[#allocation3 + $0x100] sm:$0xff]
    %v217 = vld [vmem:[#allocation3 + $0x108] sm:$0xff]
    %v218 = vld [vmem:[#allocation3 + $0x110] sm:$0xff]
    %v219 = vld [vmem:[#allocation3 + $0x118] sm:$0xff]
    %v220 = vld [vmem:[#allocation3 + $0x120] sm:$0xff]
    %v221 = vld [vmem:[#allocation3 + $0x128] sm:$0xff]
    %v222 = vld [vmem:[#allocation3 + $0x130] sm:$0xff]
    %v223 = vld [vmem:[#allocation3 + $0x138] sm:$0xff]
    %v224 = vld [vmem:[#allocation3 + $0x140] sm:$0xff]
    %v225 = vld [vmem:[#allocation3 + $0x148] sm:$0xff]
    %v226 = vld [vmem:[#allocation3 + $0x150] sm:$0xff]
    %v227 = vld [vmem:[#allocation3 + $0x158] sm:$0xff]
    %v228 = vld [vmem:[#allocation3 + $0x160] sm:$0xff]
    %v229 = vld [vmem:[#allocation3 + $0x168] sm:$0xff]
    %v230 = vld [vmem:[#allocation3 + $0x170] sm:$0xff]
    %v231 = vld [vmem:[#allocation3 + $0x178] sm:$0xff]
    %v232 = vld [vmem:[#allocation3 + $0x180] sm:$0xff]
    %v233 = vld [vmem:[#allocation3 + $0x188] sm:$0xff]
    %v234 = vld [vmem:[#allocation3 + $0x190] sm:$0xff]
    %v235 = vld [vmem:[#allocation3 + $0x198] sm:$0xff]
    %v236 = vld [vmem:[#allocation3 + $0x1a0] sm:$0xff]
    %v237 = vld [vmem:[#allocation3 + $0x1a8] sm:$0xff]
    %v238 = vld [vmem:[#allocation3 + $0x1b0] sm:$0xff]
    %v239 = vld [vmem:[#allocation3 + $0x1b8] sm:$0xff]
    %v240 = vld [vmem:[#allocation3 + $0x1c0] sm:$0xff]
    %v241 = vld [vmem:[#allocation3 + $0x1c8] sm:$0xff]
    %v242 = vld [vmem:[#allocation3 + $0x1d0] sm:$0xff]
    %v243 = vld [vmem:[#allocation3 + $0x1d8] sm:$0xff]
    %v244 = vld [vmem:[#allocation3 + $0x1e0] sm:$0xff]
    %v245 = vld [vmem:[#allocation3 + $0x1e8] sm:$0xff]
    %v246 = vld [vmem:[#allocation3 + $0x1f0] sm:$0xff]
    %v247 = vld [vmem:[#allocation3 + $0x1f8] sm:$0xff]
    %v248 = vunpack.c.l.s8.bf16 %v184
    %v249 = vunpack.c.l.s8.bf16 %v185
    %v250 = vunpack.c.l.s8.bf16 %v186
    %v251 = vunpack.c.l.s8.bf16 %v187
    %v252 = vunpack.c.h.s8.bf16 %v184
    %v253 = vunpack.c.h.s8.bf16 %v185
    %v254 = vunpack.c.h.s8.bf16 %v186
    %v255 = vunpack.c.h.s8.bf16 %v187
    %v256 = vunpack.c.l.s8.bf16 %v188
    %v257 = vunpack.c.l.s8.bf16 %v189
    %v258 = vunpack.c.l.s8.bf16 %v190
    %v259 = vunpack.c.l.s8.bf16 %v191
    %v260 = vunpack.c.h.s8.bf16 %v188
    %v261 = vunpack.c.h.s8.bf16 %v189
    %v262 = vunpack.c.h.s8.bf16 %v190
    %v263 = vunpack.c.h.s8.bf16 %v191
    %v264 = vunpack.c.l.s8.bf16 %v192
    %v265 = vunpack.c.l.s8.bf16 %v193
    %v266 = vunpack.c.l.s8.bf16 %v194
    %v267 = vunpack.c.l.s8.bf16 %v195
    %v268 = vunpack.c.h.s8.bf16 %v192
    %v269 = vunpack.c.h.s8.bf16 %v193
    %v270 = vunpack.c.h.s8.bf16 %v194
    %v271 = vunpack.c.h.s8.bf16 %v195
    %v272 = vunpack.c.l.s8.bf16 %v196
    %v273 = vunpack.c.l.s8.bf16 %v197
    %v274 = vunpack.c.l.s8.bf16 %v198
    %v275 = vunpack.c.l.s8.bf16 %v199
    %v276 = vunpack.c.h.s8.bf16 %v196
    %v277 = vunpack.c.h.s8.bf16 %v197
    %v278 = vunpack.c.h.s8.bf16 %v198
    %v279 = vunpack.c.h.s8.bf16 %v199
    %v280 = vunpack.c.l.s8.bf16 %v200
    %v281 = vunpack.c.l.s8.bf16 %v201
    %v282 = vunpack.c.l.s8.bf16 %v202
    %v283 = vunpack.c.l.s8.bf16 %v203
    %v284 = vunpack.c.h.s8.bf16 %v200
    %v285 = vunpack.c.h.s8.bf16 %v201
    %v286 = vunpack.c.h.s8.bf16 %v202
    %v287 = vunpack.c.h.s8.bf16 %v203
    %v288 = vunpack.c.l.s8.bf16 %v204
    %v289 = vunpack.c.l.s8.bf16 %v205
    %v290 = vunpack.c.l.s8.bf16 %v206
    %v291 = vunpack.c.l.s8.bf16 %v207
    %v292 = vunpack.c.h.s8.bf16 %v204
    %v293 = vunpack.c.h.s8.bf16 %v205
    %v294 = vunpack.c.h.s8.bf16 %v206
    %v295 = vunpack.c.h.s8.bf16 %v207
    %v296 = vunpack.c.l.s8.bf16 %v208
    %v297 = vunpack.c.l.s8.bf16 %v209
    %v298 = vunpack.c.l.s8.bf16 %v210
    %v299 = vunpack.c.l.s8.bf16 %v211
    %v300 = vunpack.c.h.s8.bf16 %v208
    %v301 = vunpack.c.h.s8.bf16 %v209
    %v302 = vunpack.c.h.s8.bf16 %v210
    %v303 = vunpack.c.h.s8.bf16 %v211
    %v304 = vunpack.c.l.s8.bf16 %v212
    %v305 = vunpack.c.l.s8.bf16 %v213
    %v306 = vunpack.c.l.s8.bf16 %v214
    %v307 = vunpack.c.l.s8.bf16 %v215
    %v308 = vunpack.c.h.s8.bf16 %v212
    %v309 = vunpack.c.h.s8.bf16 %v213
    %v310 = vunpack.c.h.s8.bf16 %v214
    %v311 = vunpack.c.h.s8.bf16 %v215
    %v312 = vunpack.c.l.s8.bf16 %v216
    %v313 = vunpack.c.l.s8.bf16 %v217
    %v314 = vunpack.c.l.s8.bf16 %v218
    %v315 = vunpack.c.l.s8.bf16 %v219
    %v316 = vunpack.c.h.s8.bf16 %v216
    %v317 = vunpack.c.h.s8.bf16 %v217
    %v318 = vunpack.c.h.s8.bf16 %v218
    %v319 = vunpack.c.h.s8.bf16 %v219
    %v320 = vunpack.c.l.s8.bf16 %v220
    %v321 = vunpack.c.l.s8.bf16 %v221
    %v322 = vunpack.c.l.s8.bf16 %v222
    %v323 = vunpack.c.l.s8.bf16 %v223
    %v324 = vunpack.c.h.s8.bf16 %v220
    %v325 = vunpack.c.h.s8.bf16 %v221
    %v326 = vunpack.c.h.s8.bf16 %v222
    %v327 = vunpack.c.h.s8.bf16 %v223
    %v328 = vunpack.c.l.s8.bf16 %v224
    %v329 = vunpack.c.l.s8.bf16 %v225
    %v330 = vunpack.c.l.s8.bf16 %v226
    %v331 = vunpack.c.l.s8.bf16 %v227
    %v332 = vunpack.c.h.s8.bf16 %v224
    %v333 = vunpack.c.h.s8.bf16 %v225
    %v334 = vunpack.c.h.s8.bf16 %v226
    %v335 = vunpack.c.h.s8.bf16 %v227
    %v336 = vunpack.c.l.s8.bf16 %v228
    %v337 = vunpack.c.l.s8.bf16 %v229
    %v338 = vunpack.c.l.s8.bf16 %v230
    %v339 = vunpack.c.l.s8.bf16 %v231
    %v340 = vunpack.c.h.s8.bf16 %v228
    %v341 = vunpack.c.h.s8.bf16 %v229
    %v342 = vunpack.c.h.s8.bf16 %v230
    %v343 = vunpack.c.h.s8.bf16 %v231
    %v344 = vunpack.c.l.s8.bf16 %v232
    %v345 = vunpack.c.l.s8.bf16 %v233
    %v346 = vunpack.c.l.s8.bf16 %v234
    %v347 = vunpack.c.l.s8.bf16 %v235
    %v348 = vunpack.c.h.s8.bf16 %v232
    %v349 = vunpack.c.h.s8.bf16 %v233
    %v350 = vunpack.c.h.s8.bf16 %v234
    %v351 = vunpack.c.h.s8.bf16 %v235
    %v352 = vunpack.c.l.s8.bf16 %v236
    %v353 = vunpack.c.l.s8.bf16 %v237
    %v354 = vunpack.c.l.s8.bf16 %v238
    %v355 = vunpack.c.l.s8.bf16 %v239
    %v356 = vunpack.c.h.s8.bf16 %v236
    %v357 = vunpack.c.h.s8.bf16 %v237
    %v358 = vunpack.c.h.s8.bf16 %v238
    %v359 = vunpack.c.h.s8.bf16 %v239
    %v360 = vunpack.c.l.s8.bf16 %v240
    %v361 = vunpack.c.l.s8.bf16 %v241
    %v362 = vunpack.c.l.s8.bf16 %v242
    %v363 = vunpack.c.l.s8.bf16 %v243
    %v364 = vunpack.c.h.s8.bf16 %v240
    %v365 = vunpack.c.h.s8.bf16 %v241
    %v366 = vunpack.c.h.s8.bf16 %v242
    %v367 = vunpack.c.h.s8.bf16 %v243
    %v368 = vunpack.c.l.s8.bf16 %v244
    %v369 = vunpack.c.l.s8.bf16 %v245
    %v370 = vunpack.c.l.s8.bf16 %v246
    %v371 = vunpack.c.l.s8.bf16 %v247
    %v372 = vunpack.c.h.s8.bf16 %v244
    %v373 = vunpack.c.h.s8.bf16 %v245
    %v374 = vunpack.c.h.s8.bf16 %v246
    %v375 = vunpack.c.h.s8.bf16 %v247
    %s376 = smul.u32 0, 512
    %s377 = sshra.s32 %s376, 3
    %s378 = sand.u32 %s376, 7
    %s379 = smul.addr %s377, 4
    %s380 = scalar_lea.vmem [#allocation6], %s379
    %v381 = vld [vmem:[%s380] sm:$0xf]
    %v382 = vld [vmem:[%s380 + $0x4] sm:$0xf]
    %v383 = vld [vmem:[%s380 + $0x8] sm:$0xf]
    %v384 = vld [vmem:[%s380 + $0xc] sm:$0xf]
    %v385 = vld [vmem:[%s380 + $0x10] sm:$0xf]
    %v386 = vld [vmem:[%s380 + $0x14] sm:$0xf]
    %v387 = vld [vmem:[%s380 + $0x18] sm:$0xf]
    %v388 = vld [vmem:[%s380 + $0x1c] sm:$0xf]
    %v389 = vld [vmem:[%s380 + $0x20] sm:$0xf]
    %v390 = vld [vmem:[%s380 + $0x24] sm:$0xf]
    %v391 = vld [vmem:[%s380 + $0x28] sm:$0xf]
    %v392 = vld [vmem:[%s380 + $0x2c] sm:$0xf]
    %v393 = vld [vmem:[%s380 + $0x30] sm:$0xf]
    %v394 = vld [vmem:[%s380 + $0x34] sm:$0xf]
    %v395 = vld [vmem:[%s380 + $0x38] sm:$0xf]
    %v396 = vld [vmem:[%s380 + $0x3c] sm:$0xf]
    %v397 = vld [vmem:[%s380 + $0x40] sm:$0xf]
    %v398 = vld [vmem:[%s380 + $0x44] sm:$0xf]
    %v399 = vld [vmem:[%s380 + $0x48] sm:$0xf]
    %v400 = vld [vmem:[%s380 + $0x4c] sm:$0xf]
    %v401 = vld [vmem:[%s380 + $0x50] sm:$0xf]
    %v402 = vld [vmem:[%s380 + $0x54] sm:$0xf]
    %v403 = vld [vmem:[%s380 + $0x58] sm:$0xf]
    %v404 = vld [vmem:[%s380 + $0x5c] sm:$0xf]
    %v405 = vld [vmem:[%s380 + $0x60] sm:$0xf]
    %v406 = vld [vmem:[%s380 + $0x64] sm:$0xf]
    %v407 = vld [vmem:[%s380 + $0x68] sm:$0xf]
    %v408 = vld [vmem:[%s380 + $0x6c] sm:$0xf]
    %v409 = vld [vmem:[%s380 + $0x70] sm:$0xf]
    %v410 = vld [vmem:[%s380 + $0x74] sm:$0xf]
    %v411 = vld [vmem:[%s380 + $0x78] sm:$0xf]
    %v412 = vld [vmem:[%s380 + $0x7c] sm:$0xf]
    %v413 = vld [vmem:[%s380 + $0x80] sm:$0xf]
    %v414 = vld [vmem:[%s380 + $0x84] sm:$0xf]
    %v415 = vld [vmem:[%s380 + $0x88] sm:$0xf]
    %v416 = vld [vmem:[%s380 + $0x8c] sm:$0xf]
    %v417 = vld [vmem:[%s380 + $0x90] sm:$0xf]
    %v418 = vld [vmem:[%s380 + $0x94] sm:$0xf]
    %v419 = vld [vmem:[%s380 + $0x98] sm:$0xf]
    %v420 = vld [vmem:[%s380 + $0x9c] sm:$0xf]
    %v421 = vld [vmem:[%s380 + $0xa0] sm:$0xf]
    %v422 = vld [vmem:[%s380 + $0xa4] sm:$0xf]
    %v423 = vld [vmem:[%s380 + $0xa8] sm:$0xf]
    %v424 = vld [vmem:[%s380 + $0xac] sm:$0xf]
    %v425 = vld [vmem:[%s380 + $0xb0] sm:$0xf]
    %v426 = vld [vmem:[%s380 + $0xb4] sm:$0xf]
    %v427 = vld [vmem:[%s380 + $0xb8] sm:$0xf]
    %v428 = vld [vmem:[%s380 + $0xbc] sm:$0xf]
    %v429 = vld [vmem:[%s380 + $0xc0] sm:$0xf]
    %v430 = vld [vmem:[%s380 + $0xc4] sm:$0xf]
    %v431 = vld [vmem:[%s380 + $0xc8] sm:$0xf]
    %v432 = vld [vmem:[%s380 + $0xcc] sm:$0xf]
    %v433 = vld [vmem:[%s380 + $0xd0] sm:$0xf]
    %v434 = vld [vmem:[%s380 + $0xd4] sm:$0xf]
    %v435 = vld [vmem:[%s380 + $0xd8] sm:$0xf]
    %v436 = vld [vmem:[%s380 + $0xdc] sm:$0xf]
    %v437 = vld [vmem:[%s380 + $0xe0] sm:$0xf]
    %v438 = vld [vmem:[%s380 + $0xe4] sm:$0xf]
    %v439 = vld [vmem:[%s380 + $0xe8] sm:$0xf]
    %v440 = vld [vmem:[%s380 + $0xec] sm:$0xf]
    %v441 = vld [vmem:[%s380 + $0xf0] sm:$0xf]
    %v442 = vld [vmem:[%s380 + $0xf4] sm:$0xf]
    %v443 = vld [vmem:[%s380 + $0xf8] sm:$0xf]
    %v444 = vld [vmem:[%s380 + $0xfc] sm:$0xf]
    %v445 = vld [vmem:[#allocation2] sm:$0xff]
    %v446 = vld [vmem:[#allocation2 + $0x8] sm:$0xff]
    %v447 = vld [vmem:[#allocation2 + $0x10] sm:$0xff]
    %v448 = vld [vmem:[#allocation2 + $0x18] sm:$0xff]
    %v449 = vld [vmem:[#allocation2 + $0x20] sm:$0xff]
    %v450 = vld [vmem:[#allocation2 + $0x28] sm:$0xff]
    %v451 = vld [vmem:[#allocation2 + $0x30] sm:$0xff]
    %v452 = vld [vmem:[#allocation2 + $0x38] sm:$0xff]
    %v453 = vld [vmem:[#allocation2 + $0x40] sm:$0xff]
    %v454 = vld [vmem:[#allocation2 + $0x48] sm:$0xff]
    %v455 = vld [vmem:[#allocation2 + $0x50] sm:$0xff]
    %v456 = vld [vmem:[#allocation2 + $0x58] sm:$0xff]
    %v457 = vld [vmem:[#allocation2 + $0x60] sm:$0xff]
    %v458 = vld [vmem:[#allocation2 + $0x68] sm:$0xff]
    %v459 = vld [vmem:[#allocation2 + $0x70] sm:$0xff]
    %v460 = vld [vmem:[#allocation2 + $0x78] sm:$0xff]
    %v461 = vld [vmem:[#allocation2 + $0x80] sm:$0xff]
    %v462 = vld [vmem:[#allocation2 + $0x88] sm:$0xff]
    %v463 = vld [vmem:[#allocation2 + $0x90] sm:$0xff]
    %v464 = vld [vmem:[#allocation2 + $0x98] sm:$0xff]
    %v465 = vld [vmem:[#allocation2 + $0xa0] sm:$0xff]
    %v466 = vld [vmem:[#allocation2 + $0xa8] sm:$0xff]
    %v467 = vld [vmem:[#allocation2 + $0xb0] sm:$0xff]
    %v468 = vld [vmem:[#allocation2 + $0xb8] sm:$0xff]
    %v469 = vld [vmem:[#allocation2 + $0xc0] sm:$0xff]
    %v470 = vld [vmem:[#allocation2 + $0xc8] sm:$0xff]
    %v471 = vld [vmem:[#allocation2 + $0xd0] sm:$0xff]
    %v472 = vld [vmem:[#allocation2 + $0xd8] sm:$0xff]
    %v473 = vld [vmem:[#allocation2 + $0xe0] sm:$0xff]
    %v474 = vld [vmem:[#allocation2 + $0xe8] sm:$0xff]
    %v475 = vld [vmem:[#allocation2 + $0xf0] sm:$0xff]
    %v476 = vld [vmem:[#allocation2 + $0xf8] sm:$0xff]
    %v477 = vld [vmem:[#allocation2 + $0x100] sm:$0xff]
    %v478 = vld [vmem:[#allocation2 + $0x108] sm:$0xff]
    %v479 = vld [vmem:[#allocation2 + $0x110] sm:$0xff]
    %v480 = vld [vmem:[#allocation2 + $0x118] sm:$0xff]
    %v481 = vld [vmem:[#allocation2 + $0x120] sm:$0xff]
    %v482 = vld [vmem:[#allocation2 + $0x128] sm:$0xff]
    %v483 = vld [vmem:[#allocation2 + $0x130] sm:$0xff]
    %v484 = vld [vmem:[#allocation2 + $0x138] sm:$0xff]
    %v485 = vld [vmem:[#allocation2 + $0x140] sm:$0xff]
    %v486 = vld [vmem:[#allocation2 + $0x148] sm:$0xff]
    %v487 = vld [vmem:[#allocation2 + $0x150] sm:$0xff]
    %v488 = vld [vmem:[#allocation2 + $0x158] sm:$0xff]
    %v489 = vld [vmem:[#allocation2 + $0x160] sm:$0xff]
    %v490 = vld [vmem:[#allocation2 + $0x168] sm:$0xff]
    %v491 = vld [vmem:[#allocation2 + $0x170] sm:$0xff]
    %v492 = vld [vmem:[#allocation2 + $0x178] sm:$0xff]
    %v493 = vld [vmem:[#allocation2 + $0x180] sm:$0xff]
    %v494 = vld [vmem:[#allocation2 + $0x188] sm:$0xff]
    %v495 = vld [vmem:[#allocation2 + $0x190] sm:$0xff]
    %v496 = vld [vmem:[#allocation2 + $0x198] sm:$0xff]
    %v497 = vld [vmem:[#allocation2 + $0x1a0] sm:$0xff]
    %v498 = vld [vmem:[#allocation2 + $0x1a8] sm:$0xff]
    %v499 = vld [vmem:[#allocation2 + $0x1b0] sm:$0xff]
    %v500 = vld [vmem:[#allocation2 + $0x1b8] sm:$0xff]
    %v501 = vld [vmem:[#allocation2 + $0x1c0] sm:$0xff]
    %v502 = vld [vmem:[#allocation2 + $0x1c8] sm:$0xff]
    %v503 = vld [vmem:[#allocation2 + $0x1d0] sm:$0xff]
    %v504 = vld [vmem:[#allocation2 + $0x1d8] sm:$0xff]
    %v505 = vld [vmem:[#allocation2 + $0x1e0] sm:$0xff]
    %v506 = vld [vmem:[#allocation2 + $0x1e8] sm:$0xff]
    %v507 = vld [vmem:[#allocation2 + $0x1f0] sm:$0xff]
    %v508 = vld [vmem:[#allocation2 + $0x1f8] sm:$0xff]
    %v573 = vunpack.c.l.b16 %v381
    %v574 = vunpack.c.l.b16 %v382
    %v575 = vunpack.c.l.b16 %v383
    %v576 = vunpack.c.l.b16 %v384
    %v577 = vunpack.c.l.b16 %v385
    %v578 = vunpack.c.l.b16 %v386
    %v579 = vunpack.c.l.b16 %v387
    %v580 = vunpack.c.l.b16 %v388
    %v581 = vunpack.c.l.b16 %v389
    %v582 = vunpack.c.l.b16 %v390
    %v583 = vunpack.c.l.b16 %v391
    %v584 = vunpack.c.l.b16 %v392
    %v585 = vunpack.c.l.b16 %v393
    %v586 = vunpack.c.l.b16 %v394
    %v587 = vunpack.c.l.b16 %v395
    %v588 = vunpack.c.l.b16 %v396
    %v589 = vunpack.c.l.b16 %v397
    %v590 = vunpack.c.l.b16 %v398
    %v591 = vunpack.c.l.b16 %v399
    %v592 = vunpack.c.l.b16 %v400
    %v593 = vunpack.c.l.b16 %v401
    %v594 = vunpack.c.l.b16 %v402
    %v595 = vunpack.c.l.b16 %v403
    %v596 = vunpack.c.l.b16 %v404
    %v597 = vunpack.c.l.b16 %v405
    %v598 = vunpack.c.l.b16 %v406
    %v599 = vunpack.c.l.b16 %v407
    %v600 = vunpack.c.l.b16 %v408
    %v601 = vunpack.c.l.b16 %v409
    %v602 = vunpack.c.l.b16 %v410
    %v603 = vunpack.c.l.b16 %v411
    %v604 = vunpack.c.l.b16 %v412
    %v605 = vunpack.c.l.b16 %v413
    %v606 = vunpack.c.l.b16 %v414
    %v607 = vunpack.c.l.b16 %v415
    %v608 = vunpack.c.l.b16 %v416
    %v609 = vunpack.c.l.b16 %v417
    %v610 = vunpack.c.l.b16 %v418
    %v611 = vunpack.c.l.b16 %v419
    %v612 = vunpack.c.l.b16 %v420
    %v613 = vunpack.c.l.b16 %v421
    %v614 = vunpack.c.l.b16 %v422
    %v615 = vunpack.c.l.b16 %v423
    %v616 = vunpack.c.l.b16 %v424
    %v617 = vunpack.c.l.b16 %v425
    %v618 = vunpack.c.l.b16 %v426
    %v619 = vunpack.c.l.b16 %v427
    %v620 = vunpack.c.l.b16 %v428
    %v621 = vunpack.c.l.b16 %v429
    %v622 = vunpack.c.l.b16 %v430
    %v623 = vunpack.c.l.b16 %v431
    %v624 = vunpack.c.l.b16 %v432
    %v625 = vunpack.c.l.b16 %v433
    %v626 = vunpack.c.l.b16 %v434
    %v627 = vunpack.c.l.b16 %v435
    %v628 = vunpack.c.l.b16 %v436
    %v629 = vunpack.c.l.b16 %v437
    %v630 = vunpack.c.l.b16 %v438
    %v631 = vunpack.c.l.b16 %v439
    %v632 = vunpack.c.l.b16 %v440
    %v633 = vunpack.c.l.b16 %v441
    %v634 = vunpack.c.l.b16 %v442
    %v635 = vunpack.c.l.b16 %v443
    %v636 = vunpack.c.l.b16 %v444
    %v637 = vpack.c.b16 %v574, %v573
    %v638 = vpack.c.b16 %v576, %v575
    %v639 = vpack.c.b16 %v578, %v577
    %v640 = vpack.c.b16 %v580, %v579
    %v641 = vpack.c.b16 %v582, %v581
    %v642 = vpack.c.b16 %v584, %v583
    %v643 = vpack.c.b16 %v586, %v585
    %v644 = vpack.c.b16 %v588, %v587
    %v645 = vpack.c.b16 %v590, %v589
    %v646 = vpack.c.b16 %v592, %v591
    %v647 = vpack.c.b16 %v594, %v593
    %v648 = vpack.c.b16 %v596, %v595
    %v649 = vpack.c.b16 %v598, %v597
    %v650 = vpack.c.b16 %v600, %v599
    %v651 = vpack.c.b16 %v602, %v601
    %v652 = vpack.c.b16 %v604, %v603
    %v653 = vpack.c.b16 %v606, %v605
    %v654 = vpack.c.b16 %v608, %v607
    %v655 = vpack.c.b16 %v610, %v609
    %v656 = vpack.c.b16 %v612, %v611
    %v657 = vpack.c.b16 %v614, %v613
    %v658 = vpack.c.b16 %v616, %v615
    %v659 = vpack.c.b16 %v618, %v617
    %v660 = vpack.c.b16 %v620, %v619
    %v661 = vpack.c.b16 %v622, %v621
    %v662 = vpack.c.b16 %v624, %v623
    %v663 = vpack.c.b16 %v626, %v625
    %v664 = vpack.c.b16 %v628, %v627
    %v665 = vpack.c.b16 %v630, %v629
    %v666 = vpack.c.b16 %v632, %v631
    %v667 = vpack.c.b16 %v634, %v633
    %v668 = vpack.c.b16 %v636, %v635
    %701 = vmatprep.subr.bf16.mxu0 0
    %702 = vmatpush1.bf16.msra.mxu0 %v644
    %703 = vmatprep.subr.bf16.mxu0 0
    %704 = vmatpush1.bf16.msra.mxu0 %v643
    %705 = vmatprep.subr.bf16.mxu0 0
    %706 = vmatpush1.bf16.msra.mxu0 %v642
    %707 = vmatprep.subr.bf16.mxu0 0
    %708 = vmatpush1.bf16.msra.mxu0 %v641
    %709 = vmatprep.subr.bf16.mxu0 0
    %710 = vmatpush1.bf16.msra.mxu0 %v640
    %711 = vmatprep.subr.bf16.mxu0 0
    %712 = vmatpush1.bf16.msra.mxu0 %v639
    %713 = vmatprep.subr.bf16.mxu0 0
    %714 = vmatpush1.bf16.msra.mxu0 %v638
    %715 = vmatprep.subr.bf16.mxu0 0
    %716 = vmatpush1.bf16.msra.mxu0 %v637
    %717 = vmatprep.subr.bf16.mxu0 0
    %718 = vmatpush2.bf16.msra.mxu0 %v652
    %719 = vmatprep.subr.bf16.mxu0 0
    %720 = vmatpush2.bf16.msra.mxu0 %v651
    %721 = vmatprep.subr.bf16.mxu0 0
    %722 = vmatpush2.bf16.msra.mxu0 %v650
    %723 = vmatprep.subr.bf16.mxu0 0
    %724 = vmatpush2.bf16.msra.mxu0 %v649
    %725 = vmatprep.subr.bf16.mxu0 0
    %726 = vmatpush2.bf16.msra.mxu0 %v648
    %727 = vmatprep.subr.bf16.mxu0 0
    %728 = vmatpush2.bf16.msra.mxu0 %v647
    %729 = vmatprep.subr.bf16.mxu0 0
    %730 = vmatpush2.bf16.msra.mxu0 %v646
    %731 = vmatprep.subr.bf16.mxu0 0
    %732 = vmatpush2.bf16.msra.mxu0 %v645
    %733 = vmatprep.mubr.bf16.mxu0 %v249
    %734 = vmatmul.mubr.bf16.gmra.mxu0 %v248
    %v735 = vpop.f32.mrf.mxu0
    %v736 = vadd.f32 0.0, %v735
    %v737 = vpop.f32.mrf.mxu0
    %v738 = vpop.f32.mrf.mxu0
    %v739 = vadd.f32 0.0, %v738
    %v740 = vpop.f32.mrf.mxu0
    %741 = vmatprep.mubr.bf16.mxu0 %v253
    %742 = vmatmul.mubr.bf16.gmra.mxu0 %v252
    %v743 = vpop.f32.mrf.mxu0
    %v744 = vadd.f32 0.0, %v743
    %v745 = vpop.f32.mrf.mxu0
    %v746 = vpop.f32.mrf.mxu0
    %v747 = vadd.f32 0.0, %v746
    %v748 = vpop.f32.mrf.mxu0
    %749 = vmatprep.mubr.bf16.mxu0 %v257
    %750 = vmatmul.mubr.bf16.gmra.mxu0 %v256
    %v751 = vpop.f32.mrf.mxu0
    %v752 = vadd.f32 0.0, %v751
    %v753 = vpop.f32.mrf.mxu0
    %v754 = vpop.f32.mrf.mxu0
    %v755 = vadd.f32 0.0, %v754
    %v756 = vpop.f32.mrf.mxu0
    %757 = vmatprep.mubr.bf16.mxu0 %v261
    %758 = vmatmul.mubr.bf16.gmra.mxu0 %v260
    %v759 = vpop.f32.mrf.mxu0
    %v760 = vadd.f32 0.0, %v759
    %v761 = vpop.f32.mrf.mxu0
    %v762 = vpop.f32.mrf.mxu0
    %v763 = vadd.f32 0.0, %v762
    %v764 = vpop.f32.mrf.mxu0
    %765 = vmatprep.mubr.bf16.mxu0 %v265
    %766 = vmatmul.mubr.bf16.gmra.mxu0 %v264
    %v767 = vpop.f32.mrf.mxu0
    %v768 = vadd.f32 0.0, %v767
    %v769 = vpop.f32.mrf.mxu0
    %v770 = vpop.f32.mrf.mxu0
    %v771 = vadd.f32 0.0, %v770
    %v772 = vpop.f32.mrf.mxu0
    %773 = vmatprep.mubr.bf16.mxu0 %v269
    %774 = vmatmul.mubr.bf16.gmra.mxu0 %v268
    %v775 = vpop.f32.mrf.mxu0
    %v776 = vadd.f32 0.0, %v775
    %v777 = vpop.f32.mrf.mxu0
    %v778 = vpop.f32.mrf.mxu0
    %v779 = vadd.f32 0.0, %v778
    %v780 = vpop.f32.mrf.mxu0
    %781 = vmatprep.mubr.bf16.mxu0 %v273
    %782 = vmatmul.mubr.bf16.gmra.mxu0 %v272
    %v783 = vpop.f32.mrf.mxu0
    %v784 = vadd.f32 0.0, %v783
    %v785 = vpop.f32.mrf.mxu0
    %v786 = vpop.f32.mrf.mxu0
    %v787 = vadd.f32 0.0, %v786
    %v788 = vpop.f32.mrf.mxu0
    %789 = vmatprep.mubr.bf16.mxu0 %v277
    %790 = vmatmul.mubr.bf16.gmra.mxu0 %v276
    %v791 = vpop.f32.mrf.mxu0
    %v792 = vadd.f32 0.0, %v791
    %v793 = vpop.f32.mrf.mxu0
    %v794 = vpop.f32.mrf.mxu0
    %v795 = vadd.f32 0.0, %v794
    %v796 = vpop.f32.mrf.mxu0
    %797 = vmatprep.mubr.bf16.mxu0 %v281
    %798 = vmatmul.mubr.bf16.gmra.mxu0 %v280
    %v799 = vpop.f32.mrf.mxu0
    %v800 = vadd.f32 0.0, %v799
    %v801 = vpop.f32.mrf.mxu0
    %v802 = vpop.f32.mrf.mxu0
    %v803 = vadd.f32 0.0, %v802
    %v804 = vpop.f32.mrf.mxu0
    %805 = vmatprep.mubr.bf16.mxu0 %v285
    %806 = vmatmul.mubr.bf16.gmra.mxu0 %v284
    %v807 = vpop.f32.mrf.mxu0
    %v808 = vadd.f32 0.0, %v807
    %v809 = vpop.f32.mrf.mxu0
    %v810 = vpop.f32.mrf.mxu0
    %v811 = vadd.f32 0.0, %v810
    %v812 = vpop.f32.mrf.mxu0
    %813 = vmatprep.mubr.bf16.mxu0 %v289
    %814 = vmatmul.mubr.bf16.gmra.mxu0 %v288
    %v815 = vpop.f32.mrf.mxu0
    %v816 = vadd.f32 0.0, %v815
    %v817 = vpop.f32.mrf.mxu0
    %v818 = vpop.f32.mrf.mxu0
    %v819 = vadd.f32 0.0, %v818
    %v820 = vpop.f32.mrf.mxu0
    %821 = vmatprep.mubr.bf16.mxu0 %v293
    %822 = vmatmul.mubr.bf16.gmra.mxu0 %v292
    %v823 = vpop.f32.mrf.mxu0
    %v824 = vadd.f32 0.0, %v823
    %v825 = vpop.f32.mrf.mxu0
    %v826 = vpop.f32.mrf.mxu0
    %v827 = vadd.f32 0.0, %v826
    %v828 = vpop.f32.mrf.mxu0
    %829 = vmatprep.mubr.bf16.mxu0 %v297
    %830 = vmatmul.mubr.bf16.gmra.mxu0 %v296
    %v831 = vpop.f32.mrf.mxu0
    %v832 = vadd.f32 0.0, %v831
    %v833 = vpop.f32.mrf.mxu0
    %v834 = vpop.f32.mrf.mxu0
    %v835 = vadd.f32 0.0, %v834
    %v836 = vpop.f32.mrf.mxu0
    %837 = vmatprep.mubr.bf16.mxu0 %v301
    %838 = vmatmul.mubr.bf16.gmra.mxu0 %v300
    %v839 = vpop.f32.mrf.mxu0
    %v840 = vadd.f32 0.0, %v839
    %v841 = vpop.f32.mrf.mxu0
    %v842 = vpop.f32.mrf.mxu0
    %v843 = vadd.f32 0.0, %v842
    %v844 = vpop.f32.mrf.mxu0
    %845 = vmatprep.mubr.bf16.mxu0 %v305
    %846 = vmatmul.mubr.bf16.gmra.mxu0 %v304
    %v847 = vpop.f32.mrf.mxu0
    %v848 = vadd.f32 0.0, %v847
    %v849 = vpop.f32.mrf.mxu0
    %v850 = vpop.f32.mrf.mxu0
    %v851 = vadd.f32 0.0, %v850
    %v852 = vpop.f32.mrf.mxu0
    %853 = vmatprep.mubr.bf16.mxu0 %v309
    %854 = vmatmul.mubr.bf16.gmra.mxu0 %v308
    %v855 = vpop.f32.mrf.mxu0
    %v856 = vadd.f32 0.0, %v855
    %v857 = vpop.f32.mrf.mxu0
    %v858 = vpop.f32.mrf.mxu0
    %v859 = vadd.f32 0.0, %v858
    %v860 = vpop.f32.mrf.mxu0
    %861 = vmatprep.mubr.bf16.mxu0 %v313
    %862 = vmatmul.mubr.bf16.gmra.mxu0 %v312
    %v863 = vpop.f32.mrf.mxu0
    %v864 = vadd.f32 0.0, %v863
    %v865 = vpop.f32.mrf.mxu0
    %v866 = vpop.f32.mrf.mxu0
    %v867 = vadd.f32 0.0, %v866
    %v868 = vpop.f32.mrf.mxu0
    %869 = vmatprep.mubr.bf16.mxu0 %v317
    %870 = vmatmul.mubr.bf16.gmra.mxu0 %v316
    %v871 = vpop.f32.mrf.mxu0
    %v872 = vadd.f32 0.0, %v871
    %v873 = vpop.f32.mrf.mxu0
    %v874 = vpop.f32.mrf.mxu0
    %v875 = vadd.f32 0.0, %v874
    %v876 = vpop.f32.mrf.mxu0
    %877 = vmatprep.mubr.bf16.mxu0 %v321
    %878 = vmatmul.mubr.bf16.gmra.mxu0 %v320
    %v879 = vpop.f32.mrf.mxu0
    %v880 = vadd.f32 0.0, %v879
    %v881 = vpop.f32.mrf.mxu0
    %v882 = vpop.f32.mrf.mxu0
    %v883 = vadd.f32 0.0, %v882
    %v884 = vpop.f32.mrf.mxu0
    %885 = vmatprep.mubr.bf16.mxu0 %v325
    %886 = vmatmul.mubr.bf16.gmra.mxu0 %v324
    %v887 = vpop.f32.mrf.mxu0
    %v888 = vadd.f32 0.0, %v887
    %v889 = vpop.f32.mrf.mxu0
    %v890 = vpop.f32.mrf.mxu0
    %v891 = vadd.f32 0.0, %v890
    %v892 = vpop.f32.mrf.mxu0
    %893 = vmatprep.mubr.bf16.mxu0 %v329
    %894 = vmatmul.mubr.bf16.gmra.mxu0 %v328
    %v895 = vpop.f32.mrf.mxu0
    %v896 = vadd.f32 0.0, %v895
    %v897 = vpop.f32.mrf.mxu0
    %v898 = vpop.f32.mrf.mxu0
    %v899 = vadd.f32 0.0, %v898
    %v900 = vpop.f32.mrf.mxu0
    %901 = vmatprep.mubr.bf16.mxu0 %v333
    %902 = vmatmul.mubr.bf16.gmra.mxu0 %v332
    %v903 = vpop.f32.mrf.mxu0
    %v904 = vadd.f32 0.0, %v903
    %v905 = vpop.f32.mrf.mxu0
    %v906 = vpop.f32.mrf.mxu0
    %v907 = vadd.f32 0.0, %v906
    %v908 = vpop.f32.mrf.mxu0
    %909 = vmatprep.mubr.bf16.mxu0 %v337
    %910 = vmatmul.mubr.bf16.gmra.mxu0 %v336
    %v911 = vpop.f32.mrf.mxu0
    %v912 = vadd.f32 0.0, %v911
    %v913 = vpop.f32.mrf.mxu0
    %v914 = vpop.f32.mrf.mxu0
    %v915 = vadd.f32 0.0, %v914
    %v916 = vpop.f32.mrf.mxu0
    %917 = vmatprep.mubr.bf16.mxu0 %v341
    %918 = vmatmul.mubr.bf16.gmra.mxu0 %v340
    %v919 = vpop.f32.mrf.mxu0
    %v920 = vadd.f32 0.0, %v919
    %v921 = vpop.f32.mrf.mxu0
    %v922 = vpop.f32.mrf.mxu0
    %v923 = vadd.f32 0.0, %v922
    %v924 = vpop.f32.mrf.mxu0
    %925 = vmatprep.mubr.bf16.mxu0 %v345
    %926 = vmatmul.mubr.bf16.gmra.mxu0 %v344
    %v927 = vpop.f32.mrf.mxu0
    %v928 = vadd.f32 0.0, %v927
    %v929 = vpop.f32.mrf.mxu0
    %v930 = vpop.f32.mrf.mxu0
    %v931 = vadd.f32 0.0, %v930
    %v932 = vpop.f32.mrf.mxu0
    %933 = vmatprep.mubr.bf16.mxu0 %v349
    %934 = vmatmul.mubr.bf16.gmra.mxu0 %v348
    %v935 = vpop.f32.mrf.mxu0
    %v936 = vadd.f32 0.0, %v935
    %v937 = vpop.f32.mrf.mxu0
    %v938 = vpop.f32.mrf.mxu0
    %v939 = vadd.f32 0.0, %v938
    %v940 = vpop.f32.mrf.mxu0
    %941 = vmatprep.mubr.bf16.mxu0 %v353
    %942 = vmatmul.mubr.bf16.gmra.mxu0 %v352
    %v943 = vpop.f32.mrf.mxu0
    %v944 = vadd.f32 0.0, %v943
    %v945 = vpop.f32.mrf.mxu0
    %v946 = vpop.f32.mrf.mxu0
    %v947 = vadd.f32 0.0, %v946
    %v948 = vpop.f32.mrf.mxu0
    %949 = vmatprep.mubr.bf16.mxu0 %v357
    %950 = vmatmul.mubr.bf16.gmra.mxu0 %v356
    %v951 = vpop.f32.mrf.mxu0
    %v952 = vadd.f32 0.0, %v951
    %v953 = vpop.f32.mrf.mxu0
    %v954 = vpop.f32.mrf.mxu0
    %v955 = vadd.f32 0.0, %v954
    %v956 = vpop.f32.mrf.mxu0
    %957 = vmatprep.mubr.bf16.mxu0 %v361
    %958 = vmatmul.mubr.bf16.gmra.mxu0 %v360
    %v959 = vpop.f32.mrf.mxu0
    %v960 = vadd.f32 0.0, %v959
    %v961 = vpop.f32.mrf.mxu0
    %v962 = vpop.f32.mrf.mxu0
    %v963 = vadd.f32 0.0, %v962
    %v964 = vpop.f32.mrf.mxu0
    %965 = vmatprep.mubr.bf16.mxu0 %v365
    %966 = vmatmul.mubr.bf16.gmra.mxu0 %v364
    %v967 = vpop.f32.mrf.mxu0
    %v968 = vadd.f32 0.0, %v967
    %v969 = vpop.f32.mrf.mxu0
    %v970 = vpop.f32.mrf.mxu0
    %v971 = vadd.f32 0.0, %v970
    %v972 = vpop.f32.mrf.mxu0
    %973 = vmatprep.mubr.bf16.mxu0 %v369
    %974 = vmatmul.mubr.bf16.gmra.mxu0 %v368
    %v975 = vpop.f32.mrf.mxu0
    %v976 = vadd.f32 0.0, %v975
    %v977 = vpop.f32.mrf.mxu0
    %v978 = vpop.f32.mrf.mxu0
    %v979 = vadd.f32 0.0, %v978
    %v980 = vpop.f32.mrf.mxu0
    %981 = vmatprep.mubr.bf16.mxu0 %v373
    %982 = vmatmul.mubr.bf16.gmra.mxu0 %v372
    %v983 = vpop.f32.mrf.mxu0
    %v984 = vadd.f32 0.0, %v983
    %v985 = vpop.f32.mrf.mxu0
    %v986 = vpop.f32.mrf.mxu0
    %v987 = vadd.f32 0.0, %v986
    %v988 = vpop.f32.mrf.mxu0
    %989 = vdwg.mxu0
    %990 = vmatprep.subr.bf16.mxu0 0
    %991 = vmatpush1.bf16.msra.mxu0 %v660
    %992 = vmatprep.subr.bf16.mxu0 0
    %993 = vmatpush1.bf16.msra.mxu0 %v659
    %994 = vmatprep.subr.bf16.mxu0 0
    %995 = vmatpush1.bf16.msra.mxu0 %v658
    %996 = vmatprep.subr.bf16.mxu0 0
    %997 = vmatpush1.bf16.msra.mxu0 %v657
    %998 = vmatprep.subr.bf16.mxu0 0
    %999 = vmatpush1.bf16.msra.mxu0 %v656
    %1000 = vmatprep.subr.bf16.mxu0 0
    %1001 = vmatpush1.bf16.msra.mxu0 %v655
    %1002 = vmatprep.subr.bf16.mxu0 0
    %1003 = vmatpush1.bf16.msra.mxu0 %v654
    %1004 = vmatprep.subr.bf16.mxu0 0
    %1005 = vmatpush1.bf16.msra.mxu0 %v653
    %1006 = vmatprep.subr.bf16.mxu0 0
    %1007 = vmatpush2.bf16.msra.mxu0 %v668
    %1008 = vmatprep.subr.bf16.mxu0 0
    %1009 = vmatpush2.bf16.msra.mxu0 %v667
    %1010 = vmatprep.subr.bf16.mxu0 0
    %1011 = vmatpush2.bf16.msra.mxu0 %v666
    %1012 = vmatprep.subr.bf16.mxu0 0
    %1013 = vmatpush2.bf16.msra.mxu0 %v665
    %1014 = vmatprep.subr.bf16.mxu0 0
    %1015 = vmatpush2.bf16.msra.mxu0 %v664
    %1016 = vmatprep.subr.bf16.mxu0 0
    %1017 = vmatpush2.bf16.msra.mxu0 %v663
    %1018 = vmatprep.subr.bf16.mxu0 0
    %1019 = vmatpush2.bf16.msra.mxu0 %v662
    %1020 = vmatprep.subr.bf16.mxu0 0
    %1021 = vmatpush2.bf16.msra.mxu0 %v661
    %1022 = vmatprep.mubr.bf16.mxu0 %v251
    %1023 = vmatmul.mubr.bf16.gmra.mxu0 %v250
    %v1024 = vpop.f32.mrf.mxu0
    %v1025 = vadd.f32 %v736, %v1024
    %v1026 = vpop.f32.mrf.mxu0
    %v1027 = vpop.f32.mrf.mxu0
    %v1028 = vadd.f32 %v739, %v1027
    %v1029 = vpop.f32.mrf.mxu0
    %1030 = vmatprep.mubr.bf16.mxu0 %v255
    %1031 = vmatmul.mubr.bf16.gmra.mxu0 %v254
    %v1032 = vpop.f32.mrf.mxu0
    %v1033 = vadd.f32 %v744, %v1032
    %v1034 = vpop.f32.mrf.mxu0
    %v1035 = vpop.f32.mrf.mxu0
    %v1036 = vadd.f32 %v747, %v1035
    %v1037 = vpop.f32.mrf.mxu0
    %1038 = vmatprep.mubr.bf16.mxu0 %v259
    %1039 = vmatmul.mubr.bf16.gmra.mxu0 %v258
    %v1040 = vpop.f32.mrf.mxu0
    %v1041 = vadd.f32 %v752, %v1040
    %v1042 = vpop.f32.mrf.mxu0
    %v1043 = vpop.f32.mrf.mxu0
    %v1044 = vadd.f32 %v755, %v1043
    %v1045 = vpop.f32.mrf.mxu0
    %1046 = vmatprep.mubr.bf16.mxu0 %v263
    %1047 = vmatmul.mubr.bf16.gmra.mxu0 %v262
    %v1048 = vpop.f32.mrf.mxu0
    %v1049 = vadd.f32 %v760, %v1048
    %v1050 = vpop.f32.mrf.mxu0
    %v1051 = vpop.f32.mrf.mxu0
    %v1052 = vadd.f32 %v763, %v1051
    %v1053 = vpop.f32.mrf.mxu0
    %1054 = vmatprep.mubr.bf16.mxu0 %v267
    %1055 = vmatmul.mubr.bf16.gmra.mxu0 %v266
    %v1056 = vpop.f32.mrf.mxu0
    %v1057 = vadd.f32 %v768, %v1056
    %v1058 = vpop.f32.mrf.mxu0
    %v1059 = vpop.f32.mrf.mxu0
    %v1060 = vadd.f32 %v771, %v1059
    %v1061 = vpop.f32.mrf.mxu0
    %1062 = vmatprep.mubr.bf16.mxu0 %v271
    %1063 = vmatmul.mubr.bf16.gmra.mxu0 %v270
    %v1064 = vpop.f32.mrf.mxu0
    %v1065 = vadd.f32 %v776, %v1064
    %v1066 = vpop.f32.mrf.mxu0
    %v1067 = vpop.f32.mrf.mxu0
    %v1068 = vadd.f32 %v779, %v1067
    %v1069 = vpop.f32.mrf.mxu0
    %1070 = vmatprep.mubr.bf16.mxu0 %v275
    %1071 = vmatmul.mubr.bf16.gmra.mxu0 %v274
    %v1072 = vpop.f32.mrf.mxu0
    %v1073 = vadd.f32 %v784, %v1072
    %v1074 = vpop.f32.mrf.mxu0
    %v1075 = vpop.f32.mrf.mxu0
    %v1076 = vadd.f32 %v787, %v1075
    %v1077 = vpop.f32.mrf.mxu0
    %1078 = vmatprep.mubr.bf16.mxu0 %v279
    %1079 = vmatmul.mubr.bf16.gmra.mxu0 %v278
    %v1080 = vpop.f32.mrf.mxu0
    %v1081 = vadd.f32 %v792, %v1080
    %v1082 = vpop.f32.mrf.mxu0
    %v1083 = vpop.f32.mrf.mxu0
    %v1084 = vadd.f32 %v795, %v1083
    %v1085 = vpop.f32.mrf.mxu0
    %1086 = vmatprep.mubr.bf16.mxu0 %v283
    %1087 = vmatmul.mubr.bf16.gmra.mxu0 %v282
    %v1088 = vpop.f32.mrf.mxu0
    %v1089 = vadd.f32 %v800, %v1088
    %v1090 = vpop.f32.mrf.mxu0
    %v1091 = vpop.f32.mrf.mxu0
    %v1092 = vadd.f32 %v803, %v1091
    %v1093 = vpop.f32.mrf.mxu0
    %1094 = vmatprep.mubr.bf16.mxu0 %v287
    %1095 = vmatmul.mubr.bf16.gmra.mxu0 %v286
    %v1096 = vpop.f32.mrf.mxu0
    %v1097 = vadd.f32 %v808, %v1096
    %v1098 = vpop.f32.mrf.mxu0
    %v1099 = vpop.f32.mrf.mxu0
    %v1100 = vadd.f32 %v811, %v1099
    %v1101 = vpop.f32.mrf.mxu0
    %1102 = vmatprep.mubr.bf16.mxu0 %v291
    %1103 = vmatmul.mubr.bf16.gmra.mxu0 %v290
    %v1104 = vpop.f32.mrf.mxu0
    %v1105 = vadd.f32 %v816, %v1104
    %v1106 = vpop.f32.mrf.mxu0
    %v1107 = vpop.f32.mrf.mxu0
    %v1108 = vadd.f32 %v819, %v1107
    %v1109 = vpop.f32.mrf.mxu0
    %1110 = vmatprep.mubr.bf16.mxu0 %v295
    %1111 = vmatmul.mubr.bf16.gmra.mxu0 %v294
    %v1112 = vpop.f32.mrf.mxu0
    %v1113 = vadd.f32 %v824, %v1112
    %v1114 = vpop.f32.mrf.mxu0
    %v1115 = vpop.f32.mrf.mxu0
    %v1116 = vadd.f32 %v827, %v1115
    %v1117 = vpop.f32.mrf.mxu0
    %1118 = vmatprep.mubr.bf16.mxu0 %v299
    %1119 = vmatmul.mubr.bf16.gmra.mxu0 %v298
    %v1120 = vpop.f32.mrf.mxu0
    %v1121 = vadd.f32 %v832, %v1120
    %v1122 = vpop.f32.mrf.mxu0
    %v1123 = vpop.f32.mrf.mxu0
    %v1124 = vadd.f32 %v835, %v1123
    %v1125 = vpop.f32.mrf.mxu0
    %1126 = vmatprep.mubr.bf16.mxu0 %v303
    %1127 = vmatmul.mubr.bf16.gmra.mxu0 %v302
    %v1128 = vpop.f32.mrf.mxu0
    %v1129 = vadd.f32 %v840, %v1128
    %v1130 = vpop.f32.mrf.mxu0
    %v1131 = vpop.f32.mrf.mxu0
    %v1132 = vadd.f32 %v843, %v1131
    %v1133 = vpop.f32.mrf.mxu0
    %1134 = vmatprep.mubr.bf16.mxu0 %v307
    %1135 = vmatmul.mubr.bf16.gmra.mxu0 %v306
    %v1136 = vpop.f32.mrf.mxu0
    %v1137 = vadd.f32 %v848, %v1136
    %v1138 = vpop.f32.mrf.mxu0
    %v1139 = vpop.f32.mrf.mxu0
    %v1140 = vadd.f32 %v851, %v1139
    %v1141 = vpop.f32.mrf.mxu0
    %1142 = vmatprep.mubr.bf16.mxu0 %v311
    %1143 = vmatmul.mubr.bf16.gmra.mxu0 %v310
    %v1144 = vpop.f32.mrf.mxu0
    %v1145 = vadd.f32 %v856, %v1144
    %v1146 = vpop.f32.mrf.mxu0
    %v1147 = vpop.f32.mrf.mxu0
    %v1148 = vadd.f32 %v859, %v1147
    %v1149 = vpop.f32.mrf.mxu0
    %1150 = vmatprep.mubr.bf16.mxu0 %v315
    %1151 = vmatmul.mubr.bf16.gmra.mxu0 %v314
    %v1152 = vpop.f32.mrf.mxu0
    %v1153 = vadd.f32 %v864, %v1152
    %v1154 = vpop.f32.mrf.mxu0
    %v1155 = vpop.f32.mrf.mxu0
    %v1156 = vadd.f32 %v867, %v1155
    %v1157 = vpop.f32.mrf.mxu0
    %1158 = vmatprep.mubr.bf16.mxu0 %v319
    %1159 = vmatmul.mubr.bf16.gmra.mxu0 %v318
    %v1160 = vpop.f32.mrf.mxu0
    %v1161 = vadd.f32 %v872, %v1160
    %v1162 = vpop.f32.mrf.mxu0
    %v1163 = vpop.f32.mrf.mxu0
    %v1164 = vadd.f32 %v875, %v1163
    %v1165 = vpop.f32.mrf.mxu0
    %1166 = vmatprep.mubr.bf16.mxu0 %v323
    %1167 = vmatmul.mubr.bf16.gmra.mxu0 %v322
    %v1168 = vpop.f32.mrf.mxu0
    %v1169 = vadd.f32 %v880, %v1168
    %v1170 = vpop.f32.mrf.mxu0
    %v1171 = vpop.f32.mrf.mxu0
    %v1172 = vadd.f32 %v883, %v1171
    %v1173 = vpop.f32.mrf.mxu0
    %1174 = vmatprep.mubr.bf16.mxu0 %v327
    %1175 = vmatmul.mubr.bf16.gmra.mxu0 %v326
    %v1176 = vpop.f32.mrf.mxu0
    %v1177 = vadd.f32 %v888, %v1176
    %v1178 = vpop.f32.mrf.mxu0
    %v1179 = vpop.f32.mrf.mxu0
    %v1180 = vadd.f32 %v891, %v1179
    %v1181 = vpop.f32.mrf.mxu0
    %1182 = vmatprep.mubr.bf16.mxu0 %v331
    %1183 = vmatmul.mubr.bf16.gmra.mxu0 %v330
    %v1184 = vpop.f32.mrf.mxu0
    %v1185 = vadd.f32 %v896, %v1184
    %v1186 = vpop.f32.mrf.mxu0
    %v1187 = vpop.f32.mrf.mxu0
    %v1188 = vadd.f32 %v899, %v1187
    %v1189 = vpop.f32.mrf.mxu0
    %1190 = vmatprep.mubr.bf16.mxu0 %v335
    %1191 = vmatmul.mubr.bf16.gmra.mxu0 %v334
    %v1192 = vpop.f32.mrf.mxu0
    %v1193 = vadd.f32 %v904, %v1192
    %v1194 = vpop.f32.mrf.mxu0
    %v1195 = vpop.f32.mrf.mxu0
    %v1196 = vadd.f32 %v907, %v1195
    %v1197 = vpop.f32.mrf.mxu0
    %1198 = vmatprep.mubr.bf16.mxu0 %v339
    %1199 = vmatmul.mubr.bf16.gmra.mxu0 %v338
    %v1200 = vpop.f32.mrf.mxu0
    %v1201 = vadd.f32 %v912, %v1200
    %v1202 = vpop.f32.mrf.mxu0
    %v1203 = vpop.f32.mrf.mxu0
    %v1204 = vadd.f32 %v915, %v1203
    %v1205 = vpop.f32.mrf.mxu0
    %1206 = vmatprep.mubr.bf16.mxu0 %v343
    %1207 = vmatmul.mubr.bf16.gmra.mxu0 %v342
    %v1208 = vpop.f32.mrf.mxu0
    %v1209 = vadd.f32 %v920, %v1208
    %v1210 = vpop.f32.mrf.mxu0
    %v1211 = vpop.f32.mrf.mxu0
    %v1212 = vadd.f32 %v923, %v1211
    %v1213 = vpop.f32.mrf.mxu0
    %1214 = vmatprep.mubr.bf16.mxu0 %v347
    %1215 = vmatmul.mubr.bf16.gmra.mxu0 %v346
    %v1216 = vpop.f32.mrf.mxu0
    %v1217 = vadd.f32 %v928, %v1216
    %v1218 = vpop.f32.mrf.mxu0
    %v1219 = vpop.f32.mrf.mxu0
    %v1220 = vadd.f32 %v931, %v1219
    %v1221 = vpop.f32.mrf.mxu0
    %1222 = vmatprep.mubr.bf16.mxu0 %v351
    %1223 = vmatmul.mubr.bf16.gmra.mxu0 %v350
    %v1224 = vpop.f32.mrf.mxu0
    %v1225 = vadd.f32 %v936, %v1224
    %v1226 = vpop.f32.mrf.mxu0
    %v1227 = vpop.f32.mrf.mxu0
    %v1228 = vadd.f32 %v939, %v1227
    %v1229 = vpop.f32.mrf.mxu0
    %1230 = vmatprep.mubr.bf16.mxu0 %v355
    %1231 = vmatmul.mubr.bf16.gmra.mxu0 %v354
    %v1232 = vpop.f32.mrf.mxu0
    %v1233 = vadd.f32 %v944, %v1232
    %v1234 = vpop.f32.mrf.mxu0
    %v1235 = vpop.f32.mrf.mxu0
    %v1236 = vadd.f32 %v947, %v1235
    %v1237 = vpop.f32.mrf.mxu0
    %1238 = vmatprep.mubr.bf16.mxu0 %v359
    %1239 = vmatmul.mubr.bf16.gmra.mxu0 %v358
    %v1240 = vpop.f32.mrf.mxu0
    %v1241 = vadd.f32 %v952, %v1240
    %v1242 = vpop.f32.mrf.mxu0
    %v1243 = vpop.f32.mrf.mxu0
    %v1244 = vadd.f32 %v955, %v1243
    %v1245 = vpop.f32.mrf.mxu0
    %1246 = vmatprep.mubr.bf16.mxu0 %v363
    %1247 = vmatmul.mubr.bf16.gmra.mxu0 %v362
    %v1248 = vpop.f32.mrf.mxu0
    %v1249 = vadd.f32 %v960, %v1248
    %v1250 = vpop.f32.mrf.mxu0
    %v1251 = vpop.f32.mrf.mxu0
    %v1252 = vadd.f32 %v963, %v1251
    %v1253 = vpop.f32.mrf.mxu0
    %1254 = vmatprep.mubr.bf16.mxu0 %v367
    %1255 = vmatmul.mubr.bf16.gmra.mxu0 %v366
    %v1256 = vpop.f32.mrf.mxu0
    %v1257 = vadd.f32 %v968, %v1256
    %v1258 = vpop.f32.mrf.mxu0
    %v1259 = vpop.f32.mrf.mxu0
    %v1260 = vadd.f32 %v971, %v1259
    %v1261 = vpop.f32.mrf.mxu0
    %1262 = vmatprep.mubr.bf16.mxu0 %v371
    %1263 = vmatmul.mubr.bf16.gmra.mxu0 %v370
    %v1264 = vpop.f32.mrf.mxu0
    %v1265 = vadd.f32 %v976, %v1264
    %v1266 = vpop.f32.mrf.mxu0
    %v1267 = vpop.f32.mrf.mxu0
    %v1268 = vadd.f32 %v979, %v1267
    %v1269 = vpop.f32.mrf.mxu0
    %1270 = vmatprep.mubr.bf16.mxu0 %v375
    %1271 = vmatmul.mubr.bf16.gmra.mxu0 %v374
    %v1272 = vpop.f32.mrf.mxu0
    %v1273 = vadd.f32 %v984, %v1272
    %v1274 = vpop.f32.mrf.mxu0
    %v1275 = vpop.f32.mrf.mxu0
    %v1276 = vadd.f32 %v987, %v1275
    %v1277 = vpop.f32.mrf.mxu0
    %1278 = vdwg.mxu0
    %v1279 = vadd.f32 %v445, %v1025
    %v1280 = vadd.f32 %v446, %v1028
    %v1281 = vadd.f32 %v447, %v1033
    %v1282 = vadd.f32 %v448, %v1036
    %v1283 = vadd.f32 %v449, %v1041
    %v1284 = vadd.f32 %v450, %v1044
    %v1285 = vadd.f32 %v451, %v1049
    %v1286 = vadd.f32 %v452, %v1052
    %v1287 = vadd.f32 %v453, %v1057
    %v1288 = vadd.f32 %v454, %v1060
    %v1289 = vadd.f32 %v455, %v1065
    %v1290 = vadd.f32 %v456, %v1068
    %v1291 = vadd.f32 %v457, %v1073
    %v1292 = vadd.f32 %v458, %v1076
    %v1293 = vadd.f32 %v459, %v1081
    %v1294 = vadd.f32 %v460, %v1084
    %v1295 = vadd.f32 %v461, %v1089
    %v1296 = vadd.f32 %v462, %v1092
    %v1297 = vadd.f32 %v463, %v1097
    %v1298 = vadd.f32 %v464, %v1100
    %v1299 = vadd.f32 %v465, %v1105
    %v1300 = vadd.f32 %v466, %v1108
    %v1301 = vadd.f32 %v467, %v1113
    %v1302 = vadd.f32 %v468, %v1116
    %v1303 = vadd.f32 %v469, %v1121
    %v1304 = vadd.f32 %v470, %v1124
    %v1305 = vadd.f32 %v471, %v1129
    %v1306 = vadd.f32 %v472, %v1132
    %v1307 = vadd.f32 %v473, %v1137
    %v1308 = vadd.f32 %v474, %v1140
    %v1309 = vadd.f32 %v475, %v1145
    %v1310 = vadd.f32 %v476, %v1148
    %v1311 = vadd.f32 %v477, %v1153
    %v1312 = vadd.f32 %v478, %v1156
    %v1313 = vadd.f32 %v479, %v1161
    %v1314 = vadd.f32 %v480, %v1164
    %v1315 = vadd.f32 %v481, %v1169
    %v1316 = vadd.f32 %v482, %v1172
    %v1317 = vadd.f32 %v483, %v1177
    %v1318 = vadd.f32 %v484, %v1180
    %v1319 = vadd.f32 %v485, %v1185
    %v1320 = vadd.f32 %v486, %v1188
    %v1321 = vadd.f32 %v487, %v1193
    %v1322 = vadd.f32 %v488, %v1196
    %v1323 = vadd.f32 %v489, %v1201
    %v1324 = vadd.f32 %v490, %v1204
    %v1325 = vadd.f32 %v491, %v1209
    %v1326 = vadd.f32 %v492, %v1212
    %v1327 = vadd.f32 %v493, %v1217
    %v1328 = vadd.f32 %v494, %v1220
    %v1329 = vadd.f32 %v495, %v1225
    %v1330 = vadd.f32 %v496, %v1228
    %v1331 = vadd.f32 %v497, %v1233
    %v1332 = vadd.f32 %v498, %v1236
    %v1333 = vadd.f32 %v499, %v1241
    %v1334 = vadd.f32 %v500, %v1244
    %v1335 = vadd.f32 %v501, %v1249
    %v1336 = vadd.f32 %v502, %v1252
    %v1337 = vadd.f32 %v503, %v1257
    %v1338 = vadd.f32 %v504, %v1260
    %v1339 = vadd.f32 %v505, %v1265
    %v1340 = vadd.f32 %v506, %v1268
    %v1341 = vadd.f32 %v507, %v1273
    %v1342 = vadd.f32 %v508, %v1276
    %1343 = vst [vmem:[#allocation2] sm:$0xff] %v1279
    %1344 = vst [vmem:[#allocation2 + $0x8] sm:$0xff] %v1280
    %1345 = vst [vmem:[#allocation2 + $0x10] sm:$0xff] %v1281
    %1346 = vst [vmem:[#allocation2 + $0x18] sm:$0xff] %v1282
    %1347 = vst [vmem:[#allocation2 + $0x20] sm:$0xff] %v1283
    %1348 = vst [vmem:[#allocation2 + $0x28] sm:$0xff] %v1284
    %1349 = vst [vmem:[#allocation2 + $0x30] sm:$0xff] %v1285
    %1350 = vst [vmem:[#allocation2 + $0x38] sm:$0xff] %v1286
    %1351 = vst [vmem:[#allocation2 + $0x40] sm:$0xff] %v1287
    %1352 = vst [vmem:[#allocation2 + $0x48] sm:$0xff] %v1288
    %1353 = vst [vmem:[#allocation2 + $0x50] sm:$0xff] %v1289
    %1354 = vst [vmem:[#allocation2 + $0x58] sm:$0xff] %v1290
    %1355 = vst [vmem:[#allocation2 + $0x60] sm:$0xff] %v1291
    %1356 = vst [vmem:[#allocation2 + $0x68] sm:$0xff] %v1292
    %1357 = vst [vmem:[#allocation2 + $0x70] sm:$0xff] %v1293
    %1358 = vst [vmem:[#allocation2 + $0x78] sm:$0xff] %v1294
    %1359 = vst [vmem:[#allocation2 + $0x80] sm:$0xff] %v1295
    %1360 = vst [vmem:[#allocation2 + $0x88] sm:$0xff] %v1296
    %1361 = vst [vmem:[#allocation2 + $0x90] sm:$0xff] %v1297
    %1362 = vst [vmem:[#allocation2 + $0x98] sm:$0xff] %v1298
    %1363 = vst [vmem:[#allocation2 + $0xa0] sm:$0xff] %v1299
    %1364 = vst [vmem:[#allocation2 + $0xa8] sm:$0xff] %v1300
    %1365 = vst [vmem:[#allocation2 + $0xb0] sm:$0xff] %v1301
    %1366 = vst [vmem:[#allocation2 + $0xb8] sm:$0xff] %v1302
    %1367 = vst [vmem:[#allocation2 + $0xc0] sm:$0xff] %v1303
    %1368 = vst [vmem:[#allocation2 + $0xc8] sm:$0xff] %v1304
    %1369 = vst [vmem:[#allocation2 + $0xd0] sm:$0xff] %v1305
    %1370 = vst [vmem:[#allocation2 + $0xd8] sm:$0xff] %v1306
    %1371 = vst [vmem:[#allocation2 + $0xe0] sm:$0xff] %v1307
    %1372 = vst [vmem:[#allocation2 + $0xe8] sm:$0xff] %v1308
    %1373 = vst [vmem:[#allocation2 + $0xf0] sm:$0xff] %v1309
    %1374 = vst [vmem:[#allocation2 + $0xf8] sm:$0xff] %v1310
    %1375 = vst [vmem:[#allocation2 + $0x100] sm:$0xff] %v1311
    %1376 = vst [vmem:[#allocation2 + $0x108] sm:$0xff] %v1312
    %1377 = vst [vmem:[#allocation2 + $0x110] sm:$0xff] %v1313
    %1378 = vst [vmem:[#allocation2 + $0x118] sm:$0xff] %v1314
    %1379 = vst [vmem:[#allocation2 + $0x120] sm:$0xff] %v1315
    %1380 = vst [vmem:[#allocation2 + $0x128] sm:$0xff] %v1316
    %1381 = vst [vmem:[#allocation2 + $0x130] sm:$0xff] %v1317
    %1382 = vst [vmem:[#allocation2 + $0x138] sm:$0xff] %v1318
    %1383 = vst [vmem:[#allocation2 + $0x140] sm:$0xff] %v1319
    %1384 = vst [vmem:[#allocation2 + $0x148] sm:$0xff] %v1320
    %1385 = vst [vmem:[#allocation2 + $0x150] sm:$0xff] %v1321
    %1386 = vst [vmem:[#allocation2 + $0x158] sm:$0xff] %v1322
    %1387 = vst [vmem:[#allocation2 + $0x160] sm:$0xff] %v1323
    %1388 = vst [vmem:[#allocation2 + $0x168] sm:$0xff] %v1324
    %1389 = vst [vmem:[#allocation2 + $0x170] sm:$0xff] %v1325
    %1390 = vst [vmem:[#allocation2 + $0x178] sm:$0xff] %v1326
    %1391 = vst [vmem:[#allocation2 + $0x180] sm:$0xff] %v1327
    %1392 = vst [vmem:[#allocation2 + $0x188] sm:$0xff] %v1328
    %1393 = vst [vmem:[#allocation2 + $0x190] sm:$0xff] %v1329
    %1394 = vst [vmem:[#allocation2 + $0x198] sm:$0xff] %v1330
    %1395 = vst [vmem:[#allocation2 + $0x1a0] sm:$0xff] %v1331
    %1396 = vst [vmem:[#allocation2 + $0x1a8] sm:$0xff] %v1332
    %1397 = vst [vmem:[#allocation2 + $0x1b0] sm:$0xff] %v1333
    %1398 = vst [vmem:[#allocation2 + $0x1b8] sm:$0xff] %v1334
    %1399 = vst [vmem:[#allocation2 + $0x1c0] sm:$0xff] %v1335
    %1400 = vst [vmem:[#allocation2 + $0x1c8] sm:$0xff] %v1336
    %1401 = vst [vmem:[#allocation2 + $0x1d0] sm:$0xff] %v1337
    %1402 = vst [vmem:[#allocation2 + $0x1d8] sm:$0xff] %v1338
    %1403 = vst [vmem:[#allocation2 + $0x1e0] sm:$0xff] %v1339
    %1404 = vst [vmem:[#allocation2 + $0x1e8] sm:$0xff] %v1340
    %1405 = vst [vmem:[#allocation2 + $0x1f0] sm:$0xff] %v1341
    %1406 = vst [vmem:[#allocation2 + $0x1f8] sm:$0xff] %v1342
    // Predicated region
    $region62: #{tpu_custom_call.1} parent=1 // pred_check
      %p1407 = pneg %p116
    $region63: #{tpu_custom_call.1} parent=1 // pred_check_branch
      %1409 = sbr.rel (%p1407) target = $region65
    $region64: #{tpu_custom_call.1} parent=1 // pred_region
      %v1410 = vld [vmem:[#allocation2] sm:$0xff]
      %v1411 = vld [vmem:[#allocation2 + $0x8] sm:$0xff]
      %v1412 = vld [vmem:[#allocation2 + $0x10] sm:$0xff]
      %v1413 = vld [vmem:[#allocation2 + $0x18] sm:$0xff]
      %v1414 = vld [vmem:[#allocation2 + $0x20] sm:$0xff]
      %v1415 = vld [vmem:[#allocation2 + $0x28] sm:$0xff]
      %v1416 = vld [vmem:[#allocation2 + $0x30] sm:$0xff]
      %v1417 = vld [vmem:[#allocation2 + $0x38] sm:$0xff]
      %v1418 = vld [vmem:[#allocation2 + $0x40] sm:$0xff]
      %v1419 = vld [vmem:[#allocation2 + $0x48] sm:$0xff]
      %v1420 = vld [vmem:[#allocation2 + $0x50] sm:$0xff]
      %v1421 = vld [vmem:[#allocation2 + $0x58] sm:$0xff]
      %v1422 = vld [vmem:[#allocation2 + $0x60] sm:$0xff]
      %v1423 = vld [vmem:[#allocation2 + $0x68] sm:$0xff]
      %v1424 = vld [vmem:[#allocation2 + $0x70] sm:$0xff]
      %v1425 = vld [vmem:[#allocation2 + $0x78] sm:$0xff]
      %v1426 = vld [vmem:[#allocation2 + $0x80] sm:$0xff]
      %v1427 = vld [vmem:[#allocation2 + $0x88] sm:$0xff]
      %v1428 = vld [vmem:[#allocation2 + $0x90] sm:$0xff]
      %v1429 = vld [vmem:[#allocation2 + $0x98] sm:$0xff]
      %v1430 = vld [vmem:[#allocation2 + $0xa0] sm:$0xff]
      %v1431 = vld [vmem:[#allocation2 + $0xa8] sm:$0xff]
      %v1432 = vld [vmem:[#allocation2 + $0xb0] sm:$0xff]
      %v1433 = vld [vmem:[#allocation2 + $0xb8] sm:$0xff]
      %v1434 = vld [vmem:[#allocation2 + $0xc0] sm:$0xff]
      %v1435 = vld [vmem:[#allocation2 + $0xc8] sm:$0xff]
      %v1436 = vld [vmem:[#allocation2 + $0xd0] sm:$0xff]
      %v1437 = vld [vmem:[#allocation2 + $0xd8] sm:$0xff]
      %v1438 = vld [vmem:[#allocation2 + $0xe0] sm:$0xff]
      %v1439 = vld [vmem:[#allocation2 + $0xe8] sm:$0xff]
      %v1440 = vld [vmem:[#allocation2 + $0xf0] sm:$0xff]
      %v1441 = vld [vmem:[#allocation2 + $0xf8] sm:$0xff]
      %v1442 = vld [vmem:[#allocation2 + $0x100] sm:$0xff]
      %v1443 = vld [vmem:[#allocation2 + $0x108] sm:$0xff]
      %v1444 = vld [vmem:[#allocation2 + $0x110] sm:$0xff]
      %v1445 = vld [vmem:[#allocation2 + $0x118] sm:$0xff]
      %v1446 = vld [vmem:[#allocation2 + $0x120] sm:$0xff]
      %v1447 = vld [vmem:[#allocation2 + $0x128] sm:$0xff]
      %v1448 = vld [vmem:[#allocation2 + $0x130] sm:$0xff]
      %v1449 = vld [vmem:[#allocation2 + $0x138] sm:$0xff]
      %v1450 = vld [vmem:[#allocation2 + $0x140] sm:$0xff]
      %v1451 = vld [vmem:[#allocation2 + $0x148] sm:$0xff]
      %v1452 = vld [vmem:[#allocation2 + $0x150] sm:$0xff]
      %v1453 = vld [vmem:[#allocation2 + $0x158] sm:$0xff]
      %v1454 = vld [vmem:[#allocation2 + $0x160] sm:$0xff]
      %v1455 = vld [vmem:[#allocation2 + $0x168] sm:$0xff]
      %v1456 = vld [vmem:[#allocation2 + $0x170] sm:$0xff]
      %v1457 = vld [vmem:[#allocation2 + $0x178] sm:$0xff]
      %v1458 = vld [vmem:[#allocation2 + $0x180] sm:$0xff]
      %v1459 = vld [vmem:[#allocation2 + $0x188] sm:$0xff]
      %v1460 = vld [vmem:[#allocation2 + $0x190] sm:$0xff]
      %v1461 = vld [vmem:[#allocation2 + $0x198] sm:$0xff]
      %v1462 = vld [vmem:[#allocation2 + $0x1a0] sm:$0xff]
      %v1463 = vld [vmem:[#allocation2 + $0x1a8] sm:$0xff]
      %v1464 = vld [vmem:[#allocation2 + $0x1b0] sm:$0xff]
      %v1465 = vld [vmem:[#allocation2 + $0x1b8] sm:$0xff]
      %v1466 = vld [vmem:[#allocation2 + $0x1c0] sm:$0xff]
      %v1467 = vld [vmem:[#allocation2 + $0x1c8] sm:$0xff]
      %v1468 = vld [vmem:[#allocation2 + $0x1d0] sm:$0xff]
      %v1469 = vld [vmem:[#allocation2 + $0x1d8] sm:$0xff]
      %v1470 = vld [vmem:[#allocation2 + $0x1e0] sm:$0xff]
      %v1471 = vld [vmem:[#allocation2 + $0x1e8] sm:$0xff]
      %v1472 = vld [vmem:[#allocation2 + $0x1f0] sm:$0xff]
      %v1473 = vld [vmem:[#allocation2 + $0x1f8] sm:$0xff]
      %s1474 = smul.u32 0, 512
      %s1475 = sshra.s32 %s1474, 3
      %s1476 = sand.u32 %s1474, 7
      %s1477 = smul.addr %s1475, 4
      %s1478 = scalar_lea.vmem [#allocation6], %s1477
      %v1479 = vld [vmem:[%s1478] sm:$0xf]
      %v1480 = vld [vmem:[%s1478 + $0x4] sm:$0xf]
      %v1481 = vld [vmem:[%s1478 + $0x8] sm:$0xf]
      %v1482 = vld [vmem:[%s1478 + $0xc] sm:$0xf]
      %v1483 = vld [vmem:[%s1478 + $0x10] sm:$0xf]
      %v1484 = vld [vmem:[%s1478 + $0x14] sm:$0xf]
      %v1485 = vld [vmem:[%s1478 + $0x18] sm:$0xf]
      %v1486 = vld [vmem:[%s1478 + $0x1c] sm:$0xf]
      %v1487 = vld [vmem:[%s1478 + $0x20] sm:$0xf]
      %v1488 = vld [vmem:[%s1478 + $0x24] sm:$0xf]
      %v1489 = vld [vmem:[%s1478 + $0x28] sm:$0xf]
      %v1490 = vld [vmem:[%s1478 + $0x2c] sm:$0xf]
      %v1491 = vld [vmem:[%s1478 + $0x30] sm:$0xf]
      %v1492 = vld [vmem:[%s1478 + $0x34] sm:$0xf]
      %v1493 = vld [vmem:[%s1478 + $0x38] sm:$0xf]
      %v1494 = vld [vmem:[%s1478 + $0x3c] sm:$0xf]
      %v1495 = vld [vmem:[%s1478 + $0x40] sm:$0xf]
      %v1496 = vld [vmem:[%s1478 + $0x44] sm:$0xf]
      %v1497 = vld [vmem:[%s1478 + $0x48] sm:$0xf]
      %v1498 = vld [vmem:[%s1478 + $0x4c] sm:$0xf]
      %v1499 = vld [vmem:[%s1478 + $0x50] sm:$0xf]
      %v1500 = vld [vmem:[%s1478 + $0x54] sm:$0xf]
      %v1501 = vld [vmem:[%s1478 + $0x58] sm:$0xf]
      %v1502 = vld [vmem:[%s1478 + $0x5c] sm:$0xf]
      %v1503 = vld [vmem:[%s1478 + $0x60] sm:$0xf]
      %v1504 = vld [vmem:[%s1478 + $0x64] sm:$0xf]
      %v1505 = vld [vmem:[%s1478 + $0x68] sm:$0xf]
      %v1506 = vld [vmem:[%s1478 + $0x6c] sm:$0xf]
      %v1507 = vld [vmem:[%s1478 + $0x70] sm:$0xf]
      %v1508 = vld [vmem:[%s1478 + $0x74] sm:$0xf]
      %v1509 = vld [vmem:[%s1478 + $0x78] sm:$0xf]
      %v1510 = vld [vmem:[%s1478 + $0x7c] sm:$0xf]
      %v1511 = vld [vmem:[%s1478 + $0x80] sm:$0xf]
      %v1512 = vld [vmem:[%s1478 + $0x84] sm:$0xf]
      %v1513 = vld [vmem:[%s1478 + $0x88] sm:$0xf]
      %v1514 = vld [vmem:[%s1478 + $0x8c] sm:$0xf]
      %v1515 = vld [vmem:[%s1478 + $0x90] sm:$0xf]
      %v1516 = vld [vmem:[%s1478 + $0x94] sm:$0xf]
      %v1517 = vld [vmem:[%s1478 + $0x98] sm:$0xf]
      %v1518 = vld [vmem:[%s1478 + $0x9c] sm:$0xf]
      %v1519 = vld [vmem:[%s1478 + $0xa0] sm:$0xf]
      %v1520 = vld [vmem:[%s1478 + $0xa4] sm:$0xf]
      %v1521 = vld [vmem:[%s1478 + $0xa8] sm:$0xf]
      %v1522 = vld [vmem:[%s1478 + $0xac] sm:$0xf]
      %v1523 = vld [vmem:[%s1478 + $0xb0] sm:$0xf]
      %v1524 = vld [vmem:[%s1478 + $0xb4] sm:$0xf]
      %v1525 = vld [vmem:[%s1478 + $0xb8] sm:$0xf]
      %v1526 = vld [vmem:[%s1478 + $0xbc] sm:$0xf]
      %v1527 = vld [vmem:[%s1478 + $0xc0] sm:$0xf]
      %v1528 = vld [vmem:[%s1478 + $0xc4] sm:$0xf]
      %v1529 = vld [vmem:[%s1478 + $0xc8] sm:$0xf]
      %v1530 = vld [vmem:[%s1478 + $0xcc] sm:$0xf]
      %v1531 = vld [vmem:[%s1478 + $0xd0] sm:$0xf]
      %v1532 = vld [vmem:[%s1478 + $0xd4] sm:$0xf]
      %v1533 = vld [vmem:[%s1478 + $0xd8] sm:$0xf]
      %v1534 = vld [vmem:[%s1478 + $0xdc] sm:$0xf]
      %v1535 = vld [vmem:[%s1478 + $0xe0] sm:$0xf]
      %v1536 = vld [vmem:[%s1478 + $0xe4] sm:$0xf]
      %v1537 = vld [vmem:[%s1478 + $0xe8] sm:$0xf]
      %v1538 = vld [vmem:[%s1478 + $0xec] sm:$0xf]
      %v1539 = vld [vmem:[%s1478 + $0xf0] sm:$0xf]
      %v1540 = vld [vmem:[%s1478 + $0xf4] sm:$0xf]
      %v1541 = vld [vmem:[%s1478 + $0xf8] sm:$0xf]
      %v1542 = vld [vmem:[%s1478 + $0xfc] sm:$0xf]
      %v1543 = vunpack.c.l.bf16 %v1479
      %v1544 = vunpack.c.l.bf16 %v1480
      %v1545 = vunpack.c.l.bf16 %v1481
      %v1546 = vunpack.c.l.bf16 %v1482
      %v1547 = vunpack.c.l.bf16 %v1483
      %v1548 = vunpack.c.l.bf16 %v1484
      %v1549 = vunpack.c.l.bf16 %v1485
      %v1550 = vunpack.c.l.bf16 %v1486
      %v1551 = vunpack.c.l.bf16 %v1487
      %v1552 = vunpack.c.l.bf16 %v1488
      %v1553 = vunpack.c.l.bf16 %v1489
      %v1554 = vunpack.c.l.bf16 %v1490
      %v1555 = vunpack.c.l.bf16 %v1491
      %v1556 = vunpack.c.l.bf16 %v1492
      %v1557 = vunpack.c.l.bf16 %v1493
      %v1558 = vunpack.c.l.bf16 %v1494
      %v1559 = vunpack.c.l.bf16 %v1495
      %v1560 = vunpack.c.l.bf16 %v1496
      %v1561 = vunpack.c.l.bf16 %v1497
      %v1562 = vunpack.c.l.bf16 %v1498
      %v1563 = vunpack.c.l.bf16 %v1499
      %v1564 = vunpack.c.l.bf16 %v1500
      %v1565 = vunpack.c.l.bf16 %v1501
      %v1566 = vunpack.c.l.bf16 %v1502
      %v1567 = vunpack.c.l.bf16 %v1503
      %v1568 = vunpack.c.l.bf16 %v1504
      %v1569 = vunpack.c.l.bf16 %v1505
      %v1570 = vunpack.c.l.bf16 %v1506
      %v1571 = vunpack.c.l.bf16 %v1507
      %v1572 = vunpack.c.l.bf16 %v1508
      %v1573 = vunpack.c.l.bf16 %v1509
      %v1574 = vunpack.c.l.bf16 %v1510
      %v1575 = vunpack.c.l.bf16 %v1511
      %v1576 = vunpack.c.l.bf16 %v1512
      %v1577 = vunpack.c.l.bf16 %v1513
      %v1578 = vunpack.c.l.bf16 %v1514
      %v1579 = vunpack.c.l.bf16 %v1515
      %v1580 = vunpack.c.l.bf16 %v1516
      %v1581 = vunpack.c.l.bf16 %v1517
      %v1582 = vunpack.c.l.bf16 %v1518
      %v1583 = vunpack.c.l.bf16 %v1519
      %v1584 = vunpack.c.l.bf16 %v1520
      %v1585 = vunpack.c.l.bf16 %v1521
      %v1586 = vunpack.c.l.bf16 %v1522
      %v1587 = vunpack.c.l.bf16 %v1523
      %v1588 = vunpack.c.l.bf16 %v1524
      %v1589 = vunpack.c.l.bf16 %v1525
      %v1590 = vunpack.c.l.bf16 %v1526
      %v1591 = vunpack.c.l.bf16 %v1527
      %v1592 = vunpack.c.l.bf16 %v1528
      %v1593 = vunpack.c.l.bf16 %v1529
      %v1594 = vunpack.c.l.bf16 %v1530
      %v1595 = vunpack.c.l.bf16 %v1531
      %v1596 = vunpack.c.l.bf16 %v1532
      %v1597 = vunpack.c.l.bf16 %v1533
      %v1598 = vunpack.c.l.bf16 %v1534
      %v1599 = vunpack.c.l.bf16 %v1535
      %v1600 = vunpack.c.l.bf16 %v1536
      %v1601 = vunpack.c.l.bf16 %v1537
      %v1602 = vunpack.c.l.bf16 %v1538
      %v1603 = vunpack.c.l.bf16 %v1539
      %v1604 = vunpack.c.l.bf16 %v1540
      %v1605 = vunpack.c.l.bf16 %v1541
      %v1606 = vunpack.c.l.bf16 %v1542
      %v1607 = vld [vmem:[#allocation8] sm:$0xff]
      %v1608 = vld [vmem:[#allocation8 + $0x8] sm:$0xff]
      %v1609 = vld [vmem:[#allocation8 + $0x10] sm:$0xff]
      %v1610 = vld [vmem:[#allocation8 + $0x18] sm:$0xff]
      %v1611 = vld [vmem:[#allocation8 + $0x20] sm:$0xff]
      %v1612 = vld [vmem:[#allocation8 + $0x28] sm:$0xff]
      %v1613 = vld [vmem:[#allocation8 + $0x30] sm:$0xff]
      %v1614 = vld [vmem:[#allocation8 + $0x38] sm:$0xff]
      %v1615 = vld [vmem:[#allocation8 + $0x40] sm:$0xff]
      %v1616 = vld [vmem:[#allocation8 + $0x48] sm:$0xff]
      %v1617 = vld [vmem:[#allocation8 + $0x50] sm:$0xff]
      %v1618 = vld [vmem:[#allocation8 + $0x58] sm:$0xff]
      %v1619 = vld [vmem:[#allocation8 + $0x60] sm:$0xff]
      %v1620 = vld [vmem:[#allocation8 + $0x68] sm:$0xff]
      %v1621 = vld [vmem:[#allocation8 + $0x70] sm:$0xff]
      %v1622 = vld [vmem:[#allocation8 + $0x78] sm:$0xff]
      %v1623 = vld [vmem:[#allocation9] sm:$0xff]
      %v1624 = vld [vmem:[#allocation9 + $0x8] sm:$0xff]
      %v1625 = vld [vmem:[#allocation9 + $0x10] sm:$0xff]
      %v1626 = vld [vmem:[#allocation9 + $0x18] sm:$0xff]
      %v1627 = vld [vmem:[#allocation9 + $0x20] sm:$0xff]
      %v1628 = vld [vmem:[#allocation9 + $0x28] sm:$0xff]
      %v1629 = vld [vmem:[#allocation9 + $0x30] sm:$0xff]
      %v1630 = vld [vmem:[#allocation9 + $0x38] sm:$0xff]
      %v1631 = vld [vmem:[#allocation9 + $0x40] sm:$0xff]
      %v1632 = vld [vmem:[#allocation9 + $0x48] sm:$0xff]
      %v1633 = vld [vmem:[#allocation9 + $0x50] sm:$0xff]
      %v1634 = vld [vmem:[#allocation9 + $0x58] sm:$0xff]
      %v1635 = vld [vmem:[#allocation9 + $0x60] sm:$0xff]
      %v1636 = vld [vmem:[#allocation9 + $0x68] sm:$0xff]
      %v1637 = vld [vmem:[#allocation9 + $0x70] sm:$0xff]
      %v1638 = vld [vmem:[#allocation9 + $0x78] sm:$0xff]
      %1639 = vmatprep.subr.mxu0 0.0
      %1640 = vmatpush1.msra.mxu0 %v1638
      %1641 = vmatprep.subr.mxu0 0.0
      %1642 = vmatpush1.msra.mxu0 %v1637
      %1643 = vmatprep.subr.mxu0 0.0
      %1644 = vmatpush1.msra.mxu0 %v1636
      %1645 = vmatprep.subr.mxu0 0.0
      %1646 = vmatpush1.msra.mxu0 %v1635
      %1647 = vmatprep.subr.mxu0 0.0
      %1648 = vmatpush1.msra.mxu0 %v1634
      %1649 = vmatprep.subr.mxu0 0.0
      %1650 = vmatpush1.msra.mxu0 %v1633
      %1651 = vmatprep.subr.mxu0 0.0
      %1652 = vmatpush1.msra.mxu0 %v1632
      %1653 = vmatprep.subr.mxu0 0.0
      %1654 = vmatpush1.msra.mxu0 %v1631
      %1655 = vmatprep.subr.mxu0 0.0
      %1656 = vmatpush1.msra.mxu0 %v1630
      %1657 = vmatprep.subr.mxu0 0.0
      %1658 = vmatpush1.msra.mxu0 %v1629
      %1659 = vmatprep.subr.mxu0 0.0
      %1660 = vmatpush1.msra.mxu0 %v1628
      %1661 = vmatprep.subr.mxu0 0.0
      %1662 = vmatpush1.msra.mxu0 %v1627
      %1663 = vmatprep.subr.mxu0 0.0
      %1664 = vmatpush1.msra.mxu0 %v1626
      %1665 = vmatprep.subr.mxu0 0.0
      %1666 = vmatpush1.msra.mxu0 %v1625
      %1667 = vmatprep.subr.mxu0 0.0
      %1668 = vmatpush1.msra.mxu0 %v1624
      %1669 = vmatprep.subr.mxu0 0.0
      %1670 = vmatpush1.msra.mxu0 %v1623
      %1671 = vmatprep.subr.mxu0 0.0
      %1672 = vmatpush2.msra.mxu0 0.0
      %1673 = vmatprep.subr.mxu0 0.0
      %1674 = vmatpush2.msra.mxu0 0.0
      %1675 = vmatprep.subr.mxu0 0.0
      %1676 = vmatpush2.msra.mxu0 0.0
      %1677 = vmatprep.subr.mxu0 0.0
      %1678 = vmatpush2.msra.mxu0 0.0
      %1679 = vmatprep.subr.mxu0 0.0
      %1680 = vmatpush2.msra.mxu0 0.0
      %1681 = vmatprep.subr.mxu0 0.0
      %1682 = vmatpush2.msra.mxu0 0.0
      %1683 = vmatprep.subr.mxu0 0.0
      %1684 = vmatpush2.msra.mxu0 0.0
      %1685 = vmatprep.subr.mxu0 0.0
      %1686 = vmatpush2.msra.mxu0 0.0
      %1687 = vmatprep.subr.mxu0 0.0
      %1688 = vmatpush2.msra.mxu0 0.0
      %1689 = vmatprep.subr.mxu0 0.0
      %1690 = vmatpush2.msra.mxu0 0.0
      %1691 = vmatprep.subr.mxu0 0.0
      %1692 = vmatpush2.msra.mxu0 0.0
      %1693 = vmatprep.subr.mxu0 0.0
      %1694 = vmatpush2.msra.mxu0 0.0
      %1695 = vmatprep.subr.mxu0 0.0
      %1696 = vmatpush2.msra.mxu0 0.0
      %1697 = vmatprep.subr.mxu0 0.0
      %1698 = vmatpush2.msra.mxu0 0.0
      %1699 = vmatprep.subr.mxu0 0.0
      %1700 = vmatpush2.msra.mxu0 0.0
      %1701 = vmatprep.subr.mxu0 0.0
      %1702 = vmatpush2.msra.mxu0 0.0
      %1703 = vmatprep.mubr.f32.mxu0 0.0
      %1704 = vmatmul.mubr.f32.gmra.mxu0 %v1543
      %v1705 = vpop.f32.mrf.mxu0
      %v1706 = vadd.f32 0.0, %v1705
      %v1707 = vpop.f32.mrf.mxu0
      %1708 = vmatprep.mubr.f32.mxu0 0.0
      %1709 = vmatmul.mubr.f32.gmra.mxu0 %v1544
      %v1710 = vpop.f32.mrf.mxu0
      %v1711 = vadd.f32 0.0, %v1710
      %v1712 = vpop.f32.mrf.mxu0
      %1713 = vmatprep.mubr.f32.mxu0 0.0
      %1714 = vmatmul.mubr.f32.gmra.mxu0 %v1545
      %v1715 = vpop.f32.mrf.mxu0
      %v1716 = vadd.f32 0.0, %v1715
      %v1717 = vpop.f32.mrf.mxu0
      %1718 = vmatprep.mubr.f32.mxu0 0.0
      %1719 = vmatmul.mubr.f32.gmra.mxu0 %v1546
      %v1720 = vpop.f32.mrf.mxu0
      %v1721 = vadd.f32 0.0, %v1720
      %v1722 = vpop.f32.mrf.mxu0
      %1723 = vmatprep.mubr.f32.mxu0 0.0
      %1724 = vmatmul.mubr.f32.gmra.mxu0 %v1547
      %v1725 = vpop.f32.mrf.mxu0
      %v1726 = vadd.f32 0.0, %v1725
      %v1727 = vpop.f32.mrf.mxu0
      %1728 = vmatprep.mubr.f32.mxu0 0.0
      %1729 = vmatmul.mubr.f32.gmra.mxu0 %v1548
      %v1730 = vpop.f32.mrf.mxu0
      %v1731 = vadd.f32 0.0, %v1730
      %v1732 = vpop.f32.mrf.mxu0
      %1733 = vmatprep.mubr.f32.mxu0 0.0
      %1734 = vmatmul.mubr.f32.gmra.mxu0 %v1549
      %v1735 = vpop.f32.mrf.mxu0
      %v1736 = vadd.f32 0.0, %v1735
      %v1737 = vpop.f32.mrf.mxu0
      %1738 = vmatprep.mubr.f32.mxu0 0.0
      %1739 = vmatmul.mubr.f32.gmra.mxu0 %v1550
      %v1740 = vpop.f32.mrf.mxu0
      %v1741 = vadd.f32 0.0, %v1740
      %v1742 = vpop.f32.mrf.mxu0
      %1743 = vmatprep.mubr.f32.mxu0 0.0
      %1744 = vmatmul.mubr.f32.gmra.mxu0 %v1551
      %v1745 = vpop.f32.mrf.mxu0
      %v1746 = vadd.f32 0.0, %v1745
      %v1747 = vpop.f32.mrf.mxu0
      %1748 = vmatprep.mubr.f32.mxu0 0.0
      %1749 = vmatmul.mubr.f32.gmra.mxu0 %v1552
      %v1750 = vpop.f32.mrf.mxu0
      %v1751 = vadd.f32 0.0, %v1750
      %v1752 = vpop.f32.mrf.mxu0
      %1753 = vmatprep.mubr.f32.mxu0 0.0
      %1754 = vmatmul.mubr.f32.gmra.mxu0 %v1553
      %v1755 = vpop.f32.mrf.mxu0
      %v1756 = vadd.f32 0.0, %v1755
      %v1757 = vpop.f32.mrf.mxu0
      %1758 = vmatprep.mubr.f32.mxu0 0.0
      %1759 = vmatmul.mubr.f32.gmra.mxu0 %v1554
      %v1760 = vpop.f32.mrf.mxu0
      %v1761 = vadd.f32 0.0, %v1760
      %v1762 = vpop.f32.mrf.mxu0
      %1763 = vmatprep.mubr.f32.mxu0 0.0
      %1764 = vmatmul.mubr.f32.gmra.mxu0 %v1555
      %v1765 = vpop.f32.mrf.mxu0
      %v1766 = vadd.f32 0.0, %v1765
      %v1767 = vpop.f32.mrf.mxu0
      %1768 = vmatprep.mubr.f32.mxu0 0.0
      %1769 = vmatmul.mubr.f32.gmra.mxu0 %v1556
      %v1770 = vpop.f32.mrf.mxu0
      %v1771 = vadd.f32 0.0, %v1770
      %v1772 = vpop.f32.mrf.mxu0
      %1773 = vmatprep.mubr.f32.mxu0 0.0
      %1774 = vmatmul.mubr.f32.gmra.mxu0 %v1557
      %v1775 = vpop.f32.mrf.mxu0
      %v1776 = vadd.f32 0.0, %v1775
      %v1777 = vpop.f32.mrf.mxu0
      %1778 = vmatprep.mubr.f32.mxu0 0.0
      %1779 = vmatmul.mubr.f32.gmra.mxu0 %v1558
      %v1780 = vpop.f32.mrf.mxu0
      %v1781 = vadd.f32 0.0, %v1780
      %v1782 = vpop.f32.mrf.mxu0
      %1783 = vmatprep.mubr.f32.mxu0 0.0
      %1784 = vmatmul.mubr.f32.gmra.mxu0 %v1559
      %v1785 = vpop.f32.mrf.mxu0
      %v1786 = vadd.f32 0.0, %v1785
      %v1787 = vpop.f32.mrf.mxu0
      %1788 = vmatprep.mubr.f32.mxu0 0.0
      %1789 = vmatmul.mubr.f32.gmra.mxu0 %v1560
      %v1790 = vpop.f32.mrf.mxu0
      %v1791 = vadd.f32 0.0, %v1790
      %v1792 = vpop.f32.mrf.mxu0
      %1793 = vmatprep.mubr.f32.mxu0 0.0
      %1794 = vmatmul.mubr.f32.gmra.mxu0 %v1561
      %v1795 = vpop.f32.mrf.mxu0
      %v1796 = vadd.f32 0.0, %v1795
      %v1797 = vpop.f32.mrf.mxu0
      %1798 = vmatprep.mubr.f32.mxu0 0.0
      %1799 = vmatmul.mubr.f32.gmra.mxu0 %v1562
      %v1800 = vpop.f32.mrf.mxu0
      %v1801 = vadd.f32 0.0, %v1800
      %v1802 = vpop.f32.mrf.mxu0
      %1803 = vmatprep.mubr.f32.mxu0 0.0
      %1804 = vmatmul.mubr.f32.gmra.mxu0 %v1563
      %v1805 = vpop.f32.mrf.mxu0
      %v1806 = vadd.f32 0.0, %v1805
      %v1807 = vpop.f32.mrf.mxu0
      %1808 = vmatprep.mubr.f32.mxu0 0.0
      %1809 = vmatmul.mubr.f32.gmra.mxu0 %v1564
      %v1810 = vpop.f32.mrf.mxu0
      %v1811 = vadd.f32 0.0, %v1810
      %v1812 = vpop.f32.mrf.mxu0
      %1813 = vmatprep.mubr.f32.mxu0 0.0
      %1814 = vmatmul.mubr.f32.gmra.mxu0 %v1565
      %v1815 = vpop.f32.mrf.mxu0
      %v1816 = vadd.f32 0.0, %v1815
      %v1817 = vpop.f32.mrf.mxu0
      %1818 = vmatprep.mubr.f32.mxu0 0.0
      %1819 = vmatmul.mubr.f32.gmra.mxu0 %v1566
      %v1820 = vpop.f32.mrf.mxu0
      %v1821 = vadd.f32 0.0, %v1820
      %v1822 = vpop.f32.mrf.mxu0
      %1823 = vmatprep.mubr.f32.mxu0 0.0
      %1824 = vmatmul.mubr.f32.gmra.mxu0 %v1567
      %v1825 = vpop.f32.mrf.mxu0
      %v1826 = vadd.f32 0.0, %v1825
      %v1827 = vpop.f32.mrf.mxu0
      %1828 = vmatprep.mubr.f32.mxu0 0.0
      %1829 = vmatmul.mubr.f32.gmra.mxu0 %v1568
      %v1830 = vpop.f32.mrf.mxu0
      %v1831 = vadd.f32 0.0, %v1830
      %v1832 = vpop.f32.mrf.mxu0
      %1833 = vmatprep.mubr.f32.mxu0 0.0
      %1834 = vmatmul.mubr.f32.gmra.mxu0 %v1569
      %v1835 = vpop.f32.mrf.mxu0
      %v1836 = vadd.f32 0.0, %v1835
      %v1837 = vpop.f32.mrf.mxu0
      %1838 = vmatprep.mubr.f32.mxu0 0.0
      %1839 = vmatmul.mubr.f32.gmra.mxu0 %v1570
      %v1840 = vpop.f32.mrf.mxu0
      %v1841 = vadd.f32 0.0, %v1840
      %v1842 = vpop.f32.mrf.mxu0
      %1843 = vmatprep.mubr.f32.mxu0 0.0
      %1844 = vmatmul.mubr.f32.gmra.mxu0 %v1571
      %v1845 = vpop.f32.mrf.mxu0
      %v1846 = vadd.f32 0.0, %v1845
      %v1847 = vpop.f32.mrf.mxu0
      %1848 = vmatprep.mubr.f32.mxu0 0.0
      %1849 = vmatmul.mubr.f32.gmra.mxu0 %v1572
      %v1850 = vpop.f32.mrf.mxu0
      %v1851 = vadd.f32 0.0, %v1850
      %v1852 = vpop.f32.mrf.mxu0
      %1853 = vmatprep.mubr.f32.mxu0 0.0
      %1854 = vmatmul.mubr.f32.gmra.mxu0 %v1573
      %v1855 = vpop.f32.mrf.mxu0
      %v1856 = vadd.f32 0.0, %v1855
      %v1857 = vpop.f32.mrf.mxu0
      %1858 = vmatprep.mubr.f32.mxu0 0.0
      %1859 = vmatmul.mubr.f32.gmra.mxu0 %v1574
      %v1860 = vpop.f32.mrf.mxu0
      %v1861 = vadd.f32 0.0, %v1860
      %v1862 = vpop.f32.mrf.mxu0
      %1863 = vmatprep.mubr.f32.mxu0 0.0
      %1864 = vmatmul.mubr.f32.gmra.mxu0 %v1575
      %v1865 = vpop.f32.mrf.mxu0
      %v1866 = vadd.f32 0.0, %v1865
      %v1867 = vpop.f32.mrf.mxu0
      %1868 = vmatprep.mubr.f32.mxu0 0.0
      %1869 = vmatmul.mubr.f32.gmra.mxu0 %v1576
      %v1870 = vpop.f32.mrf.mxu0
      %v1871 = vadd.f32 0.0, %v1870
      %v1872 = vpop.f32.mrf.mxu0
      %1873 = vmatprep.mubr.f32.mxu0 0.0
      %1874 = vmatmul.mubr.f32.gmra.mxu0 %v1577
      %v1875 = vpop.f32.mrf.mxu0
      %v1876 = vadd.f32 0.0, %v1875
      %v1877 = vpop.f32.mrf.mxu0
      %1878 = vmatprep.mubr.f32.mxu0 0.0
      %1879 = vmatmul.mubr.f32.gmra.mxu0 %v1578
      %v1880 = vpop.f32.mrf.mxu0
      %v1881 = vadd.f32 0.0, %v1880
      %v1882 = vpop.f32.mrf.mxu0
      %1883 = vmatprep.mubr.f32.mxu0 0.0
      %1884 = vmatmul.mubr.f32.gmra.mxu0 %v1579
      %v1885 = vpop.f32.mrf.mxu0
      %v1886 = vadd.f32 0.0, %v1885
      %v1887 = vpop.f32.mrf.mxu0
      %1888 = vmatprep.mubr.f32.mxu0 0.0
      %1889 = vmatmul.mubr.f32.gmra.mxu0 %v1580
      %v1890 = vpop.f32.mrf.mxu0
      %v1891 = vadd.f32 0.0, %v1890
      %v1892 = vpop.f32.mrf.mxu0
      %1893 = vmatprep.mubr.f32.mxu0 0.0
      %1894 = vmatmul.mubr.f32.gmra.mxu0 %v1581
      %v1895 = vpop.f32.mrf.mxu0
      %v1896 = vadd.f32 0.0, %v1895
      %v1897 = vpop.f32.mrf.mxu0
      %1898 = vmatprep.mubr.f32.mxu0 0.0
      %1899 = vmatmul.mubr.f32.gmra.mxu0 %v1582
      %v1900 = vpop.f32.mrf.mxu0
      %v1901 = vadd.f32 0.0, %v1900
      %v1902 = vpop.f32.mrf.mxu0
      %1903 = vmatprep.mubr.f32.mxu0 0.0
      %1904 = vmatmul.mubr.f32.gmra.mxu0 %v1583
      %v1905 = vpop.f32.mrf.mxu0
      %v1906 = vadd.f32 0.0, %v1905
      %v1907 = vpop.f32.mrf.mxu0
      %1908 = vmatprep.mubr.f32.mxu0 0.0
      %1909 = vmatmul.mubr.f32.gmra.mxu0 %v1584
      %v1910 = vpop.f32.mrf.mxu0
      %v1911 = vadd.f32 0.0, %v1910
      %v1912 = vpop.f32.mrf.mxu0
      %1913 = vmatprep.mubr.f32.mxu0 0.0
      %1914 = vmatmul.mubr.f32.gmra.mxu0 %v1585
      %v1915 = vpop.f32.mrf.mxu0
      %v1916 = vadd.f32 0.0, %v1915
      %v1917 = vpop.f32.mrf.mxu0
      %1918 = vmatprep.mubr.f32.mxu0 0.0
      %1919 = vmatmul.mubr.f32.gmra.mxu0 %v1586
      %v1920 = vpop.f32.mrf.mxu0
      %v1921 = vadd.f32 0.0, %v1920
      %v1922 = vpop.f32.mrf.mxu0
      %1923 = vmatprep.mubr.f32.mxu0 0.0
      %1924 = vmatmul.mubr.f32.gmra.mxu0 %v1587
      %v1925 = vpop.f32.mrf.mxu0
      %v1926 = vadd.f32 0.0, %v1925
      %v1927 = vpop.f32.mrf.mxu0
      %1928 = vmatprep.mubr.f32.mxu0 0.0
      %1929 = vmatmul.mubr.f32.gmra.mxu0 %v1588
      %v1930 = vpop.f32.mrf.mxu0
      %v1931 = vadd.f32 0.0, %v1930
      %v1932 = vpop.f32.mrf.mxu0
      %1933 = vmatprep.mubr.f32.mxu0 0.0
      %1934 = vmatmul.mubr.f32.gmra.mxu0 %v1589
      %v1935 = vpop.f32.mrf.mxu0
      %v1936 = vadd.f32 0.0, %v1935
      %v1937 = vpop.f32.mrf.mxu0
      %1938 = vmatprep.mubr.f32.mxu0 0.0
      %1939 = vmatmul.mubr.f32.gmra.mxu0 %v1590
      %v1940 = vpop.f32.mrf.mxu0
      %v1941 = vadd.f32 0.0, %v1940
      %v1942 = vpop.f32.mrf.mxu0
      %1943 = vmatprep.mubr.f32.mxu0 0.0
      %1944 = vmatmul.mubr.f32.gmra.mxu0 %v1591
      %v1945 = vpop.f32.mrf.mxu0
      %v1946 = vadd.f32 0.0, %v1945
      %v1947 = vpop.f32.mrf.mxu0
      %1948 = vmatprep.mubr.f32.mxu0 0.0
      %1949 = vmatmul.mubr.f32.gmra.mxu0 %v1592
      %v1950 = vpop.f32.mrf.mxu0
      %v1951 = vadd.f32 0.0, %v1950
      %v1952 = vpop.f32.mrf.mxu0
      %1953 = vmatprep.mubr.f32.mxu0 0.0
      %1954 = vmatmul.mubr.f32.gmra.mxu0 %v1593
      %v1955 = vpop.f32.mrf.mxu0
      %v1956 = vadd.f32 0.0, %v1955
      %v1957 = vpop.f32.mrf.mxu0
      %1958 = vmatprep.mubr.f32.mxu0 0.0
      %1959 = vmatmul.mubr.f32.gmra.mxu0 %v1594
      %v1960 = vpop.f32.mrf.mxu0
      %v1961 = vadd.f32 0.0, %v1960
      %v1962 = vpop.f32.mrf.mxu0
      %1963 = vmatprep.mubr.f32.mxu0 0.0
      %1964 = vmatmul.mubr.f32.gmra.mxu0 %v1595
      %v1965 = vpop.f32.mrf.mxu0
      %v1966 = vadd.f32 0.0, %v1965
      %v1967 = vpop.f32.mrf.mxu0
      %1968 = vmatprep.mubr.f32.mxu0 0.0
      %1969 = vmatmul.mubr.f32.gmra.mxu0 %v1596
      %v1970 = vpop.f32.mrf.mxu0
      %v1971 = vadd.f32 0.0, %v1970
      %v1972 = vpop.f32.mrf.mxu0
      %1973 = vmatprep.mubr.f32.mxu0 0.0
      %1974 = vmatmul.mubr.f32.gmra.mxu0 %v1597
      %v1975 = vpop.f32.mrf.mxu0
      %v1976 = vadd.f32 0.0, %v1975
      %v1977 = vpop.f32.mrf.mxu0
      %1978 = vmatprep.mubr.f32.mxu0 0.0
      %1979 = vmatmul.mubr.f32.gmra.mxu0 %v1598
      %v1980 = vpop.f32.mrf.mxu0
      %v1981 = vadd.f32 0.0, %v1980
      %v1982 = vpop.f32.mrf.mxu0
      %1983 = vmatprep.mubr.f32.mxu0 0.0
      %1984 = vmatmul.mubr.f32.gmra.mxu0 %v1599
      %v1985 = vpop.f32.mrf.mxu0
      %v1986 = vadd.f32 0.0, %v1985
      %v1987 = vpop.f32.mrf.mxu0
      %1988 = vmatprep.mubr.f32.mxu0 0.0
      %1989 = vmatmul.mubr.f32.gmra.mxu0 %v1600
      %v1990 = vpop.f32.mrf.mxu0
      %v1991 = vadd.f32 0.0, %v1990
      %v1992 = vpop.f32.mrf.mxu0
      %1993 = vmatprep.mubr.f32.mxu0 0.0
      %1994 = vmatmul.mubr.f32.gmra.mxu0 %v1601
      %v1995 = vpop.f32.mrf.mxu0
      %v1996 = vadd.f32 0.0, %v1995
      %v1997 = vpop.f32.mrf.mxu0
      %1998 = vmatprep.mubr.f32.mxu0 0.0
      %1999 = vmatmul.mubr.f32.gmra.mxu0 %v1602
      %v2000 = vpop.f32.mrf.mxu0
      %v2001 = vadd.f32 0.0, %v2000
      %v2002 = vpop.f32.mrf.mxu0
      %2003 = vmatprep.mubr.f32.mxu0 0.0
      %2004 = vmatmul.mubr.f32.gmra.mxu0 %v1603
      %v2005 = vpop.f32.mrf.mxu0
      %v2006 = vadd.f32 0.0, %v2005
      %v2007 = vpop.f32.mrf.mxu0
      %2008 = vmatprep.mubr.f32.mxu0 0.0
      %2009 = vmatmul.mubr.f32.gmra.mxu0 %v1604
      %v2010 = vpop.f32.mrf.mxu0
      %v2011 = vadd.f32 0.0, %v2010
      %v2012 = vpop.f32.mrf.mxu0
      %2013 = vmatprep.mubr.f32.mxu0 0.0
      %2014 = vmatmul.mubr.f32.gmra.mxu0 %v1605
      %v2015 = vpop.f32.mrf.mxu0
      %v2016 = vadd.f32 0.0, %v2015
      %v2017 = vpop.f32.mrf.mxu0
      %2018 = vmatprep.mubr.f32.mxu0 0.0
      %2019 = vmatmul.mubr.f32.gmra.mxu0 %v1606
      %v2020 = vpop.f32.mrf.mxu0
      %v2021 = vadd.f32 0.0, %v2020
      %v2022 = vpop.f32.mrf.mxu0
      %2023 = vdwg.mxu0
      %2024 = vmatprep.subr.mxu0 0.0
      %2025 = vmatpush1.msra.mxu0 %v1622
      %2026 = vmatprep.subr.mxu0 0.0
      %2027 = vmatpush1.msra.mxu0 %v1621
      %2028 = vmatprep.subr.mxu0 0.0
      %2029 = vmatpush1.msra.mxu0 %v1620
      %2030 = vmatprep.subr.mxu0 0.0
      %2031 = vmatpush1.msra.mxu0 %v1619
      %2032 = vmatprep.subr.mxu0 0.0
      %2033 = vmatpush1.msra.mxu0 %v1618
      %2034 = vmatprep.subr.mxu0 0.0
      %2035 = vmatpush1.msra.mxu0 %v1617
      %2036 = vmatprep.subr.mxu0 0.0
      %2037 = vmatpush1.msra.mxu0 %v1616
      %2038 = vmatprep.subr.mxu0 0.0
      %2039 = vmatpush1.msra.mxu0 %v1615
      %2040 = vmatprep.subr.mxu0 0.0
      %2041 = vmatpush1.msra.mxu0 %v1614
      %2042 = vmatprep.subr.mxu0 0.0
      %2043 = vmatpush1.msra.mxu0 %v1613
      %2044 = vmatprep.subr.mxu0 0.0
      %2045 = vmatpush1.msra.mxu0 %v1612
      %2046 = vmatprep.subr.mxu0 0.0
      %2047 = vmatpush1.msra.mxu0 %v1611
      %2048 = vmatprep.subr.mxu0 0.0
      %2049 = vmatpush1.msra.mxu0 %v1610
      %2050 = vmatprep.subr.mxu0 0.0
      %2051 = vmatpush1.msra.mxu0 %v1609
      %2052 = vmatprep.subr.mxu0 0.0
      %2053 = vmatpush1.msra.mxu0 %v1608
      %2054 = vmatprep.subr.mxu0 0.0
      %2055 = vmatpush1.msra.mxu0 %v1607
      %2056 = vmatprep.subr.mxu0 0.0
      %2057 = vmatpush2.msra.mxu0 0.0
      %2058 = vmatprep.subr.mxu0 0.0
      %2059 = vmatpush2.msra.mxu0 0.0
      %2060 = vmatprep.subr.mxu0 0.0
      %2061 = vmatpush2.msra.mxu0 0.0
      %2062 = vmatprep.subr.mxu0 0.0
      %2063 = vmatpush2.msra.mxu0 0.0
      %2064 = vmatprep.subr.mxu0 0.0
      %2065 = vmatpush2.msra.mxu0 0.0
      %2066 = vmatprep.subr.mxu0 0.0
      %2067 = vmatpush2.msra.mxu0 0.0
      %2068 = vmatprep.subr.mxu0 0.0
      %2069 = vmatpush2.msra.mxu0 0.0
      %2070 = vmatprep.subr.mxu0 0.0
      %2071 = vmatpush2.msra.mxu0 0.0
      %2072 = vmatprep.subr.mxu0 0.0
      %2073 = vmatpush2.msra.mxu0 0.0
      %2074 = vmatprep.subr.mxu0 0.0
      %2075 = vmatpush2.msra.mxu0 0.0
      %2076 = vmatprep.subr.mxu0 0.0
      %2077 = vmatpush2.msra.mxu0 0.0
      %2078 = vmatprep.subr.mxu0 0.0
      %2079 = vmatpush2.msra.mxu0 0.0
      %2080 = vmatprep.subr.mxu0 0.0
      %2081 = vmatpush2.msra.mxu0 0.0
      %2082 = vmatprep.subr.mxu0 0.0
      %2083 = vmatpush2.msra.mxu0 0.0
      %2084 = vmatprep.subr.mxu0 0.0
      %2085 = vmatpush2.msra.mxu0 0.0
      %2086 = vmatprep.subr.mxu0 0.0
      %2087 = vmatpush2.msra.mxu0 0.0
      %2088 = vmatprep.mubr.f32.mxu0 0.0
      %2089 = vmatmul.mubr.f32.gmra.mxu0 %v1410
      %v2090 = vpop.f32.mrf.mxu0
      %v2091 = vadd.f32 %v1706, %v2090
      %v2092 = vpop.f32.mrf.mxu0
      %2093 = vmatprep.mubr.f32.mxu0 0.0
      %2094 = vmatmul.mubr.f32.gmra.mxu0 %v1411
      %v2095 = vpop.f32.mrf.mxu0
      %v2096 = vadd.f32 %v1711, %v2095
      %v2097 = vpop.f32.mrf.mxu0
      %2098 = vmatprep.mubr.f32.mxu0 0.0
      %2099 = vmatmul.mubr.f32.gmra.mxu0 %v1412
      %v2100 = vpop.f32.mrf.mxu0
      %v2101 = vadd.f32 %v1716, %v2100
      %v2102 = vpop.f32.mrf.mxu0
      %2103 = vmatprep.mubr.f32.mxu0 0.0
      %2104 = vmatmul.mubr.f32.gmra.mxu0 %v1413
      %v2105 = vpop.f32.mrf.mxu0
      %v2106 = vadd.f32 %v1721, %v2105
      %v2107 = vpop.f32.mrf.mxu0
      %2108 = vmatprep.mubr.f32.mxu0 0.0
      %2109 = vmatmul.mubr.f32.gmra.mxu0 %v1414
      %v2110 = vpop.f32.mrf.mxu0
      %v2111 = vadd.f32 %v1726, %v2110
      %v2112 = vpop.f32.mrf.mxu0
      %2113 = vmatprep.mubr.f32.mxu0 0.0
      %2114 = vmatmul.mubr.f32.gmra.mxu0 %v1415
      %v2115 = vpop.f32.mrf.mxu0
      %v2116 = vadd.f32 %v1731, %v2115
      %v2117 = vpop.f32.mrf.mxu0
      %2118 = vmatprep.mubr.f32.mxu0 0.0
      %2119 = vmatmul.mubr.f32.gmra.mxu0 %v1416
      %v2120 = vpop.f32.mrf.mxu0
      %v2121 = vadd.f32 %v1736, %v2120
      %v2122 = vpop.f32.mrf.mxu0
      %2123 = vmatprep.mubr.f32.mxu0 0.0
      %2124 = vmatmul.mubr.f32.gmra.mxu0 %v1417
      %v2125 = vpop.f32.mrf.mxu0
      %v2126 = vadd.f32 %v1741, %v2125
      %v2127 = vpop.f32.mrf.mxu0
      %2128 = vmatprep.mubr.f32.mxu0 0.0
      %2129 = vmatmul.mubr.f32.gmra.mxu0 %v1418
      %v2130 = vpop.f32.mrf.mxu0
      %v2131 = vadd.f32 %v1746, %v2130
      %v2132 = vpop.f32.mrf.mxu0
      %2133 = vmatprep.mubr.f32.mxu0 0.0
      %2134 = vmatmul.mubr.f32.gmra.mxu0 %v1419
      %v2135 = vpop.f32.mrf.mxu0
      %v2136 = vadd.f32 %v1751, %v2135
      %v2137 = vpop.f32.mrf.mxu0
      %2138 = vmatprep.mubr.f32.mxu0 0.0
      %2139 = vmatmul.mubr.f32.gmra.mxu0 %v1420
      %v2140 = vpop.f32.mrf.mxu0
      %v2141 = vadd.f32 %v1756, %v2140
      %v2142 = vpop.f32.mrf.mxu0
      %2143 = vmatprep.mubr.f32.mxu0 0.0
      %2144 = vmatmul.mubr.f32.gmra.mxu0 %v1421
      %v2145 = vpop.f32.mrf.mxu0
      %v2146 = vadd.f32 %v1761, %v2145
      %v2147 = vpop.f32.mrf.mxu0
      %2148 = vmatprep.mubr.f32.mxu0 0.0
      %2149 = vmatmul.mubr.f32.gmra.mxu0 %v1422
      %v2150 = vpop.f32.mrf.mxu0
      %v2151 = vadd.f32 %v1766, %v2150
      %v2152 = vpop.f32.mrf.mxu0
      %2153 = vmatprep.mubr.f32.mxu0 0.0
      %2154 = vmatmul.mubr.f32.gmra.mxu0 %v1423
      %v2155 = vpop.f32.mrf.mxu0
      %v2156 = vadd.f32 %v1771, %v2155
      %v2157 = vpop.f32.mrf.mxu0
      %2158 = vmatprep.mubr.f32.mxu0 0.0
      %2159 = vmatmul.mubr.f32.gmra.mxu0 %v1424
      %v2160 = vpop.f32.mrf.mxu0
      %v2161 = vadd.f32 %v1776, %v2160
      %v2162 = vpop.f32.mrf.mxu0
      %2163 = vmatprep.mubr.f32.mxu0 0.0
      %2164 = vmatmul.mubr.f32.gmra.mxu0 %v1425
      %v2165 = vpop.f32.mrf.mxu0
      %v2166 = vadd.f32 %v1781, %v2165
      %v2167 = vpop.f32.mrf.mxu0
      %2168 = vmatprep.mubr.f32.mxu0 0.0
      %2169 = vmatmul.mubr.f32.gmra.mxu0 %v1426
      %v2170 = vpop.f32.mrf.mxu0
      %v2171 = vadd.f32 %v1786, %v2170
      %v2172 = vpop.f32.mrf.mxu0
      %2173 = vmatprep.mubr.f32.mxu0 0.0
      %2174 = vmatmul.mubr.f32.gmra.mxu0 %v1427
      %v2175 = vpop.f32.mrf.mxu0
      %v2176 = vadd.f32 %v1791, %v2175
      %v2177 = vpop.f32.mrf.mxu0
      %2178 = vmatprep.mubr.f32.mxu0 0.0
      %2179 = vmatmul.mubr.f32.gmra.mxu0 %v1428
      %v2180 = vpop.f32.mrf.mxu0
      %v2181 = vadd.f32 %v1796, %v2180
      %v2182 = vpop.f32.mrf.mxu0
      %2183 = vmatprep.mubr.f32.mxu0 0.0
      %2184 = vmatmul.mubr.f32.gmra.mxu0 %v1429
      %v2185 = vpop.f32.mrf.mxu0
      %v2186 = vadd.f32 %v1801, %v2185
      %v2187 = vpop.f32.mrf.mxu0
      %2188 = vmatprep.mubr.f32.mxu0 0.0
      %2189 = vmatmul.mubr.f32.gmra.mxu0 %v1430
      %v2190 = vpop.f32.mrf.mxu0
      %v2191 = vadd.f32 %v1806, %v2190
      %v2192 = vpop.f32.mrf.mxu0
      %2193 = vmatprep.mubr.f32.mxu0 0.0
      %2194 = vmatmul.mubr.f32.gmra.mxu0 %v1431
      %v2195 = vpop.f32.mrf.mxu0
      %v2196 = vadd.f32 %v1811, %v2195
      %v2197 = vpop.f32.mrf.mxu0
      %2198 = vmatprep.mubr.f32.mxu0 0.0
      %2199 = vmatmul.mubr.f32.gmra.mxu0 %v1432
      %v2200 = vpop.f32.mrf.mxu0
      %v2201 = vadd.f32 %v1816, %v2200
      %v2202 = vpop.f32.mrf.mxu0
      %2203 = vmatprep.mubr.f32.mxu0 0.0
      %2204 = vmatmul.mubr.f32.gmra.mxu0 %v1433
      %v2205 = vpop.f32.mrf.mxu0
      %v2206 = vadd.f32 %v1821, %v2205
      %v2207 = vpop.f32.mrf.mxu0
      %2208 = vmatprep.mubr.f32.mxu0 0.0
      %2209 = vmatmul.mubr.f32.gmra.mxu0 %v1434
      %v2210 = vpop.f32.mrf.mxu0
      %v2211 = vadd.f32 %v1826, %v2210
      %v2212 = vpop.f32.mrf.mxu0
      %2213 = vmatprep.mubr.f32.mxu0 0.0
      %2214 = vmatmul.mubr.f32.gmra.mxu0 %v1435
      %v2215 = vpop.f32.mrf.mxu0
      %v2216 = vadd.f32 %v1831, %v2215
      %v2217 = vpop.f32.mrf.mxu0
      %2218 = vmatprep.mubr.f32.mxu0 0.0
      %2219 = vmatmul.mubr.f32.gmra.mxu0 %v1436
      %v2220 = vpop.f32.mrf.mxu0
      %v2221 = vadd.f32 %v1836, %v2220
      %v2222 = vpop.f32.mrf.mxu0
      %2223 = vmatprep.mubr.f32.mxu0 0.0
      %2224 = vmatmul.mubr.f32.gmra.mxu0 %v1437
      %v2225 = vpop.f32.mrf.mxu0
      %v2226 = vadd.f32 %v1841, %v2225
      %v2227 = vpop.f32.mrf.mxu0
      %2228 = vmatprep.mubr.f32.mxu0 0.0
      %2229 = vmatmul.mubr.f32.gmra.mxu0 %v1438
      %v2230 = vpop.f32.mrf.mxu0
      %v2231 = vadd.f32 %v1846, %v2230
      %v2232 = vpop.f32.mrf.mxu0
      %2233 = vmatprep.mubr.f32.mxu0 0.0
      %2234 = vmatmul.mubr.f32.gmra.mxu0 %v1439
      %v2235 = vpop.f32.mrf.mxu0
      %v2236 = vadd.f32 %v1851, %v2235
      %v2237 = vpop.f32.mrf.mxu0
      %2238 = vmatprep.mubr.f32.mxu0 0.0
      %2239 = vmatmul.mubr.f32.gmra.mxu0 %v1440
      %v2240 = vpop.f32.mrf.mxu0
      %v2241 = vadd.f32 %v1856, %v2240
      %v2242 = vpop.f32.mrf.mxu0
      %2243 = vmatprep.mubr.f32.mxu0 0.0
      %2244 = vmatmul.mubr.f32.gmra.mxu0 %v1441
      %v2245 = vpop.f32.mrf.mxu0
      %v2246 = vadd.f32 %v1861, %v2245
      %v2247 = vpop.f32.mrf.mxu0
      %2248 = vmatprep.mubr.f32.mxu0 0.0
      %2249 = vmatmul.mubr.f32.gmra.mxu0 %v1442
      %v2250 = vpop.f32.mrf.mxu0
      %v2251 = vadd.f32 %v1866, %v2250
      %v2252 = vpop.f32.mrf.mxu0
      %2253 = vmatprep.mubr.f32.mxu0 0.0
      %2254 = vmatmul.mubr.f32.gmra.mxu0 %v1443
      %v2255 = vpop.f32.mrf.mxu0
      %v2256 = vadd.f32 %v1871, %v2255
      %v2257 = vpop.f32.mrf.mxu0
      %2258 = vmatprep.mubr.f32.mxu0 0.0
      %2259 = vmatmul.mubr.f32.gmra.mxu0 %v1444
      %v2260 = vpop.f32.mrf.mxu0
      %v2261 = vadd.f32 %v1876, %v2260
      %v2262 = vpop.f32.mrf.mxu0
      %2263 = vmatprep.mubr.f32.mxu0 0.0
      %2264 = vmatmul.mubr.f32.gmra.mxu0 %v1445
      %v2265 = vpop.f32.mrf.mxu0
      %v2266 = vadd.f32 %v1881, %v2265
      %v2267 = vpop.f32.mrf.mxu0
      %2268 = vmatprep.mubr.f32.mxu0 0.0
      %2269 = vmatmul.mubr.f32.gmra.mxu0 %v1446
      %v2270 = vpop.f32.mrf.mxu0
      %v2271 = vadd.f32 %v1886, %v2270
      %v2272 = vpop.f32.mrf.mxu0
      %2273 = vmatprep.mubr.f32.mxu0 0.0
      %2274 = vmatmul.mubr.f32.gmra.mxu0 %v1447
      %v2275 = vpop.f32.mrf.mxu0
      %v2276 = vadd.f32 %v1891, %v2275
      %v2277 = vpop.f32.mrf.mxu0
      %2278 = vmatprep.mubr.f32.mxu0 0.0
      %2279 = vmatmul.mubr.f32.gmra.mxu0 %v1448
      %v2280 = vpop.f32.mrf.mxu0
      %v2281 = vadd.f32 %v1896, %v2280
      %v2282 = vpop.f32.mrf.mxu0
      %2283 = vmatprep.mubr.f32.mxu0 0.0
      %2284 = vmatmul.mubr.f32.gmra.mxu0 %v1449
      %v2285 = vpop.f32.mrf.mxu0
      %v2286 = vadd.f32 %v1901, %v2285
      %v2287 = vpop.f32.mrf.mxu0
      %2288 = vmatprep.mubr.f32.mxu0 0.0
      %2289 = vmatmul.mubr.f32.gmra.mxu0 %v1450
      %v2290 = vpop.f32.mrf.mxu0
      %v2291 = vadd.f32 %v1906, %v2290
      %v2292 = vpop.f32.mrf.mxu0
      %2293 = vmatprep.mubr.f32.mxu0 0.0
      %2294 = vmatmul.mubr.f32.gmra.mxu0 %v1451
      %v2295 = vpop.f32.mrf.mxu0
      %v2296 = vadd.f32 %v1911, %v2295
      %v2297 = vpop.f32.mrf.mxu0
      %2298 = vmatprep.mubr.f32.mxu0 0.0
      %2299 = vmatmul.mubr.f32.gmra.mxu0 %v1452
      %v2300 = vpop.f32.mrf.mxu0
      %v2301 = vadd.f32 %v1916, %v2300
      %v2302 = vpop.f32.mrf.mxu0
      %2303 = vmatprep.mubr.f32.mxu0 0.0
      %2304 = vmatmul.mubr.f32.gmra.mxu0 %v1453
      %v2305 = vpop.f32.mrf.mxu0
      %v2306 = vadd.f32 %v1921, %v2305
      %v2307 = vpop.f32.mrf.mxu0
      %2308 = vmatprep.mubr.f32.mxu0 0.0
      %2309 = vmatmul.mubr.f32.gmra.mxu0 %v1454
      %v2310 = vpop.f32.mrf.mxu0
      %v2311 = vadd.f32 %v1926, %v2310
      %v2312 = vpop.f32.mrf.mxu0
      %2313 = vmatprep.mubr.f32.mxu0 0.0
      %2314 = vmatmul.mubr.f32.gmra.mxu0 %v1455
      %v2315 = vpop.f32.mrf.mxu0
      %v2316 = vadd.f32 %v1931, %v2315
      %v2317 = vpop.f32.mrf.mxu0
      %2318 = vmatprep.mubr.f32.mxu0 0.0
      %2319 = vmatmul.mubr.f32.gmra.mxu0 %v1456
      %v2320 = vpop.f32.mrf.mxu0
      %v2321 = vadd.f32 %v1936, %v2320
      %v2322 = vpop.f32.mrf.mxu0
      %2323 = vmatprep.mubr.f32.mxu0 0.0
      %2324 = vmatmul.mubr.f32.gmra.mxu0 %v1457
      %v2325 = vpop.f32.mrf.mxu0
      %v2326 = vadd.f32 %v1941, %v2325
      %v2327 = vpop.f32.mrf.mxu0
      %2328 = vmatprep.mubr.f32.mxu0 0.0
      %2329 = vmatmul.mubr.f32.gmra.mxu0 %v1458
      %v2330 = vpop.f32.mrf.mxu0
      %v2331 = vadd.f32 %v1946, %v2330
      %v2332 = vpop.f32.mrf.mxu0
      %2333 = vmatprep.mubr.f32.mxu0 0.0
      %2334 = vmatmul.mubr.f32.gmra.mxu0 %v1459
      %v2335 = vpop.f32.mrf.mxu0
      %v2336 = vadd.f32 %v1951, %v2335
      %v2337 = vpop.f32.mrf.mxu0
      %2338 = vmatprep.mubr.f32.mxu0 0.0
      %2339 = vmatmul.mubr.f32.gmra.mxu0 %v1460
      %v2340 = vpop.f32.mrf.mxu0
      %v2341 = vadd.f32 %v1956, %v2340
      %v2342 = vpop.f32.mrf.mxu0
      %2343 = vmatprep.mubr.f32.mxu0 0.0
      %2344 = vmatmul.mubr.f32.gmra.mxu0 %v1461
      %v2345 = vpop.f32.mrf.mxu0
      %v2346 = vadd.f32 %v1961, %v2345
      %v2347 = vpop.f32.mrf.mxu0
      %2348 = vmatprep.mubr.f32.mxu0 0.0
      %2349 = vmatmul.mubr.f32.gmra.mxu0 %v1462
      %v2350 = vpop.f32.mrf.mxu0
      %v2351 = vadd.f32 %v1966, %v2350
      %v2352 = vpop.f32.mrf.mxu0
      %2353 = vmatprep.mubr.f32.mxu0 0.0
      %2354 = vmatmul.mubr.f32.gmra.mxu0 %v1463
      %v2355 = vpop.f32.mrf.mxu0
      %v2356 = vadd.f32 %v1971, %v2355
      %v2357 = vpop.f32.mrf.mxu0
      %2358 = vmatprep.mubr.f32.mxu0 0.0
      %2359 = vmatmul.mubr.f32.gmra.mxu0 %v1464
      %v2360 = vpop.f32.mrf.mxu0
      %v2361 = vadd.f32 %v1976, %v2360
      %v2362 = vpop.f32.mrf.mxu0
      %2363 = vmatprep.mubr.f32.mxu0 0.0
      %2364 = vmatmul.mubr.f32.gmra.mxu0 %v1465
      %v2365 = vpop.f32.mrf.mxu0
      %v2366 = vadd.f32 %v1981, %v2365
      %v2367 = vpop.f32.mrf.mxu0
      %2368 = vmatprep.mubr.f32.mxu0 0.0
      %2369 = vmatmul.mubr.f32.gmra.mxu0 %v1466
      %v2370 = vpop.f32.mrf.mxu0
      %v2371 = vadd.f32 %v1986, %v2370
      %v2372 = vpop.f32.mrf.mxu0
      %2373 = vmatprep.mubr.f32.mxu0 0.0
      %2374 = vmatmul.mubr.f32.gmra.mxu0 %v1467
      %v2375 = vpop.f32.mrf.mxu0
      %v2376 = vadd.f32 %v1991, %v2375
      %v2377 = vpop.f32.mrf.mxu0
      %2378 = vmatprep.mubr.f32.mxu0 0.0
      %2379 = vmatmul.mubr.f32.gmra.mxu0 %v1468
      %v2380 = vpop.f32.mrf.mxu0
      %v2381 = vadd.f32 %v1996, %v2380
      %v2382 = vpop.f32.mrf.mxu0
      %2383 = vmatprep.mubr.f32.mxu0 0.0
      %2384 = vmatmul.mubr.f32.gmra.mxu0 %v1469
      %v2385 = vpop.f32.mrf.mxu0
      %v2386 = vadd.f32 %v2001, %v2385
      %v2387 = vpop.f32.mrf.mxu0
      %2388 = vmatprep.mubr.f32.mxu0 0.0
      %2389 = vmatmul.mubr.f32.gmra.mxu0 %v1470
      %v2390 = vpop.f32.mrf.mxu0
      %v2391 = vadd.f32 %v2006, %v2390
      %v2392 = vpop.f32.mrf.mxu0
      %2393 = vmatprep.mubr.f32.mxu0 0.0
      %2394 = vmatmul.mubr.f32.gmra.mxu0 %v1471
      %v2395 = vpop.f32.mrf.mxu0
      %v2396 = vadd.f32 %v2011, %v2395
      %v2397 = vpop.f32.mrf.mxu0
      %2398 = vmatprep.mubr.f32.mxu0 0.0
      %2399 = vmatmul.mubr.f32.gmra.mxu0 %v1472
      %v2400 = vpop.f32.mrf.mxu0
      %v2401 = vadd.f32 %v2016, %v2400
      %v2402 = vpop.f32.mrf.mxu0
      %2403 = vmatprep.mubr.f32.mxu0 0.0
      %2404 = vmatmul.mubr.f32.gmra.mxu0 %v1473
      %v2405 = vpop.f32.mrf.mxu0
      %v2406 = vadd.f32 %v2021, %v2405
      %v2407 = vpop.f32.mrf.mxu0
      %2408 = vdwg.mxu0
      %v2409 = vld [vmem:[%s4] sm:$0x1]
      %v2411 = vlaneseq
      %v2412 = vshrl.u32 %v2411, 7
      %v2413 = vsub.s32 0, %v2412
      %v2414 = vrot.slane %v2409, %v2413
      %v2416 = vadd.f32 %v2091, %v2414
      %v2417 = vadd.f32 %v2096, %v2414
      %v2418 = vadd.f32 %v2101, %v2414
      %v2419 = vadd.f32 %v2106, %v2414
      %v2420 = vadd.f32 %v2111, %v2414
      %v2421 = vadd.f32 %v2116, %v2414
      %v2422 = vadd.f32 %v2121, %v2414
      %v2423 = vadd.f32 %v2126, %v2414
      %v2424 = vadd.f32 %v2131, %v2414
      %v2425 = vadd.f32 %v2136, %v2414
      %v2426 = vadd.f32 %v2141, %v2414
      %v2427 = vadd.f32 %v2146, %v2414
      %v2428 = vadd.f32 %v2151, %v2414
      %v2429 = vadd.f32 %v2156, %v2414
      %v2430 = vadd.f32 %v2161, %v2414
      %v2431 = vadd.f32 %v2166, %v2414
      %v2432 = vadd.f32 %v2171, %v2414
      %v2433 = vadd.f32 %v2176, %v2414
      %v2434 = vadd.f32 %v2181, %v2414
      %v2435 = vadd.f32 %v2186, %v2414
      %v2436 = vadd.f32 %v2191, %v2414
      %v2437 = vadd.f32 %v2196, %v2414
      %v2438 = vadd.f32 %v2201, %v2414
      %v2439 = vadd.f32 %v2206, %v2414
      %v2440 = vadd.f32 %v2211, %v2414
      %v2441 = vadd.f32 %v2216, %v2414
      %v2442 = vadd.f32 %v2221, %v2414
      %v2443 = vadd.f32 %v2226, %v2414
      %v2444 = vadd.f32 %v2231, %v2414
      %v2445 = vadd.f32 %v2236, %v2414
      %v2446 = vadd.f32 %v2241, %v2414
      %v2447 = vadd.f32 %v2246, %v2414
      %v2448 = vadd.f32 %v2251, %v2414
      %v2449 = vadd.f32 %v2256, %v2414
      %v2450 = vadd.f32 %v2261, %v2414
      %v2451 = vadd.f32 %v2266, %v2414
      %v2452 = vadd.f32 %v2271, %v2414
      %v2453 = vadd.f32 %v2276, %v2414
      %v2454 = vadd.f32 %v2281, %v2414
      %v2455 = vadd.f32 %v2286, %v2414
      %v2456 = vadd.f32 %v2291, %v2414
      %v2457 = vadd.f32 %v2296, %v2414
      %v2458 = vadd.f32 %v2301, %v2414
      %v2459 = vadd.f32 %v2306, %v2414
      %v2460 = vadd.f32 %v2311, %v2414
      %v2461 = vadd.f32 %v2316, %v2414
      %v2462 = vadd.f32 %v2321, %v2414
      %v2463 = vadd.f32 %v2326, %v2414
      %v2464 = vadd.f32 %v2331, %v2414
      %v2465 = vadd.f32 %v2336, %v2414
      %v2466 = vadd.f32 %v2341, %v2414
      %v2467 = vadd.f32 %v2346, %v2414
      %v2468 = vadd.f32 %v2351, %v2414
      %v2469 = vadd.f32 %v2356, %v2414
      %v2470 = vadd.f32 %v2361, %v2414
      %v2471 = vadd.f32 %v2366, %v2414
      %v2472 = vadd.f32 %v2371, %v2414
      %v2473 = vadd.f32 %v2376, %v2414
      %v2474 = vadd.f32 %v2381, %v2414
      %v2475 = vadd.f32 %v2386, %v2414
      %v2476 = vadd.f32 %v2391, %v2414
      %v2477 = vadd.f32 %v2396, %v2414
      %v2478 = vadd.f32 %v2401, %v2414
      %v2479 = vadd.f32 %v2406, %v2414
      %v2480 = vmax.f32 %v2416, 0.0
      %v2481 = vmax.f32 %v2417, 0.0
      %v2482 = vmax.f32 %v2418, 0.0
      %v2483 = vmax.f32 %v2419, 0.0
      %v2484 = vmax.f32 %v2420, 0.0
      %v2485 = vmax.f32 %v2421, 0.0
      %v2486 = vmax.f32 %v2422, 0.0
      %v2487 = vmax.f32 %v2423, 0.0
      %v2488 = vmax.f32 %v2424, 0.0
      %v2489 = vmax.f32 %v2425, 0.0
      %v2490 = vmax.f32 %v2426, 0.0
      %v2491 = vmax.f32 %v2427, 0.0
      %v2492 = vmax.f32 %v2428, 0.0
      %v2493 = vmax.f32 %v2429, 0.0
      %v2494 = vmax.f32 %v2430, 0.0
      %v2495 = vmax.f32 %v2431, 0.0
      %v2496 = vmax.f32 %v2432, 0.0
      %v2497 = vmax.f32 %v2433, 0.0
      %v2498 = vmax.f32 %v2434, 0.0
      %v2499 = vmax.f32 %v2435, 0.0
      %v2500 = vmax.f32 %v2436, 0.0
      %v2501 = vmax.f32 %v2437, 0.0
      %v2502 = vmax.f32 %v2438, 0.0
      %v2503 = vmax.f32 %v2439, 0.0
      %v2504 = vmax.f32 %v2440, 0.0
      %v2505 = vmax.f32 %v2441, 0.0
      %v2506 = vmax.f32 %v2442, 0.0
      %v2507 = vmax.f32 %v2443, 0.0
      %v2508 = vmax.f32 %v2444, 0.0
      %v2509 = vmax.f32 %v2445, 0.0
      %v2510 = vmax.f32 %v2446, 0.0
      %v2511 = vmax.f32 %v2447, 0.0
      %v2512 = vmax.f32 %v2448, 0.0
      %v2513 = vmax.f32 %v2449, 0.0
      %v2514 = vmax.f32 %v2450, 0.0
      %v2515 = vmax.f32 %v2451, 0.0
      %v2516 = vmax.f32 %v2452, 0.0
      %v2517 = vmax.f32 %v2453, 0.0
      %v2518 = vmax.f32 %v2454, 0.0
      %v2519 = vmax.f32 %v2455, 0.0
      %v2520 = vmax.f32 %v2456, 0.0
      %v2521 = vmax.f32 %v2457, 0.0
      %v2522 = vmax.f32 %v2458, 0.0
      %v2523 = vmax.f32 %v2459, 0.0
      %v2524 = vmax.f32 %v2460, 0.0
      %v2525 = vmax.f32 %v2461, 0.0
      %v2526 = vmax.f32 %v2462, 0.0
      %v2527 = vmax.f32 %v2463, 0.0
      %v2528 = vmax.f32 %v2464, 0.0
      %v2529 = vmax.f32 %v2465, 0.0
      %v2530 = vmax.f32 %v2466, 0.0
      %v2531 = vmax.f32 %v2467, 0.0
      %v2532 = vmax.f32 %v2468, 0.0
      %v2533 = vmax.f32 %v2469, 0.0
      %v2534 = vmax.f32 %v2470, 0.0
      %v2535 = vmax.f32 %v2471, 0.0
      %v2536 = vmax.f32 %v2472, 0.0
      %v2537 = vmax.f32 %v2473, 0.0
      %v2538 = vmax.f32 %v2474, 0.0
      %v2539 = vmax.f32 %v2475, 0.0
      %v2540 = vmax.f32 %v2476, 0.0
      %v2541 = vmax.f32 %v2477, 0.0
      %v2542 = vmax.f32 %v2478, 0.0
      %v2543 = vmax.f32 %v2479, 0.0
      %v2544 = vld [vmem:[#allocation11] sm:$0xff]
      %v2545 = vld [vmem:[#allocation11 + $0x8] sm:$0xff]
      %v2546 = vld [vmem:[#allocation11 + $0x10] sm:$0xff]
      %v2547 = vld [vmem:[#allocation11 + $0x18] sm:$0xff]
      %v2548 = vld [vmem:[#allocation11 + $0x20] sm:$0xff]
      %v2549 = vld [vmem:[#allocation11 + $0x28] sm:$0xff]
      %v2550 = vld [vmem:[#allocation11 + $0x30] sm:$0xff]
      %v2551 = vld [vmem:[#allocation11 + $0x38] sm:$0xff]
      %v2552 = vld [vmem:[#allocation11 + $0x40] sm:$0xff]
      %v2553 = vld [vmem:[#allocation11 + $0x48] sm:$0xff]
      %v2554 = vld [vmem:[#allocation11 + $0x50] sm:$0xff]
      %v2555 = vld [vmem:[#allocation11 + $0x58] sm:$0xff]
      %v2556 = vld [vmem:[#allocation11 + $0x60] sm:$0xff]
      %v2557 = vld [vmem:[#allocation11 + $0x68] sm:$0xff]
      %v2558 = vld [vmem:[#allocation11 + $0x70] sm:$0xff]
      %v2559 = vld [vmem:[#allocation11 + $0x78] sm:$0xff]
      %2560 = vmatprep.subr.mxu0 0.0
      %2561 = vmatpush1.msra.mxu0 %v2559
      %2562 = vmatprep.subr.mxu0 0.0
      %2563 = vmatpush1.msra.mxu0 %v2558
      %2564 = vmatprep.subr.mxu0 0.0
      %2565 = vmatpush1.msra.mxu0 %v2557
      %2566 = vmatprep.subr.mxu0 0.0
      %2567 = vmatpush1.msra.mxu0 %v2556
      %2568 = vmatprep.subr.mxu0 0.0
      %2569 = vmatpush1.msra.mxu0 %v2555
      %2570 = vmatprep.subr.mxu0 0.0
      %2571 = vmatpush1.msra.mxu0 %v2554
      %2572 = vmatprep.subr.mxu0 0.0
      %2573 = vmatpush1.msra.mxu0 %v2553
      %2574 = vmatprep.subr.mxu0 0.0
      %2575 = vmatpush1.msra.mxu0 %v2552
      %2576 = vmatprep.subr.mxu0 0.0
      %2577 = vmatpush1.msra.mxu0 %v2551
      %2578 = vmatprep.subr.mxu0 0.0
      %2579 = vmatpush1.msra.mxu0 %v2550
      %2580 = vmatprep.subr.mxu0 0.0
      %2581 = vmatpush1.msra.mxu0 %v2549
      %2582 = vmatprep.subr.mxu0 0.0
      %2583 = vmatpush1.msra.mxu0 %v2548
      %2584 = vmatprep.subr.mxu0 0.0
      %2585 = vmatpush1.msra.mxu0 %v2547
      %2586 = vmatprep.subr.mxu0 0.0
      %2587 = vmatpush1.msra.mxu0 %v2546
      %2588 = vmatprep.subr.mxu0 0.0
      %2589 = vmatpush1.msra.mxu0 %v2545
      %2590 = vmatprep.subr.mxu0 0.0
      %2591 = vmatpush1.msra.mxu0 %v2544
      %2592 = vmatprep.subr.mxu0 0.0
      %2593 = vmatpush2.msra.mxu0 0.0
      %2594 = vmatprep.subr.mxu0 0.0
      %2595 = vmatpush2.msra.mxu0 0.0
      %2596 = vmatprep.subr.mxu0 0.0
      %2597 = vmatpush2.msra.mxu0 0.0
      %2598 = vmatprep.subr.mxu0 0.0
      %2599 = vmatpush2.msra.mxu0 0.0
      %2600 = vmatprep.subr.mxu0 0.0
      %2601 = vmatpush2.msra.mxu0 0.0
      %2602 = vmatprep.subr.mxu0 0.0
      %2603 = vmatpush2.msra.mxu0 0.0
      %2604 = vmatprep.subr.mxu0 0.0
      %2605 = vmatpush2.msra.mxu0 0.0
      %2606 = vmatprep.subr.mxu0 0.0
      %2607 = vmatpush2.msra.mxu0 0.0
      %2608 = vmatprep.subr.mxu0 0.0
      %2609 = vmatpush2.msra.mxu0 0.0
      %2610 = vmatprep.subr.mxu0 0.0
      %2611 = vmatpush2.msra.mxu0 0.0
      %2612 = vmatprep.subr.mxu0 0.0
      %2613 = vmatpush2.msra.mxu0 0.0
      %2614 = vmatprep.subr.mxu0 0.0
      %2615 = vmatpush2.msra.mxu0 0.0
      %2616 = vmatprep.subr.mxu0 0.0
      %2617 = vmatpush2.msra.mxu0 0.0
      %2618 = vmatprep.subr.mxu0 0.0
      %2619 = vmatpush2.msra.mxu0 0.0
      %2620 = vmatprep.subr.mxu0 0.0
      %2621 = vmatpush2.msra.mxu0 0.0
      %2622 = vmatprep.subr.mxu0 0.0
      %2623 = vmatpush2.msra.mxu0 0.0
      %2624 = vmatprep.mubr.f32.mxu0 0.0
      %2625 = vmatmul.mubr.f32.gmra.mxu0 %v2480
      %v2626 = vpop.f32.mrf.mxu0
      %v2627 = vadd.f32 0.0, %v2626
      %v2628 = vpop.f32.mrf.mxu0
      %2629 = vmatprep.mubr.f32.mxu0 0.0
      %2630 = vmatmul.mubr.f32.gmra.mxu0 %v2481
      %v2631 = vpop.f32.mrf.mxu0
      %v2632 = vadd.f32 0.0, %v2631
      %v2633 = vpop.f32.mrf.mxu0
      %2634 = vmatprep.mubr.f32.mxu0 0.0
      %2635 = vmatmul.mubr.f32.gmra.mxu0 %v2482
      %v2636 = vpop.f32.mrf.mxu0
      %v2637 = vadd.f32 0.0, %v2636
      %v2638 = vpop.f32.mrf.mxu0
      %2639 = vmatprep.mubr.f32.mxu0 0.0
      %2640 = vmatmul.mubr.f32.gmra.mxu0 %v2483
      %v2641 = vpop.f32.mrf.mxu0
      %v2642 = vadd.f32 0.0, %v2641
      %v2643 = vpop.f32.mrf.mxu0
      %2644 = vmatprep.mubr.f32.mxu0 0.0
      %2645 = vmatmul.mubr.f32.gmra.mxu0 %v2484
      %v2646 = vpop.f32.mrf.mxu0
      %v2647 = vadd.f32 0.0, %v2646
      %v2648 = vpop.f32.mrf.mxu0
      %2649 = vmatprep.mubr.f32.mxu0 0.0
      %2650 = vmatmul.mubr.f32.gmra.mxu0 %v2485
      %v2651 = vpop.f32.mrf.mxu0
      %v2652 = vadd.f32 0.0, %v2651
      %v2653 = vpop.f32.mrf.mxu0
      %2654 = vmatprep.mubr.f32.mxu0 0.0
      %2655 = vmatmul.mubr.f32.gmra.mxu0 %v2486
      %v2656 = vpop.f32.mrf.mxu0
      %v2657 = vadd.f32 0.0, %v2656
      %v2658 = vpop.f32.mrf.mxu0
      %2659 = vmatprep.mubr.f32.mxu0 0.0
      %2660 = vmatmul.mubr.f32.gmra.mxu0 %v2487
      %v2661 = vpop.f32.mrf.mxu0
      %v2662 = vadd.f32 0.0, %v2661
      %v2663 = vpop.f32.mrf.mxu0
      %2664 = vmatprep.mubr.f32.mxu0 0.0
      %2665 = vmatmul.mubr.f32.gmra.mxu0 %v2488
      %v2666 = vpop.f32.mrf.mxu0
      %v2667 = vadd.f32 0.0, %v2666
      %v2668 = vpop.f32.mrf.mxu0
      %2669 = vmatprep.mubr.f32.mxu0 0.0
      %2670 = vmatmul.mubr.f32.gmra.mxu0 %v2489
      %v2671 = vpop.f32.mrf.mxu0
      %v2672 = vadd.f32 0.0, %v2671
      %v2673 = vpop.f32.mrf.mxu0
      %2674 = vmatprep.mubr.f32.mxu0 0.0
      %2675 = vmatmul.mubr.f32.gmra.mxu0 %v2490
      %v2676 = vpop.f32.mrf.mxu0
      %v2677 = vadd.f32 0.0, %v2676
      %v2678 = vpop.f32.mrf.mxu0
      %2679 = vmatprep.mubr.f32.mxu0 0.0
      %2680 = vmatmul.mubr.f32.gmra.mxu0 %v2491
      %v2681 = vpop.f32.mrf.mxu0
      %v2682 = vadd.f32 0.0, %v2681
      %v2683 = vpop.f32.mrf.mxu0
      %2684 = vmatprep.mubr.f32.mxu0 0.0
      %2685 = vmatmul.mubr.f32.gmra.mxu0 %v2492
      %v2686 = vpop.f32.mrf.mxu0
      %v2687 = vadd.f32 0.0, %v2686
      %v2688 = vpop.f32.mrf.mxu0
      %2689 = vmatprep.mubr.f32.mxu0 0.0
      %2690 = vmatmul.mubr.f32.gmra.mxu0 %v2493
      %v2691 = vpop.f32.mrf.mxu0
      %v2692 = vadd.f32 0.0, %v2691
      %v2693 = vpop.f32.mrf.mxu0
      %2694 = vmatprep.mubr.f32.mxu0 0.0
      %2695 = vmatmul.mubr.f32.gmra.mxu0 %v2494
      %v2696 = vpop.f32.mrf.mxu0
      %v2697 = vadd.f32 0.0, %v2696
      %v2698 = vpop.f32.mrf.mxu0
      %2699 = vmatprep.mubr.f32.mxu0 0.0
      %2700 = vmatmul.mubr.f32.gmra.mxu0 %v2495
      %v2701 = vpop.f32.mrf.mxu0
      %v2702 = vadd.f32 0.0, %v2701
      %v2703 = vpop.f32.mrf.mxu0
      %2704 = vmatprep.mubr.f32.mxu0 0.0
      %2705 = vmatmul.mubr.f32.gmra.mxu0 %v2496
      %v2706 = vpop.f32.mrf.mxu0
      %v2707 = vadd.f32 0.0, %v2706
      %v2708 = vpop.f32.mrf.mxu0
      %2709 = vmatprep.mubr.f32.mxu0 0.0
      %2710 = vmatmul.mubr.f32.gmra.mxu0 %v2497
      %v2711 = vpop.f32.mrf.mxu0
      %v2712 = vadd.f32 0.0, %v2711
      %v2713 = vpop.f32.mrf.mxu0
      %2714 = vmatprep.mubr.f32.mxu0 0.0
      %2715 = vmatmul.mubr.f32.gmra.mxu0 %v2498
      %v2716 = vpop.f32.mrf.mxu0
      %v2717 = vadd.f32 0.0, %v2716
      %v2718 = vpop.f32.mrf.mxu0
      %2719 = vmatprep.mubr.f32.mxu0 0.0
      %2720 = vmatmul.mubr.f32.gmra.mxu0 %v2499
      %v2721 = vpop.f32.mrf.mxu0
      %v2722 = vadd.f32 0.0, %v2721
      %v2723 = vpop.f32.mrf.mxu0
      %2724 = vmatprep.mubr.f32.mxu0 0.0
      %2725 = vmatmul.mubr.f32.gmra.mxu0 %v2500
      %v2726 = vpop.f32.mrf.mxu0
      %v2727 = vadd.f32 0.0, %v2726
      %v2728 = vpop.f32.mrf.mxu0
      %2729 = vmatprep.mubr.f32.mxu0 0.0
      %2730 = vmatmul.mubr.f32.gmra.mxu0 %v2501
      %v2731 = vpop.f32.mrf.mxu0
      %v2732 = vadd.f32 0.0, %v2731
      %v2733 = vpop.f32.mrf.mxu0
      %2734 = vmatprep.mubr.f32.mxu0 0.0
      %2735 = vmatmul.mubr.f32.gmra.mxu0 %v2502
      %v2736 = vpop.f32.mrf.mxu0
      %v2737 = vadd.f32 0.0, %v2736
      %v2738 = vpop.f32.mrf.mxu0
      %2739 = vmatprep.mubr.f32.mxu0 0.0
      %2740 = vmatmul.mubr.f32.gmra.mxu0 %v2503
      %v2741 = vpop.f32.mrf.mxu0
      %v2742 = vadd.f32 0.0, %v2741
      %v2743 = vpop.f32.mrf.mxu0
      %2744 = vmatprep.mubr.f32.mxu0 0.0
      %2745 = vmatmul.mubr.f32.gmra.mxu0 %v2504
      %v2746 = vpop.f32.mrf.mxu0
      %v2747 = vadd.f32 0.0, %v2746
      %v2748 = vpop.f32.mrf.mxu0
      %2749 = vmatprep.mubr.f32.mxu0 0.0
      %2750 = vmatmul.mubr.f32.gmra.mxu0 %v2505
      %v2751 = vpop.f32.mrf.mxu0
      %v2752 = vadd.f32 0.0, %v2751
      %v2753 = vpop.f32.mrf.mxu0
      %2754 = vmatprep.mubr.f32.mxu0 0.0
      %2755 = vmatmul.mubr.f32.gmra.mxu0 %v2506
      %v2756 = vpop.f32.mrf.mxu0
      %v2757 = vadd.f32 0.0, %v2756
      %v2758 = vpop.f32.mrf.mxu0
      %2759 = vmatprep.mubr.f32.mxu0 0.0
      %2760 = vmatmul.mubr.f32.gmra.mxu0 %v2507
      %v2761 = vpop.f32.mrf.mxu0
      %v2762 = vadd.f32 0.0, %v2761
      %v2763 = vpop.f32.mrf.mxu0
      %2764 = vmatprep.mubr.f32.mxu0 0.0
      %2765 = vmatmul.mubr.f32.gmra.mxu0 %v2508
      %v2766 = vpop.f32.mrf.mxu0
      %v2767 = vadd.f32 0.0, %v2766
      %v2768 = vpop.f32.mrf.mxu0
      %2769 = vmatprep.mubr.f32.mxu0 0.0
      %2770 = vmatmul.mubr.f32.gmra.mxu0 %v2509
      %v2771 = vpop.f32.mrf.mxu0
      %v2772 = vadd.f32 0.0, %v2771
      %v2773 = vpop.f32.mrf.mxu0
      %2774 = vmatprep.mubr.f32.mxu0 0.0
      %2775 = vmatmul.mubr.f32.gmra.mxu0 %v2510
      %v2776 = vpop.f32.mrf.mxu0
      %v2777 = vadd.f32 0.0, %v2776
      %v2778 = vpop.f32.mrf.mxu0
      %2779 = vmatprep.mubr.f32.mxu0 0.0
      %2780 = vmatmul.mubr.f32.gmra.mxu0 %v2511
      %v2781 = vpop.f32.mrf.mxu0
      %v2782 = vadd.f32 0.0, %v2781
      %v2783 = vpop.f32.mrf.mxu0
      %2784 = vmatprep.mubr.f32.mxu0 0.0
      %2785 = vmatmul.mubr.f32.gmra.mxu0 %v2512
      %v2786 = vpop.f32.mrf.mxu0
      %v2787 = vadd.f32 0.0, %v2786
      %v2788 = vpop.f32.mrf.mxu0
      %2789 = vmatprep.mubr.f32.mxu0 0.0
      %2790 = vmatmul.mubr.f32.gmra.mxu0 %v2513
      %v2791 = vpop.f32.mrf.mxu0
      %v2792 = vadd.f32 0.0, %v2791
      %v2793 = vpop.f32.mrf.mxu0
      %2794 = vmatprep.mubr.f32.mxu0 0.0
      %2795 = vmatmul.mubr.f32.gmra.mxu0 %v2514
      %v2796 = vpop.f32.mrf.mxu0
      %v2797 = vadd.f32 0.0, %v2796
      %v2798 = vpop.f32.mrf.mxu0
      %2799 = vmatprep.mubr.f32.mxu0 0.0
      %2800 = vmatmul.mubr.f32.gmra.mxu0 %v2515
      %v2801 = vpop.f32.mrf.mxu0
      %v2802 = vadd.f32 0.0, %v2801
      %v2803 = vpop.f32.mrf.mxu0
      %2804 = vmatprep.mubr.f32.mxu0 0.0
      %2805 = vmatmul.mubr.f32.gmra.mxu0 %v2516
      %v2806 = vpop.f32.mrf.mxu0
      %v2807 = vadd.f32 0.0, %v2806
      %v2808 = vpop.f32.mrf.mxu0
      %2809 = vmatprep.mubr.f32.mxu0 0.0
      %2810 = vmatmul.mubr.f32.gmra.mxu0 %v2517
      %v2811 = vpop.f32.mrf.mxu0
      %v2812 = vadd.f32 0.0, %v2811
      %v2813 = vpop.f32.mrf.mxu0
      %2814 = vmatprep.mubr.f32.mxu0 0.0
      %2815 = vmatmul.mubr.f32.gmra.mxu0 %v2518
      %v2816 = vpop.f32.mrf.mxu0
      %v2817 = vadd.f32 0.0, %v2816
      %v2818 = vpop.f32.mrf.mxu0
      %2819 = vmatprep.mubr.f32.mxu0 0.0
      %2820 = vmatmul.mubr.f32.gmra.mxu0 %v2519
      %v2821 = vpop.f32.mrf.mxu0
      %v2822 = vadd.f32 0.0, %v2821
      %v2823 = vpop.f32.mrf.mxu0
      %2824 = vmatprep.mubr.f32.mxu0 0.0
      %2825 = vmatmul.mubr.f32.gmra.mxu0 %v2520
      %v2826 = vpop.f32.mrf.mxu0
      %v2827 = vadd.f32 0.0, %v2826
      %v2828 = vpop.f32.mrf.mxu0
      %2829 = vmatprep.mubr.f32.mxu0 0.0
      %2830 = vmatmul.mubr.f32.gmra.mxu0 %v2521
      %v2831 = vpop.f32.mrf.mxu0
      %v2832 = vadd.f32 0.0, %v2831
      %v2833 = vpop.f32.mrf.mxu0
      %2834 = vmatprep.mubr.f32.mxu0 0.0
      %2835 = vmatmul.mubr.f32.gmra.mxu0 %v2522
      %v2836 = vpop.f32.mrf.mxu0
      %v2837 = vadd.f32 0.0, %v2836
      %v2838 = vpop.f32.mrf.mxu0
      %2839 = vmatprep.mubr.f32.mxu0 0.0
      %2840 = vmatmul.mubr.f32.gmra.mxu0 %v2523
      %v2841 = vpop.f32.mrf.mxu0
      %v2842 = vadd.f32 0.0, %v2841
      %v2843 = vpop.f32.mrf.mxu0
      %2844 = vmatprep.mubr.f32.mxu0 0.0
      %2845 = vmatmul.mubr.f32.gmra.mxu0 %v2524
      %v2846 = vpop.f32.mrf.mxu0
      %v2847 = vadd.f32 0.0, %v2846
      %v2848 = vpop.f32.mrf.mxu0
      %2849 = vmatprep.mubr.f32.mxu0 0.0
      %2850 = vmatmul.mubr.f32.gmra.mxu0 %v2525
      %v2851 = vpop.f32.mrf.mxu0
      %v2852 = vadd.f32 0.0, %v2851
      %v2853 = vpop.f32.mrf.mxu0
      %2854 = vmatprep.mubr.f32.mxu0 0.0
      %2855 = vmatmul.mubr.f32.gmra.mxu0 %v2526
      %v2856 = vpop.f32.mrf.mxu0
      %v2857 = vadd.f32 0.0, %v2856
      %v2858 = vpop.f32.mrf.mxu0
      %2859 = vmatprep.mubr.f32.mxu0 0.0
      %2860 = vmatmul.mubr.f32.gmra.mxu0 %v2527
      %v2861 = vpop.f32.mrf.mxu0
      %v2862 = vadd.f32 0.0, %v2861
      %v2863 = vpop.f32.mrf.mxu0
      %2864 = vmatprep.mubr.f32.mxu0 0.0
      %2865 = vmatmul.mubr.f32.gmra.mxu0 %v2528
      %v2866 = vpop.f32.mrf.mxu0
      %v2867 = vadd.f32 0.0, %v2866
      %v2868 = vpop.f32.mrf.mxu0
      %2869 = vmatprep.mubr.f32.mxu0 0.0
      %2870 = vmatmul.mubr.f32.gmra.mxu0 %v2529
      %v2871 = vpop.f32.mrf.mxu0
      %v2872 = vadd.f32 0.0, %v2871
      %v2873 = vpop.f32.mrf.mxu0
      %2874 = vmatprep.mubr.f32.mxu0 0.0
      %2875 = vmatmul.mubr.f32.gmra.mxu0 %v2530
      %v2876 = vpop.f32.mrf.mxu0
      %v2877 = vadd.f32 0.0, %v2876
      %v2878 = vpop.f32.mrf.mxu0
      %2879 = vmatprep.mubr.f32.mxu0 0.0
      %2880 = vmatmul.mubr.f32.gmra.mxu0 %v2531
      %v2881 = vpop.f32.mrf.mxu0
      %v2882 = vadd.f32 0.0, %v2881
      %v2883 = vpop.f32.mrf.mxu0
      %2884 = vmatprep.mubr.f32.mxu0 0.0
      %2885 = vmatmul.mubr.f32.gmra.mxu0 %v2532
      %v2886 = vpop.f32.mrf.mxu0
      %v2887 = vadd.f32 0.0, %v2886
      %v2888 = vpop.f32.mrf.mxu0
      %2889 = vmatprep.mubr.f32.mxu0 0.0
      %2890 = vmatmul.mubr.f32.gmra.mxu0 %v2533
      %v2891 = vpop.f32.mrf.mxu0
      %v2892 = vadd.f32 0.0, %v2891
      %v2893 = vpop.f32.mrf.mxu0
      %2894 = vmatprep.mubr.f32.mxu0 0.0
      %2895 = vmatmul.mubr.f32.gmra.mxu0 %v2534
      %v2896 = vpop.f32.mrf.mxu0
      %v2897 = vadd.f32 0.0, %v2896
      %v2898 = vpop.f32.mrf.mxu0
      %2899 = vmatprep.mubr.f32.mxu0 0.0
      %2900 = vmatmul.mubr.f32.gmra.mxu0 %v2535
      %v2901 = vpop.f32.mrf.mxu0
      %v2902 = vadd.f32 0.0, %v2901
      %v2903 = vpop.f32.mrf.mxu0
      %2904 = vmatprep.mubr.f32.mxu0 0.0
      %2905 = vmatmul.mubr.f32.gmra.mxu0 %v2536
      %v2906 = vpop.f32.mrf.mxu0
      %v2907 = vadd.f32 0.0, %v2906
      %v2908 = vpop.f32.mrf.mxu0
      %2909 = vmatprep.mubr.f32.mxu0 0.0
      %2910 = vmatmul.mubr.f32.gmra.mxu0 %v2537
      %v2911 = vpop.f32.mrf.mxu0
      %v2912 = vadd.f32 0.0, %v2911
      %v2913 = vpop.f32.mrf.mxu0
      %2914 = vmatprep.mubr.f32.mxu0 0.0
      %2915 = vmatmul.mubr.f32.gmra.mxu0 %v2538
      %v2916 = vpop.f32.mrf.mxu0
      %v2917 = vadd.f32 0.0, %v2916
      %v2918 = vpop.f32.mrf.mxu0
      %2919 = vmatprep.mubr.f32.mxu0 0.0
      %2920 = vmatmul.mubr.f32.gmra.mxu0 %v2539
      %v2921 = vpop.f32.mrf.mxu0
      %v2922 = vadd.f32 0.0, %v2921
      %v2923 = vpop.f32.mrf.mxu0
      %2924 = vmatprep.mubr.f32.mxu0 0.0
      %2925 = vmatmul.mubr.f32.gmra.mxu0 %v2540
      %v2926 = vpop.f32.mrf.mxu0
      %v2927 = vadd.f32 0.0, %v2926
      %v2928 = vpop.f32.mrf.mxu0
      %2929 = vmatprep.mubr.f32.mxu0 0.0
      %2930 = vmatmul.mubr.f32.gmra.mxu0 %v2541
      %v2931 = vpop.f32.mrf.mxu0
      %v2932 = vadd.f32 0.0, %v2931
      %v2933 = vpop.f32.mrf.mxu0
      %2934 = vmatprep.mubr.f32.mxu0 0.0
      %2935 = vmatmul.mubr.f32.gmra.mxu0 %v2542
      %v2936 = vpop.f32.mrf.mxu0
      %v2937 = vadd.f32 0.0, %v2936
      %v2938 = vpop.f32.mrf.mxu0
      %2939 = vmatprep.mubr.f32.mxu0 0.0
      %2940 = vmatmul.mubr.f32.gmra.mxu0 %v2543
      %v2941 = vpop.f32.mrf.mxu0
      %v2942 = vadd.f32 0.0, %v2941
      %v2943 = vpop.f32.mrf.mxu0
      %2944 = vdwg.mxu0
      %v2945 = vpack.c.bf16 %v2632, %v2627
      %v2946 = vpack.c.bf16 %v2642, %v2637
      %v2947 = vpack.c.bf16 %v2652, %v2647
      %v2948 = vpack.c.bf16 %v2662, %v2657
      %v2949 = vpack.c.bf16 %v2672, %v2667
      %v2950 = vpack.c.bf16 %v2682, %v2677
      %v2951 = vpack.c.bf16 %v2692, %v2687
      %v2952 = vpack.c.bf16 %v2702, %v2697
      %v2953 = vpack.c.bf16 %v2712, %v2707
      %v2954 = vpack.c.bf16 %v2722, %v2717
      %v2955 = vpack.c.bf16 %v2732, %v2727
      %v2956 = vpack.c.bf16 %v2742, %v2737
      %v2957 = vpack.c.bf16 %v2752, %v2747
      %v2958 = vpack.c.bf16 %v2762, %v2757
      %v2959 = vpack.c.bf16 %v2772, %v2767
      %v2960 = vpack.c.bf16 %v2782, %v2777
      %v2961 = vpack.c.bf16 %v2792, %v2787
      %v2962 = vpack.c.bf16 %v2802, %v2797
      %v2963 = vpack.c.bf16 %v2812, %v2807
      %v2964 = vpack.c.bf16 %v2822, %v2817
      %v2965 = vpack.c.bf16 %v2832, %v2827
      %v2966 = vpack.c.bf16 %v2842, %v2837
      %v2967 = vpack.c.bf16 %v2852, %v2847
      %v2968 = vpack.c.bf16 %v2862, %v2857
      %v2969 = vpack.c.bf16 %v2872, %v2867
      %v2970 = vpack.c.bf16 %v2882, %v2877
      %v2971 = vpack.c.bf16 %v2892, %v2887
      %v2972 = vpack.c.bf16 %v2902, %v2897
      %v2973 = vpack.c.bf16 %v2912, %v2907
      %v2974 = vpack.c.bf16 %v2922, %v2917
      %v2975 = vpack.c.bf16 %v2932, %v2927
      %v2976 = vpack.c.bf16 %v2942, %v2937
      %v3009 = vunpack.c.l.b16 %v2945
      %v3010 = vunpack.c.h.b16 %v2945
      %v3011 = vunpack.c.l.b16 %v2946
      %v3012 = vunpack.c.h.b16 %v2946
      %v3013 = vunpack.c.l.b16 %v2947
      %v3014 = vunpack.c.h.b16 %v2947
      %v3015 = vunpack.c.l.b16 %v2948
      %v3016 = vunpack.c.h.b16 %v2948
      %v3017 = vunpack.c.l.b16 %v2949
      %v3018 = vunpack.c.h.b16 %v2949
      %v3019 = vunpack.c.l.b16 %v2950
      %v3020 = vunpack.c.h.b16 %v2950
      %v3021 = vunpack.c.l.b16 %v2951
      %v3022 = vunpack.c.h.b16 %v2951
      %v3023 = vunpack.c.l.b16 %v2952
      %v3024 = vunpack.c.h.b16 %v2952
      %v3025 = vunpack.c.l.b16 %v2953
      %v3026 = vunpack.c.h.b16 %v2953
      %v3027 = vunpack.c.l.b16 %v2954
      %v3028 = vunpack.c.h.b16 %v2954
      %v3029 = vunpack.c.l.b16 %v2955
      %v3030 = vunpack.c.h.b16 %v2955
      %v3031 = vunpack.c.l.b16 %v2956
      %v3032 = vunpack.c.h.b16 %v2956
      %v3033 = vunpack.c.l.b16 %v2957
      %v3034 = vunpack.c.h.b16 %v2957
      %v3035 = vunpack.c.l.b16 %v2958
      %v3036 = vunpack.c.h.b16 %v2958
      %v3037 = vunpack.c.l.b16 %v2959
      %v3038 = vunpack.c.h.b16 %v2959
      %v3039 = vunpack.c.l.b16 %v2960
      %v3040 = vunpack.c.h.b16 %v2960
      %v3041 = vunpack.c.l.b16 %v2961
      %v3042 = vunpack.c.h.b16 %v2961
      %v3043 = vunpack.c.l.b16 %v2962
      %v3044 = vunpack.c.h.b16 %v2962
      %v3045 = vunpack.c.l.b16 %v2963
      %v3046 = vunpack.c.h.b16 %v2963
      %v3047 = vunpack.c.l.b16 %v2964
      %v3048 = vunpack.c.h.b16 %v2964
      %v3049 = vunpack.c.l.b16 %v2965
      %v3050 = vunpack.c.h.b16 %v2965
      %v3051 = vunpack.c.l.b16 %v2966
      %v3052 = vunpack.c.h.b16 %v2966
      %v3053 = vunpack.c.l.b16 %v2967
      %v3054 = vunpack.c.h.b16 %v2967
      %v3055 = vunpack.c.l.b16 %v2968
      %v3056 = vunpack.c.h.b16 %v2968
      %v3057 = vunpack.c.l.b16 %v2969
      %v3058 = vunpack.c.h.b16 %v2969
      %v3059 = vunpack.c.l.b16 %v2970
      %v3060 = vunpack.c.h.b16 %v2970
      %v3061 = vunpack.c.l.b16 %v2971
      %v3062 = vunpack.c.h.b16 %v2971
      %v3063 = vunpack.c.l.b16 %v2972
      %v3064 = vunpack.c.h.b16 %v2972
      %v3065 = vunpack.c.l.b16 %v2973
      %v3066 = vunpack.c.h.b16 %v2973
      %v3067 = vunpack.c.l.b16 %v2974
      %v3068 = vunpack.c.h.b16 %v2974
      %v3069 = vunpack.c.l.b16 %v2975
      %v3070 = vunpack.c.h.b16 %v2975
      %v3071 = vunpack.c.l.b16 %v2976
      %v3072 = vunpack.c.h.b16 %v2976
      %v3073 = vpack.c.b16 %v3009, %v3009
      %v3074 = vpack.c.b16 %v3010, %v3010
      %v3075 = vpack.c.b16 %v3011, %v3011
      %v3076 = vpack.c.b16 %v3012, %v3012
      %v3077 = vpack.c.b16 %v3013, %v3013
      %v3078 = vpack.c.b16 %v3014, %v3014
      %v3079 = vpack.c.b16 %v3015, %v3015
      %v3080 = vpack.c.b16 %v3016, %v3016
      %v3081 = vpack.c.b16 %v3017, %v3017
      %v3082 = vpack.c.b16 %v3018, %v3018
      %v3083 = vpack.c.b16 %v3019, %v3019
      %v3084 = vpack.c.b16 %v3020, %v3020
      %v3085 = vpack.c.b16 %v3021, %v3021
      %v3086 = vpack.c.b16 %v3022, %v3022
      %v3087 = vpack.c.b16 %v3023, %v3023
      %v3088 = vpack.c.b16 %v3024, %v3024
      %v3089 = vpack.c.b16 %v3025, %v3025
      %v3090 = vpack.c.b16 %v3026, %v3026
      %v3091 = vpack.c.b16 %v3027, %v3027
      %v3092 = vpack.c.b16 %v3028, %v3028
      %v3093 = vpack.c.b16 %v3029, %v3029
      %v3094 = vpack.c.b16 %v3030, %v3030
      %v3095 = vpack.c.b16 %v3031, %v3031
      %v3096 = vpack.c.b16 %v3032, %v3032
      %v3097 = vpack.c.b16 %v3033, %v3033
      %v3098 = vpack.c.b16 %v3034, %v3034
      %v3099 = vpack.c.b16 %v3035, %v3035
      %v3100 = vpack.c.b16 %v3036, %v3036
      %v3101 = vpack.c.b16 %v3037, %v3037
      %v3102 = vpack.c.b16 %v3038, %v3038
      %v3103 = vpack.c.b16 %v3039, %v3039
      %v3104 = vpack.c.b16 %v3040, %v3040
      %v3105 = vpack.c.b16 %v3041, %v3041
      %v3106 = vpack.c.b16 %v3042, %v3042
      %v3107 = vpack.c.b16 %v3043, %v3043
      %v3108 = vpack.c.b16 %v3044, %v3044
      %v3109 = vpack.c.b16 %v3045, %v3045
      %v3110 = vpack.c.b16 %v3046, %v3046
      %v3111 = vpack.c.b16 %v3047, %v3047
      %v3112 = vpack.c.b16 %v3048, %v3048
      %v3113 = vpack.c.b16 %v3049, %v3049
      %v3114 = vpack.c.b16 %v3050, %v3050
      %v3115 = vpack.c.b16 %v3051, %v3051
      %v3116 = vpack.c.b16 %v3052, %v3052
      %v3117 = vpack.c.b16 %v3053, %v3053
      %v3118 = vpack.c.b16 %v3054, %v3054
      %v3119 = vpack.c.b16 %v3055, %v3055
      %v3120 = vpack.c.b16 %v3056, %v3056
      %v3121 = vpack.c.b16 %v3057, %v3057
      %v3122 = vpack.c.b16 %v3058, %v3058
      %v3123 = vpack.c.b16 %v3059, %v3059
      %v3124 = vpack.c.b16 %v3060, %v3060
      %v3125 = vpack.c.b16 %v3061, %v3061
      %v3126 = vpack.c.b16 %v3062, %v3062
      %v3127 = vpack.c.b16 %v3063, %v3063
      %v3128 = vpack.c.b16 %v3064, %v3064
      %v3129 = vpack.c.b16 %v3065, %v3065
      %v3130 = vpack.c.b16 %v3066, %v3066
      %v3131 = vpack.c.b16 %v3067, %v3067
      %v3132 = vpack.c.b16 %v3068, %v3068
      %v3133 = vpack.c.b16 %v3069, %v3069
      %v3134 = vpack.c.b16 %v3070, %v3070
      %v3135 = vpack.c.b16 %v3071, %v3071
      %v3136 = vpack.c.b16 %v3072, %v3072
      %3201 = vst [vmem:[#allocation14] sm:$0xf] %v3073
      %3202 = vst [vmem:[#allocation14 + $0x4] sm:$0xf] %v3074
      %3203 = vst [vmem:[#allocation14 + $0x8] sm:$0xf] %v3075
      %3204 = vst [vmem:[#allocation14 + $0xc] sm:$0xf] %v3076
      %3205 = vst [vmem:[#allocation14 + $0x10] sm:$0xf] %v3077
      %3206 = vst [vmem:[#allocation14 + $0x14] sm:$0xf] %v3078
      %3207 = vst [vmem:[#allocation14 + $0x18] sm:$0xf] %v3079
      %3208 = vst [vmem:[#allocation14 + $0x1c] sm:$0xf] %v3080
      %3209 = vst [vmem:[#allocation14 + $0x20] sm:$0xf] %v3081
      %3210 = vst [vmem:[#allocation14 + $0x24] sm:$0xf] %v3082
      %3211 = vst [vmem:[#allocation14 + $0x28] sm:$0xf] %v3083
      %3212 = vst [vmem:[#allocation14 + $0x2c] sm:$0xf] %v3084
      %3213 = vst [vmem:[#allocation14 + $0x30] sm:$0xf] %v3085
      %3214 = vst [vmem:[#allocation14 + $0x34] sm:$0xf] %v3086
      %3215 = vst [vmem:[#allocation14 + $0x38] sm:$0xf] %v3087
      %3216 = vst [vmem:[#allocation14 + $0x3c] sm:$0xf] %v3088
      %3217 = vst [vmem:[#allocation14 + $0x40] sm:$0xf] %v3089
      %3218 = vst [vmem:[#allocation14 + $0x44] sm:$0xf] %v3090
      %3219 = vst [vmem:[#allocation14 + $0x48] sm:$0xf] %v3091
      %3220 = vst [vmem:[#allocation14 + $0x4c] sm:$0xf] %v3092
      %3221 = vst [vmem:[#allocation14 + $0x50] sm:$0xf] %v3093
      %3222 = vst [vmem:[#allocation14 + $0x54] sm:$0xf] %v3094
      %3223 = vst [vmem:[#allocation14 + $0x58] sm:$0xf] %v3095
      %3224 = vst [vmem:[#allocation14 + $0x5c] sm:$0xf] %v3096
      %3225 = vst [vmem:[#allocation14 + $0x60] sm:$0xf] %v3097
      %3226 = vst [vmem:[#allocation14 + $0x64] sm:$0xf] %v3098
      %3227 = vst [vmem:[#allocation14 + $0x68] sm:$0xf] %v3099
      %3228 = vst [vmem:[#allocation14 + $0x6c] sm:$0xf] %v3100
      %3229 = vst [vmem:[#allocation14 + $0x70] sm:$0xf] %v3101
      %3230 = vst [vmem:[#allocation14 + $0x74] sm:$0xf] %v3102
      %3231 = vst [vmem:[#allocation14 + $0x78] sm:$0xf] %v3103
      %3232 = vst [vmem:[#allocation14 + $0x7c] sm:$0xf] %v3104
      %3233 = vst [vmem:[#allocation14 + $0x80] sm:$0xf] %v3105
      %3234 = vst [vmem:[#allocation14 + $0x84] sm:$0xf] %v3106
      %3235 = vst [vmem:[#allocation14 + $0x88] sm:$0xf] %v3107
      %3236 = vst [vmem:[#allocation14 + $0x8c] sm:$0xf] %v3108
      %3237 = vst [vmem:[#allocation14 + $0x90] sm:$0xf] %v3109
      %3238 = vst [vmem:[#allocation14 + $0x94] sm:$0xf] %v3110
      %3239 = vst [vmem:[#allocation14 + $0x98] sm:$0xf] %v3111
      %3240 = vst [vmem:[#allocation14 + $0x9c] sm:$0xf] %v3112
      %3241 = vst [vmem:[#allocation14 + $0xa0] sm:$0xf] %v3113
      %3242 = vst [vmem:[#allocation14 + $0xa4] sm:$0xf] %v3114
      %3243 = vst [vmem:[#allocation14 + $0xa8] sm:$0xf] %v3115
      %3244 = vst [vmem:[#allocation14 + $0xac] sm:$0xf] %v3116
      %3245 = vst [vmem:[#allocation14 + $0xb0] sm:$0xf] %v3117
      %3246 = vst [vmem:[#allocation14 + $0xb4] sm:$0xf] %v3118
      %3247 = vst [vmem:[#allocation14 + $0xb8] sm:$0xf] %v3119
      %3248 = vst [vmem:[#allocation14 + $0xbc] sm:$0xf] %v3120
      %3249 = vst [vmem:[#allocation14 + $0xc0] sm:$0xf] %v3121
      %3250 = vst [vmem:[#allocation14 + $0xc4] sm:$0xf] %v3122
      %3251 = vst [vmem:[#allocation14 + $0xc8] sm:$0xf] %v3123
      %3252 = vst [vmem:[#allocation14 + $0xcc] sm:$0xf] %v3124
      %3253 = vst [vmem:[#allocation14 + $0xd0] sm:$0xf] %v3125
      %3254 = vst [vmem:[#allocation14 + $0xd4] sm:$0xf] %v3126
      %3255 = vst [vmem:[#allocation14 + $0xd8] sm:$0xf] %v3127
      %3256 = vst [vmem:[#allocation14 + $0xdc] sm:$0xf] %v3128
      %3257 = vst [vmem:[#allocation14 + $0xe0] sm:$0xf] %v3129
      %3258 = vst [vmem:[#allocation14 + $0xe4] sm:$0xf] %v3130
      %3259 = vst [vmem:[#allocation14 + $0xe8] sm:$0xf] %v3131
      %3260 = vst [vmem:[#allocation14 + $0xec] sm:$0xf] %v3132
      %3261 = vst [vmem:[#allocation14 + $0xf0] sm:$0xf] %v3133
      %3262 = vst [vmem:[#allocation14 + $0xf4] sm:$0xf] %v3134
      %3263 = vst [vmem:[#allocation14 + $0xf8] sm:$0xf] %v3135
      %3264 = vst [vmem:[#allocation14 + $0xfc] sm:$0xf] %v3136
      %v3265 = vld [vmem:[#allocation12] sm:$0xff]
      %v3266 = vld [vmem:[#allocation12 + $0x8] sm:$0xff]
      %v3267 = vld [vmem:[#allocation12 + $0x10] sm:$0xff]
      %v3268 = vld [vmem:[#allocation12 + $0x18] sm:$0xff]
      %v3269 = vld [vmem:[#allocation12 + $0x20] sm:$0xff]
      %v3270 = vld [vmem:[#allocation12 + $0x28] sm:$0xff]
      %v3271 = vld [vmem:[#allocation12 + $0x30] sm:$0xff]
      %v3272 = vld [vmem:[#allocation12 + $0x38] sm:$0xff]
      %v3273 = vld [vmem:[#allocation12 + $0x40] sm:$0xff]
      %v3274 = vld [vmem:[#allocation12 + $0x48] sm:$0xff]
      %v3275 = vld [vmem:[#allocation12 + $0x50] sm:$0xff]
      %v3276 = vld [vmem:[#allocation12 + $0x58] sm:$0xff]
      %v3277 = vld [vmem:[#allocation12 + $0x60] sm:$0xff]
      %v3278 = vld [vmem:[#allocation12 + $0x68] sm:$0xff]
      %v3279 = vld [vmem:[#allocation12 + $0x70] sm:$0xff]
      %v3280 = vld [vmem:[#allocation12 + $0x78] sm:$0xff]
      %v3281 = vld [vmem:[%s7] sm:$0x1]
      %v3283 = vlaneseq
      %v3284 = vshrl.u32 %v3283, 7
      %v3285 = vsub.s32 0, %v3284
      %v3286 = vrot.slane %v3281, %v3285
      %3288 = vmatprep.subr.mxu0 0.0
      %3289 = vmatpush1.msra.mxu0 %v3280
      %3290 = vmatprep.subr.mxu0 0.0
      %3291 = vmatpush1.msra.mxu0 %v3279
      %3292 = vmatprep.subr.mxu0 0.0
      %3293 = vmatpush1.msra.mxu0 %v3278
      %3294 = vmatprep.subr.mxu0 0.0
      %3295 = vmatpush1.msra.mxu0 %v3277
      %3296 = vmatprep.subr.mxu0 0.0
      %3297 = vmatpush1.msra.mxu0 %v3276
      %3298 = vmatprep.subr.mxu0 0.0
      %3299 = vmatpush1.msra.mxu0 %v3275
      %3300 = vmatprep.subr.mxu0 0.0
      %3301 = vmatpush1.msra.mxu0 %v3274
      %3302 = vmatprep.subr.mxu0 0.0
      %3303 = vmatpush1.msra.mxu0 %v3273
      %3304 = vmatprep.subr.mxu0 0.0
      %3305 = vmatpush1.msra.mxu0 %v3272
      %3306 = vmatprep.subr.mxu0 0.0
      %3307 = vmatpush1.msra.mxu0 %v3271
      %3308 = vmatprep.subr.mxu0 0.0
      %3309 = vmatpush1.msra.mxu0 %v3270
      %3310 = vmatprep.subr.mxu0 0.0
      %3311 = vmatpush1.msra.mxu0 %v3269
      %3312 = vmatprep.subr.mxu0 0.0
      %3313 = vmatpush1.msra.mxu0 %v3268
      %3314 = vmatprep.subr.mxu0 0.0
      %3315 = vmatpush1.msra.mxu0 %v3267
      %3316 = vmatprep.subr.mxu0 0.0
      %3317 = vmatpush1.msra.mxu0 %v3266
      %3318 = vmatprep.subr.mxu0 0.0
      %3319 = vmatpush1.msra.mxu0 %v3265
      %3320 = vmatprep.subr.mxu0 0.0
      %3321 = vmatpush2.msra.mxu0 0.0
      %3322 = vmatprep.subr.mxu0 0.0
      %3323 = vmatpush2.msra.mxu0 0.0
      %3324 = vmatprep.subr.mxu0 0.0
      %3325 = vmatpush2.msra.mxu0 0.0
      %3326 = vmatprep.subr.mxu0 0.0
      %3327 = vmatpush2.msra.mxu0 0.0
      %3328 = vmatprep.subr.mxu0 0.0
      %3329 = vmatpush2.msra.mxu0 0.0
      %3330 = vmatprep.subr.mxu0 0.0
      %3331 = vmatpush2.msra.mxu0 0.0
      %3332 = vmatprep.subr.mxu0 0.0
      %3333 = vmatpush2.msra.mxu0 0.0
      %3334 = vmatprep.subr.mxu0 0.0
      %3335 = vmatpush2.msra.mxu0 0.0
      %3336 = vmatprep.subr.mxu0 0.0
      %3337 = vmatpush2.msra.mxu0 0.0
      %3338 = vmatprep.subr.mxu0 0.0
      %3339 = vmatpush2.msra.mxu0 0.0
      %3340 = vmatprep.subr.mxu0 0.0
      %3341 = vmatpush2.msra.mxu0 0.0
      %3342 = vmatprep.subr.mxu0 0.0
      %3343 = vmatpush2.msra.mxu0 0.0
      %3344 = vmatprep.subr.mxu0 0.0
      %3345 = vmatpush2.msra.mxu0 0.0
      %3346 = vmatprep.subr.mxu0 0.0
      %3347 = vmatpush2.msra.mxu0 0.0
      %3348 = vmatprep.subr.mxu0 0.0
      %3349 = vmatpush2.msra.mxu0 0.0
      %3350 = vmatprep.subr.mxu0 0.0
      %3351 = vmatpush2.msra.mxu0 0.0
      %3352 = vmatprep.mubr.f32.mxu0 0.0
      %3353 = vmatmul.mubr.f32.gmra.mxu0 %v2480
      %v3354 = vpop.f32.mrf.mxu0
      %v3355 = vadd.f32 %v3286, %v3354
      %v3356 = vpop.f32.mrf.mxu0
      %3357 = vmatprep.mubr.f32.mxu0 0.0
      %3358 = vmatmul.mubr.f32.gmra.mxu0 %v2481
      %v3359 = vpop.f32.mrf.mxu0
      %v3360 = vadd.f32 %v3286, %v3359
      %v3361 = vpop.f32.mrf.mxu0
      %3362 = vmatprep.mubr.f32.mxu0 0.0
      %3363 = vmatmul.mubr.f32.gmra.mxu0 %v2482
      %v3364 = vpop.f32.mrf.mxu0
      %v3365 = vadd.f32 %v3286, %v3364
      %v3366 = vpop.f32.mrf.mxu0
      %3367 = vmatprep.mubr.f32.mxu0 0.0
      %3368 = vmatmul.mubr.f32.gmra.mxu0 %v2483
      %v3369 = vpop.f32.mrf.mxu0
      %v3370 = vadd.f32 %v3286, %v3369
      %v3371 = vpop.f32.mrf.mxu0
      %3372 = vmatprep.mubr.f32.mxu0 0.0
      %3373 = vmatmul.mubr.f32.gmra.mxu0 %v2484
      %v3374 = vpop.f32.mrf.mxu0
      %v3375 = vadd.f32 %v3286, %v3374
      %v3376 = vpop.f32.mrf.mxu0
      %3377 = vmatprep.mubr.f32.mxu0 0.0
      %3378 = vmatmul.mubr.f32.gmra.mxu0 %v2485
      %v3379 = vpop.f32.mrf.mxu0
      %v3380 = vadd.f32 %v3286, %v3379
      %v3381 = vpop.f32.mrf.mxu0
      %3382 = vmatprep.mubr.f32.mxu0 0.0
      %3383 = vmatmul.mubr.f32.gmra.mxu0 %v2486
      %v3384 = vpop.f32.mrf.mxu0
      %v3385 = vadd.f32 %v3286, %v3384
      %v3386 = vpop.f32.mrf.mxu0
      %3387 = vmatprep.mubr.f32.mxu0 0.0
      %3388 = vmatmul.mubr.f32.gmra.mxu0 %v2487
      %v3389 = vpop.f32.mrf.mxu0
      %v3390 = vadd.f32 %v3286, %v3389
      %v3391 = vpop.f32.mrf.mxu0
      %3392 = vmatprep.mubr.f32.mxu0 0.0
      %3393 = vmatmul.mubr.f32.gmra.mxu0 %v2488
      %v3394 = vpop.f32.mrf.mxu0
      %v3395 = vadd.f32 %v3286, %v3394
      %v3396 = vpop.f32.mrf.mxu0
      %3397 = vmatprep.mubr.f32.mxu0 0.0
      %3398 = vmatmul.mubr.f32.gmra.mxu0 %v2489
      %v3399 = vpop.f32.mrf.mxu0
      %v3400 = vadd.f32 %v3286, %v3399
      %v3401 = vpop.f32.mrf.mxu0
      %3402 = vmatprep.mubr.f32.mxu0 0.0
      %3403 = vmatmul.mubr.f32.gmra.mxu0 %v2490
      %v3404 = vpop.f32.mrf.mxu0
      %v3405 = vadd.f32 %v3286, %v3404
      %v3406 = vpop.f32.mrf.mxu0
      %3407 = vmatprep.mubr.f32.mxu0 0.0
      %3408 = vmatmul.mubr.f32.gmra.mxu0 %v2491
      %v3409 = vpop.f32.mrf.mxu0
      %v3410 = vadd.f32 %v3286, %v3409
      %v3411 = vpop.f32.mrf.mxu0
      %3412 = vmatprep.mubr.f32.mxu0 0.0
      %3413 = vmatmul.mubr.f32.gmra.mxu0 %v2492
      %v3414 = vpop.f32.mrf.mxu0
      %v3415 = vadd.f32 %v3286, %v3414
      %v3416 = vpop.f32.mrf.mxu0
      %3417 = vmatprep.mubr.f32.mxu0 0.0
      %3418 = vmatmul.mubr.f32.gmra.mxu0 %v2493
      %v3419 = vpop.f32.mrf.mxu0
      %v3420 = vadd.f32 %v3286, %v3419
      %v3421 = vpop.f32.mrf.mxu0
      %3422 = vmatprep.mubr.f32.mxu0 0.0
      %3423 = vmatmul.mubr.f32.gmra.mxu0 %v2494
      %v3424 = vpop.f32.mrf.mxu0
      %v3425 = vadd.f32 %v3286, %v3424
      %v3426 = vpop.f32.mrf.mxu0
      %3427 = vmatprep.mubr.f32.mxu0 0.0
      %3428 = vmatmul.mubr.f32.gmra.mxu0 %v2495
      %v3429 = vpop.f32.mrf.mxu0
      %v3430 = vadd.f32 %v3286, %v3429
      %v3431 = vpop.f32.mrf.mxu0
      %3432 = vmatprep.mubr.f32.mxu0 0.0
      %3433 = vmatmul.mubr.f32.gmra.mxu0 %v2496
      %v3434 = vpop.f32.mrf.mxu0
      %v3435 = vadd.f32 %v3286, %v3434
      %v3436 = vpop.f32.mrf.mxu0
      %3437 = vmatprep.mubr.f32.mxu0 0.0
      %3438 = vmatmul.mubr.f32.gmra.mxu0 %v2497
      %v3439 = vpop.f32.mrf.mxu0
      %v3440 = vadd.f32 %v3286, %v3439
      %v3441 = vpop.f32.mrf.mxu0
      %3442 = vmatprep.mubr.f32.mxu0 0.0
      %3443 = vmatmul.mubr.f32.gmra.mxu0 %v2498
      %v3444 = vpop.f32.mrf.mxu0
      %v3445 = vadd.f32 %v3286, %v3444
      %v3446 = vpop.f32.mrf.mxu0
      %3447 = vmatprep.mubr.f32.mxu0 0.0
      %3448 = vmatmul.mubr.f32.gmra.mxu0 %v2499
      %v3449 = vpop.f32.mrf.mxu0
      %v3450 = vadd.f32 %v3286, %v3449
      %v3451 = vpop.f32.mrf.mxu0
      %3452 = vmatprep.mubr.f32.mxu0 0.0
      %3453 = vmatmul.mubr.f32.gmra.mxu0 %v2500
      %v3454 = vpop.f32.mrf.mxu0
      %v3455 = vadd.f32 %v3286, %v3454
      %v3456 = vpop.f32.mrf.mxu0
      %3457 = vmatprep.mubr.f32.mxu0 0.0
      %3458 = vmatmul.mubr.f32.gmra.mxu0 %v2501
      %v3459 = vpop.f32.mrf.mxu0
      %v3460 = vadd.f32 %v3286, %v3459
      %v3461 = vpop.f32.mrf.mxu0
      %3462 = vmatprep.mubr.f32.mxu0 0.0
      %3463 = vmatmul.mubr.f32.gmra.mxu0 %v2502
      %v3464 = vpop.f32.mrf.mxu0
      %v3465 = vadd.f32 %v3286, %v3464
      %v3466 = vpop.f32.mrf.mxu0
      %3467 = vmatprep.mubr.f32.mxu0 0.0
      %3468 = vmatmul.mubr.f32.gmra.mxu0 %v2503
      %v3469 = vpop.f32.mrf.mxu0
      %v3470 = vadd.f32 %v3286, %v3469
      %v3471 = vpop.f32.mrf.mxu0
      %3472 = vmatprep.mubr.f32.mxu0 0.0
      %3473 = vmatmul.mubr.f32.gmra.mxu0 %v2504
      %v3474 = vpop.f32.mrf.mxu0
      %v3475 = vadd.f32 %v3286, %v3474
      %v3476 = vpop.f32.mrf.mxu0
      %3477 = vmatprep.mubr.f32.mxu0 0.0
      %3478 = vmatmul.mubr.f32.gmra.mxu0 %v2505
      %v3479 = vpop.f32.mrf.mxu0
      %v3480 = vadd.f32 %v3286, %v3479
      %v3481 = vpop.f32.mrf.mxu0
      %3482 = vmatprep.mubr.f32.mxu0 0.0
      %3483 = vmatmul.mubr.f32.gmra.mxu0 %v2506
      %v3484 = vpop.f32.mrf.mxu0
      %v3485 = vadd.f32 %v3286, %v3484
      %v3486 = vpop.f32.mrf.mxu0
      %3487 = vmatprep.mubr.f32.mxu0 0.0
      %3488 = vmatmul.mubr.f32.gmra.mxu0 %v2507
      %v3489 = vpop.f32.mrf.mxu0
      %v3490 = vadd.f32 %v3286, %v3489
      %v3491 = vpop.f32.mrf.mxu0
      %3492 = vmatprep.mubr.f32.mxu0 0.0
      %3493 = vmatmul.mubr.f32.gmra.mxu0 %v2508
      %v3494 = vpop.f32.mrf.mxu0
      %v3495 = vadd.f32 %v3286, %v3494
      %v3496 = vpop.f32.mrf.mxu0
      %3497 = vmatprep.mubr.f32.mxu0 0.0
      %3498 = vmatmul.mubr.f32.gmra.mxu0 %v2509
      %v3499 = vpop.f32.mrf.mxu0
      %v3500 = vadd.f32 %v3286, %v3499
      %v3501 = vpop.f32.mrf.mxu0
      %3502 = vmatprep.mubr.f32.mxu0 0.0
      %3503 = vmatmul.mubr.f32.gmra.mxu0 %v2510
      %v3504 = vpop.f32.mrf.mxu0
      %v3505 = vadd.f32 %v3286, %v3504
      %v3506 = vpop.f32.mrf.mxu0
      %3507 = vmatprep.mubr.f32.mxu0 0.0
      %3508 = vmatmul.mubr.f32.gmra.mxu0 %v2511
      %v3509 = vpop.f32.mrf.mxu0
      %v3510 = vadd.f32 %v3286, %v3509
      %v3511 = vpop.f32.mrf.mxu0
      %3512 = vmatprep.mubr.f32.mxu0 0.0
      %3513 = vmatmul.mubr.f32.gmra.mxu0 %v2512
      %v3514 = vpop.f32.mrf.mxu0
      %v3515 = vadd.f32 %v3286, %v3514
      %v3516 = vpop.f32.mrf.mxu0
      %3517 = vmatprep.mubr.f32.mxu0 0.0
      %3518 = vmatmul.mubr.f32.gmra.mxu0 %v2513
      %v3519 = vpop.f32.mrf.mxu0
      %v3520 = vadd.f32 %v3286, %v3519
      %v3521 = vpop.f32.mrf.mxu0
      %3522 = vmatprep.mubr.f32.mxu0 0.0
      %3523 = vmatmul.mubr.f32.gmra.mxu0 %v2514
      %v3524 = vpop.f32.mrf.mxu0
      %v3525 = vadd.f32 %v3286, %v3524
      %v3526 = vpop.f32.mrf.mxu0
      %3527 = vmatprep.mubr.f32.mxu0 0.0
      %3528 = vmatmul.mubr.f32.gmra.mxu0 %v2515
      %v3529 = vpop.f32.mrf.mxu0
      %v3530 = vadd.f32 %v3286, %v3529
      %v3531 = vpop.f32.mrf.mxu0
      %3532 = vmatprep.mubr.f32.mxu0 0.0
      %3533 = vmatmul.mubr.f32.gmra.mxu0 %v2516
      %v3534 = vpop.f32.mrf.mxu0
      %v3535 = vadd.f32 %v3286, %v3534
      %v3536 = vpop.f32.mrf.mxu0
      %3537 = vmatprep.mubr.f32.mxu0 0.0
      %3538 = vmatmul.mubr.f32.gmra.mxu0 %v2517
      %v3539 = vpop.f32.mrf.mxu0
      %v3540 = vadd.f32 %v3286, %v3539
      %v3541 = vpop.f32.mrf.mxu0
      %3542 = vmatprep.mubr.f32.mxu0 0.0
      %3543 = vmatmul.mubr.f32.gmra.mxu0 %v2518
      %v3544 = vpop.f32.mrf.mxu0
      %v3545 = vadd.f32 %v3286, %v3544
      %v3546 = vpop.f32.mrf.mxu0
      %3547 = vmatprep.mubr.f32.mxu0 0.0
      %3548 = vmatmul.mubr.f32.gmra.mxu0 %v2519
      %v3549 = vpop.f32.mrf.mxu0
      %v3550 = vadd.f32 %v3286, %v3549
      %v3551 = vpop.f32.mrf.mxu0
      %3552 = vmatprep.mubr.f32.mxu0 0.0
      %3553 = vmatmul.mubr.f32.gmra.mxu0 %v2520
      %v3554 = vpop.f32.mrf.mxu0
      %v3555 = vadd.f32 %v3286, %v3554
      %v3556 = vpop.f32.mrf.mxu0
      %3557 = vmatprep.mubr.f32.mxu0 0.0
      %3558 = vmatmul.mubr.f32.gmra.mxu0 %v2521
      %v3559 = vpop.f32.mrf.mxu0
      %v3560 = vadd.f32 %v3286, %v3559
      %v3561 = vpop.f32.mrf.mxu0
      %3562 = vmatprep.mubr.f32.mxu0 0.0
      %3563 = vmatmul.mubr.f32.gmra.mxu0 %v2522
      %v3564 = vpop.f32.mrf.mxu0
      %v3565 = vadd.f32 %v3286, %v3564
      %v3566 = vpop.f32.mrf.mxu0
      %3567 = vmatprep.mubr.f32.mxu0 0.0
      %3568 = vmatmul.mubr.f32.gmra.mxu0 %v2523
      %v3569 = vpop.f32.mrf.mxu0
      %v3570 = vadd.f32 %v3286, %v3569
      %v3571 = vpop.f32.mrf.mxu0
      %3572 = vmatprep.mubr.f32.mxu0 0.0
      %3573 = vmatmul.mubr.f32.gmra.mxu0 %v2524
      %v3574 = vpop.f32.mrf.mxu0
      %v3575 = vadd.f32 %v3286, %v3574
      %v3576 = vpop.f32.mrf.mxu0
      %3577 = vmatprep.mubr.f32.mxu0 0.0
      %3578 = vmatmul.mubr.f32.gmra.mxu0 %v2525
      %v3579 = vpop.f32.mrf.mxu0
      %v3580 = vadd.f32 %v3286, %v3579
      %v3581 = vpop.f32.mrf.mxu0
      %3582 = vmatprep.mubr.f32.mxu0 0.0
      %3583 = vmatmul.mubr.f32.gmra.mxu0 %v2526
      %v3584 = vpop.f32.mrf.mxu0
      %v3585 = vadd.f32 %v3286, %v3584
      %v3586 = vpop.f32.mrf.mxu0
      %3587 = vmatprep.mubr.f32.mxu0 0.0
      %3588 = vmatmul.mubr.f32.gmra.mxu0 %v2527
      %v3589 = vpop.f32.mrf.mxu0
      %v3590 = vadd.f32 %v3286, %v3589
      %v3591 = vpop.f32.mrf.mxu0
      %3592 = vmatprep.mubr.f32.mxu0 0.0
      %3593 = vmatmul.mubr.f32.gmra.mxu0 %v2528
      %v3594 = vpop.f32.mrf.mxu0
      %v3595 = vadd.f32 %v3286, %v3594
      %v3596 = vpop.f32.mrf.mxu0
      %3597 = vmatprep.mubr.f32.mxu0 0.0
      %3598 = vmatmul.mubr.f32.gmra.mxu0 %v2529
      %v3599 = vpop.f32.mrf.mxu0
      %v3600 = vadd.f32 %v3286, %v3599
      %v3601 = vpop.f32.mrf.mxu0
      %3602 = vmatprep.mubr.f32.mxu0 0.0
      %3603 = vmatmul.mubr.f32.gmra.mxu0 %v2530
      %v3604 = vpop.f32.mrf.mxu0
      %v3605 = vadd.f32 %v3286, %v3604
      %v3606 = vpop.f32.mrf.mxu0
      %3607 = vmatprep.mubr.f32.mxu0 0.0
      %3608 = vmatmul.mubr.f32.gmra.mxu0 %v2531
      %v3609 = vpop.f32.mrf.mxu0
      %v3610 = vadd.f32 %v3286, %v3609
      %v3611 = vpop.f32.mrf.mxu0
      %3612 = vmatprep.mubr.f32.mxu0 0.0
      %3613 = vmatmul.mubr.f32.gmra.mxu0 %v2532
      %v3614 = vpop.f32.mrf.mxu0
      %v3615 = vadd.f32 %v3286, %v3614
      %v3616 = vpop.f32.mrf.mxu0
      %3617 = vmatprep.mubr.f32.mxu0 0.0
      %3618 = vmatmul.mubr.f32.gmra.mxu0 %v2533
      %v3619 = vpop.f32.mrf.mxu0
      %v3620 = vadd.f32 %v3286, %v3619
      %v3621 = vpop.f32.mrf.mxu0
      %3622 = vmatprep.mubr.f32.mxu0 0.0
      %3623 = vmatmul.mubr.f32.gmra.mxu0 %v2534
      %v3624 = vpop.f32.mrf.mxu0
      %v3625 = vadd.f32 %v3286, %v3624
      %v3626 = vpop.f32.mrf.mxu0
      %3627 = vmatprep.mubr.f32.mxu0 0.0
      %3628 = vmatmul.mubr.f32.gmra.mxu0 %v2535
      %v3629 = vpop.f32.mrf.mxu0
      %v3630 = vadd.f32 %v3286, %v3629
      %v3631 = vpop.f32.mrf.mxu0
      %3632 = vmatprep.mubr.f32.mxu0 0.0
      %3633 = vmatmul.mubr.f32.gmra.mxu0 %v2536
      %v3634 = vpop.f32.mrf.mxu0
      %v3635 = vadd.f32 %v3286, %v3634
      %v3636 = vpop.f32.mrf.mxu0
      %3637 = vmatprep.mubr.f32.mxu0 0.0
      %3638 = vmatmul.mubr.f32.gmra.mxu0 %v2537
      %v3639 = vpop.f32.mrf.mxu0
      %v3640 = vadd.f32 %v3286, %v3639
      %v3641 = vpop.f32.mrf.mxu0
      %3642 = vmatprep.mubr.f32.mxu0 0.0
      %3643 = vmatmul.mubr.f32.gmra.mxu0 %v2538
      %v3644 = vpop.f32.mrf.mxu0
      %v3645 = vadd.f32 %v3286, %v3644
      %v3646 = vpop.f32.mrf.mxu0
      %3647 = vmatprep.mubr.f32.mxu0 0.0
      %3648 = vmatmul.mubr.f32.gmra.mxu0 %v2539
      %v3649 = vpop.f32.mrf.mxu0
      %v3650 = vadd.f32 %v3286, %v3649
      %v3651 = vpop.f32.mrf.mxu0
      %3652 = vmatprep.mubr.f32.mxu0 0.0
      %3653 = vmatmul.mubr.f32.gmra.mxu0 %v2540
      %v3654 = vpop.f32.mrf.mxu0
      %v3655 = vadd.f32 %v3286, %v3654
      %v3656 = vpop.f32.mrf.mxu0
      %3657 = vmatprep.mubr.f32.mxu0 0.0
      %3658 = vmatmul.mubr.f32.gmra.mxu0 %v2541
      %v3659 = vpop.f32.mrf.mxu0
      %v3660 = vadd.f32 %v3286, %v3659
      %v3661 = vpop.f32.mrf.mxu0
      %3662 = vmatprep.mubr.f32.mxu0 0.0
      %3663 = vmatmul.mubr.f32.gmra.mxu0 %v2542
      %v3664 = vpop.f32.mrf.mxu0
      %v3665 = vadd.f32 %v3286, %v3664
      %v3666 = vpop.f32.mrf.mxu0
      %3667 = vmatprep.mubr.f32.mxu0 0.0
      %3668 = vmatmul.mubr.f32.gmra.mxu0 %v2543
      %v3669 = vpop.f32.mrf.mxu0
      %v3670 = vadd.f32 %v3286, %v3669
      %v3671 = vpop.f32.mrf.mxu0
      %3672 = vdwg.mxu0
      %3673 = vst [vmem:[#allocation15] sm:$0xff] %v3355
      %3674 = vst [vmem:[#allocation15 + $0x8] sm:$0xff] %v3360
      %3675 = vst [vmem:[#allocation15 + $0x10] sm:$0xff] %v3365
      %3676 = vst [vmem:[#allocation15 + $0x18] sm:$0xff] %v3370
      %3677 = vst [vmem:[#allocation15 + $0x20] sm:$0xff] %v3375
      %3678 = vst [vmem:[#allocation15 + $0x28] sm:$0xff] %v3380
      %3679 = vst [vmem:[#allocation15 + $0x30] sm:$0xff] %v3385
      %3680 = vst [vmem:[#allocation15 + $0x38] sm:$0xff] %v3390
      %3681 = vst [vmem:[#allocation15 + $0x40] sm:$0xff] %v3395
      %3682 = vst [vmem:[#allocation15 + $0x48] sm:$0xff] %v3400
      %3683 = vst [vmem:[#allocation15 + $0x50] sm:$0xff] %v3405
      %3684 = vst [vmem:[#allocation15 + $0x58] sm:$0xff] %v3410
      %3685 = vst [vmem:[#allocation15 + $0x60] sm:$0xff] %v3415
      %3686 = vst [vmem:[#allocation15 + $0x68] sm:$0xff] %v3420
      %3687 = vst [vmem:[#allocation15 + $0x70] sm:$0xff] %v3425
      %3688 = vst [vmem:[#allocation15 + $0x78] sm:$0xff] %v3430
      %3689 = vst [vmem:[#allocation15 + $0x80] sm:$0xff] %v3435
      %3690 = vst [vmem:[#allocation15 + $0x88] sm:$0xff] %v3440
      %3691 = vst [vmem:[#allocation15 + $0x90] sm:$0xff] %v3445
      %3692 = vst [vmem:[#allocation15 + $0x98] sm:$0xff] %v3450
      %3693 = vst [vmem:[#allocation15 + $0xa0] sm:$0xff] %v3455
      %3694 = vst [vmem:[#allocation15 + $0xa8] sm:$0xff] %v3460
      %3695 = vst [vmem:[#allocation15 + $0xb0] sm:$0xff] %v3465
      %3696 = vst [vmem:[#allocation15 + $0xb8] sm:$0xff] %v3470
      %3697 = vst [vmem:[#allocation15 + $0xc0] sm:$0xff] %v3475
      %3698 = vst [vmem:[#allocation15 + $0xc8] sm:$0xff] %v3480
      %3699 = vst [vmem:[#allocation15 + $0xd0] sm:$0xff] %v3485
      %3700 = vst [vmem:[#allocation15 + $0xd8] sm:$0xff] %v3490
      %3701 = vst [vmem:[#allocation15 + $0xe0] sm:$0xff] %v3495
      %3702 = vst [vmem:[#allocation15 + $0xe8] sm:$0xff] %v3500
      %3703 = vst [vmem:[#allocation15 + $0xf0] sm:$0xff] %v3505
      %3704 = vst [vmem:[#allocation15 + $0xf8] sm:$0xff] %v3510
      %3705 = vst [vmem:[#allocation15 + $0x100] sm:$0xff] %v3515
      %3706 = vst [vmem:[#allocation15 + $0x108] sm:$0xff] %v3520
      %3707 = vst [vmem:[#allocation15 + $0x110] sm:$0xff] %v3525
      %3708 = vst [vmem:[#allocation15 + $0x118] sm:$0xff] %v3530
      %3709 = vst [vmem:[#allocation15 + $0x120] sm:$0xff] %v3535
      %3710 = vst [vmem:[#allocation15 + $0x128] sm:$0xff] %v3540
      %3711 = vst [vmem:[#allocation15 + $0x130] sm:$0xff] %v3545
      %3712 = vst [vmem:[#allocation15 + $0x138] sm:$0xff] %v3550
      %3713 = vst [vmem:[#allocation15 + $0x140] sm:$0xff] %v3555
      %3714 = vst [vmem:[#allocation15 + $0x148] sm:$0xff] %v3560
      %3715 = vst [vmem:[#allocation15 + $0x150] sm:$0xff] %v3565
      %3716 = vst [vmem:[#allocation15 + $0x158] sm:$0xff] %v3570
      %3717 = vst [vmem:[#allocation15 + $0x160] sm:$0xff] %v3575
      %3718 = vst [vmem:[#allocation15 + $0x168] sm:$0xff] %v3580
      %3719 = vst [vmem:[#allocation15 + $0x170] sm:$0xff] %v3585
      %3720 = vst [vmem:[#allocation15 + $0x178] sm:$0xff] %v3590
      %3721 = vst [vmem:[#allocation15 + $0x180] sm:$0xff] %v3595
      %3722 = vst [vmem:[#allocation15 + $0x188] sm:$0xff] %v3600
      %3723 = vst [vmem:[#allocation15 + $0x190] sm:$0xff] %v3605
      %3724 = vst [vmem:[#allocation15 + $0x198] sm:$0xff] %v3610
      %3725 = vst [vmem:[#allocation15 + $0x1a0] sm:$0xff] %v3615
      %3726 = vst [vmem:[#allocation15 + $0x1a8] sm:$0xff] %v3620
      %3727 = vst [vmem:[#allocation15 + $0x1b0] sm:$0xff] %v3625
      %3728 = vst [vmem:[#allocation15 + $0x1b8] sm:$0xff] %v3630
      %3729 = vst [vmem:[#allocation15 + $0x1c0] sm:$0xff] %v3635
      %3730 = vst [vmem:[#allocation15 + $0x1c8] sm:$0xff] %v3640
      %3731 = vst [vmem:[#allocation15 + $0x1d0] sm:$0xff] %v3645
      %3732 = vst [vmem:[#allocation15 + $0x1d8] sm:$0xff] %v3650
      %3733 = vst [vmem:[#allocation15 + $0x1e0] sm:$0xff] %v3655
      %3734 = vst [vmem:[#allocation15 + $0x1e8] sm:$0xff] %v3660
      %3735 = vst [vmem:[#allocation15 + $0x1f0] sm:$0xff] %v3665
      %3736 = vst [vmem:[#allocation15 + $0x1f8] sm:$0xff] %v3670
    $region65: #{tpu_custom_call.1} parent=1 // pred_fallthru
      _
    // Predicated region
    $region66: #{tpu_custom_call.1} parent=1 // pred_check
      _
    $region67: #{tpu_custom_call.1} parent=1 // pred_check_branch
      %3738 = sbr.rel (0) target = $region69
    $region68: #{tpu_custom_call.1} parent=1 // pred_region
      %s3740 = ssub.s32 4096, 4096
      %3741 = vsyncadd [#allocation5], %s3740
      %s3742 = sshll.u32 [#allocation14], 4
      %s3743 = int_to_ptr.vmem [resolvable:$true] %s3742
      %3748 = dma.vmem_to_hbm [thread:$0]  %s3743, 4096, %s8, [#allocation5], 64, 64, 4
    $region69: #{tpu_custom_call.1} parent=1 // pred_fallthru
      _
    // Predicated region
    $region70: #{tpu_custom_call.1} parent=1 // pred_check
      _
    $region71: #{tpu_custom_call.1} parent=1 // pred_check_branch
      %3750 = sbr.rel (0) target = $region73
    $region72: #{tpu_custom_call.1} parent=1 // pred_region
      %s3752 = ssub.s32 8192, 8192
      %3753 = vsyncadd [#allocation16], %s3752
      %s3754 = sshll.u32 [#allocation15], 4
      %s3755 = int_to_ptr.vmem [resolvable:$true] %s3754
      %3760 = dma.vmem_to_hbm [thread:$0]  %s3755, 8192, %s9, [#allocation16], 128, 128, 8
    $region73: #{tpu_custom_call.1} parent=1 // pred_fallthru
      _
    // Predicated region
    $region74: #{tpu_custom_call.1} parent=1 // pred_check
      _
    $region75: #{tpu_custom_call.1} parent=1 // pred_check_branch
      %3762 = sbr.rel (0) target = $region77
    $region76: #{tpu_custom_call.1} parent=1 // pred_region
      %3763 = dma.done [#allocation5], 4096
    $region77: #{tpu_custom_call.1} parent=1 // pred_fallthru
      _
    // Predicated region
    $region78: #{tpu_custom_call.1} parent=1 // pred_check
      _
    $region79: #{tpu_custom_call.1} parent=1 // pred_check_branch
      %3765 = sbr.rel (0) target = $region81
    $region80: #{tpu_custom_call.1} parent=1 // pred_region
      %3766 = dma.done [#allocation16], 8192
    $region81: #{tpu_custom_call.1} parent=1 // pred_fallthru
      _
    %3767 = vsyncpa [#allocation4], 1
    %3768 = vsyncpa [#allocation7], 1
    %3769 = vsyncpa [#allocation10], 1
    %3770 = vsyncpa [#allocation13], 1
    %3771 = vsyncpa [#allocation5], 1
    %3772 = vsyncpa [#allocation16], 1

</llo_original>
